<compile_context>
chip_gen: v5e
topology: v5e:2x2
jax: 0.10.0
libtpu: 0.0.40
codegen_flags: <defaults>
</compile_context>

<pallas_src>
import functools

import jax
import jax.numpy as jnp
from jax import lax
from jax.experimental import pallas as pl
from jax.experimental.pallas import tpu as pltpu


def _round_up(x, m):
    return (x + m - 1) // m * m


def _vmem_limit():
    """Generation-aware VMEM scoped limit (leaves headroom for internals)."""
    cap_bytes = None
    try:
        cap_bytes = int(pltpu.get_tpu_info().vmem_capacity_bytes)
    except Exception:
        try:
            kind = jax.devices()[0].device_kind.lower()
            cap_bytes = (64 if "v7" in kind else 128) * 1024 * 1024
        except Exception:
            cap_bytes = 64 * 1024 * 1024   # conservative: fits every generation
    return min(int(cap_bytes * 0.85), 112 * 1024 * 1024)


def _pick_batch_tile(b):
    tb = b
    for cand in (256, 128, 64, 32, 16, 8):
        if b % cand == 0:
            tb = cand
            break
    # v7x has 2 TensorCores and batch is the only "parallel" grid axis:
    # make sure it yields >= 2 blocks whenever the batch is big enough to split.
    if b // tb < 2 and tb >= 16 and tb % 2 == 0:
        tb //= 2
    return tb


def _pick_chunk(T, tb, d_max, Hp, vmem_limit):
    """Timesteps per grid step; bounded by double-buffered x+out block bytes."""
    cap = _round_up(T, 8)
    budget = vmem_limit // 3          # leave room for weights, state, outputs
    for chunk in (64, 32, 16, 8):
        if chunk <= cap and 2 * chunk * tb * (d_max + Hp) * 2 <= budget:
            return chunk
    return min(8, cap)


# ----------------------------------------------------------------------------
# Fused LSTM layer kernel: input projection + recurrence in one pass
# ----------------------------------------------------------------------------
def _lstm_fused_kernel(x_ref, wih_ref, whh_ref, b_ref, h0_ref, c0_ref, len_ref,
                       out_ref, hT_ref, cT_ref, h_scr, c_scr, *, hidden_p, chunk):
    """grid = (batch_blocks, time_chunks); h/c carried in fp32 VMEM scratch.

    x_ref   : (chunk, tb, D) bf16 layer input block.
    wih_ref : (D, 4Hp) bf16 resident input weights.
    whh_ref : (Hp, 4Hp) bf16 resident recurrent weights.
    b_ref   : (1, 4Hp) f32 bias (b_ih + b_hh), gate groups lane-aligned at k*Hp.
    """
    Hp = hidden_p
    t_blk = pl.program_id(1)

    @pl.when(t_blk == 0)
    def _():
        h_scr[...] = h0_ref[...]
        c_scr[...] = c0_ref[...]

    tb = h_scr.shape[0]
    lens = len_ref[...]                                   # (tb, Hp) int32
    bias = jnp.broadcast_to(b_ref[...], (tb, 4 * Hp))     # hoisted broadcast
    t0 = t_blk * chunk

    def step(i, carry):
        h, c = carry
        # Fused pre-activation: x@W_ih^T + h@W_hh^T + b (bf16 MXU, f32 acc).
        gates = (jnp.dot(x_ref[i], wih_ref[...],
                         preferred_element_type=jnp.float32)
                 + jnp.dot(h.astype(jnp.bfloat16), whh_ref[...],
                           preferred_element_type=jnp.float32)
                 + bias)
        # PyTorch gate order [i, f, g, o]; slices are lane-aligned (Hp % 128 == 0).
        # TODO(synk): optional bf16 EUP path for sigmoid/tanh on v6e/v7x.
        i_g = jax.nn.sigmoid(gates[:, 0 * Hp:1 * Hp])
        f_g = jax.nn.sigmoid(gates[:, 1 * Hp:2 * Hp])
        g_g = jnp.tanh(gates[:, 2 * Hp:3 * Hp])
        o_g = jax.nn.sigmoid(gates[:, 3 * Hp:4 * Hp])
        c_new = f_g * c + i_g * g_g
        h_new = o_g * jnp.tanh(c_new)
        valid = (t0 + i) < lens                           # packed-seq mask
        h = jnp.where(valid, h_new, h)
        c = jnp.where(valid, c_new, c)
        out_ref[i] = jnp.where(valid, h_new, 0.0).astype(out_ref.dtype)
        return h, c

    h, c = lax.fori_loop(0, chunk, step, (h_scr[...], c_scr[...]),
                         unroll=(True if chunk <= 8 else 4))
    h_scr[...] = h
    c_scr[...] = c

    @pl.when(t_blk == pl.num_programs(1) - 1)
    def _():
        hT_ref[...] = h
        cT_ref[...] = c


def lstm_layer(x_seq, wih_T, whh_T, bias, h0, c0, len_bh, *, chunk, tb):
    """x_seq: (T_pad, B, D) bf16 -> (out (T_pad,B,Hp) bf16, h_T f32, c_T f32)."""
    T_pad, B, D = x_seq.shape
    Hp = h0.shape[-1]
    G = 4 * Hp
    nb = B // tb
    nt = T_pad // chunk
    kern = functools.partial(_lstm_fused_kernel, hidden_p=Hp, chunk=chunk)
    return pl.pallas_call(
        kern,
        out_shape=(jax.ShapeDtypeStruct((T_pad, B, Hp), jnp.bfloat16),
                   jax.ShapeDtypeStruct((B, Hp), jnp.float32),
                   jax.ShapeDtypeStruct((B, Hp), jnp.float32)),
        grid_spec=pltpu.PrefetchScalarGridSpec(
            num_scalar_prefetch=0,
            grid=(nb, nt),
            in_specs=[
                pl.BlockSpec((chunk, tb, D), lambda b, t: (t, b, 0)),   # x
                pl.BlockSpec((D, G), lambda b, t: (0, 0)),              # W_ih^T
                pl.BlockSpec((Hp, G), lambda b, t: (0, 0)),             # W_hh^T
                pl.BlockSpec((1, G), lambda b, t: (0, 0)),              # bias
                pl.BlockSpec((tb, Hp), lambda b, t: (b, 0)),            # h0
                pl.BlockSpec((tb, Hp), lambda b, t: (b, 0)),            # c0
                pl.BlockSpec((tb, Hp), lambda b, t: (b, 0)),            # lengths
            ],
            out_specs=(pl.BlockSpec((chunk, tb, Hp), lambda b, t: (t, b, 0)),
                       pl.BlockSpec((tb, Hp), lambda b, t: (b, 0)),
                       pl.BlockSpec((tb, Hp), lambda b, t: (b, 0))),
            scratch_shapes=[pltpu.VMEM((tb, Hp), jnp.float32),
                            pltpu.VMEM((tb, Hp), jnp.float32)]),
        compiler_params=pltpu.CompilerParams(
            dimension_semantics=("parallel", "arbitrary"),
            vmem_limit_bytes=_vmem_limit()),
    )(x_seq, wih_T, whh_T, bias, h0, c0, len_bh)


# ----------------------------------------------------------------------------
# FC + ReLU head
# ----------------------------------------------------------------------------
def _fc_relu_kernel(x_ref, w_ref, b_ref, o_ref):
    y = jnp.dot(x_ref[...].astype(jnp.bfloat16), w_ref[...],
                preferred_element_type=jnp.float32) + b_ref[...]
    o_ref[...] = jnp.maximum(y, 0.0)


def fc_relu(x, w_T_pad, b_pad):
    """x: (B, Hp) f32, w_T_pad: (Hp, Lp) bf16, b_pad: (1, Lp) f32; Lp % 128 == 0."""
    B, Hp = x.shape
    Lp = w_T_pad.shape[1]
    return pl.pallas_call(
        _fc_relu_kernel,
        out_shape=jax.ShapeDtypeStruct((B, Lp), jnp.float32),
        grid=(1,),
        in_specs=[pl.BlockSpec((B, Hp), lambda i: (0, 0)),
                  pl.BlockSpec((Hp, Lp), lambda i: (0, 0)),
                  pl.BlockSpec((1, Lp), lambda i: (0, 0))],
        out_specs=pl.BlockSpec((B, Lp), lambda i: (0, 0)),
    )(x, w_T_pad, b_pad)


# ----------------------------------------------------------------------------
# Parameter init (lane-aligned gate packing) + forward
# ----------------------------------------------------------------------------
def _xavier_normal(key, shape):
    fan_out, fan_in = shape
    std = (2.0 / (fan_in + fan_out)) ** 0.5
    return std * jax.random.normal(key, shape, dtype=jnp.float32)


def _xavier_uniform(key, shape):
    fan_out, fan_in = shape
    bound = (6.0 / (fan_in + fan_out)) ** 0.5
    return jax.random.uniform(key, shape, jnp.float32, -bound, bound)


def _pack_gates_cols(w, H, Hp, out_rows):
    """w: (rows, 4H) -> (out_rows, 4Hp) f32 with gate k lane-aligned at k*Hp."""
    rows = w.shape[0]
    out = jnp.zeros((out_rows, 4 * Hp), jnp.float32)
    for g in range(4):
        out = out.at[:rows, g * Hp:g * Hp + H].set(w[:, g * H:(g + 1) * H])
    return out


def _unpack_gates_cols(w_pad, rows, H, Hp):
    w = w_pad.astype(jnp.float32)
    return jnp.concatenate([w[:rows, g * Hp:g * Hp + H] for g in range(4)], axis=1)


def init_lstm_params(params, key):
    H = params['hidden_size']
    Hp = _round_up(H, 128)                 # lane-aligned hidden width
    n_layers = params['layers']
    in_dim = params['input_dim']
    label_dim = params['label_dim']

    layers = []
    for l in range(n_layers):
        d_raw = in_dim if l == 0 else H    # true input width of this layer
        d_in = in_dim if l == 0 else Hp    # padded width fed to the kernel
        key, k1, k2 = jax.random.split(key, 3)
        w_ih = _xavier_normal(k1, (4 * H, d_raw))   # torch layout (4H, d_in)
        w_hh = _xavier_normal(k2, (4 * H, H))
        b = jnp.zeros((4 * H,), jnp.float32)        # b_ih + b_hh, both zero-init
        # Zero-padded lane-aligned packing: padded h/c lanes stay exactly zero.
        wih_T = _pack_gates_cols(w_ih.T, H, Hp, d_in).astype(jnp.bfloat16)
        whh_T = _pack_gates_cols(w_hh.T, H, Hp, Hp).astype(jnp.bfloat16)
        b_pad = _pack_gates_cols(b.reshape(1, 4 * H), H, Hp, 1)
        layers.append(dict(wih_T=wih_T, whh_T=whh_T, b=b_pad))

    key, k3, k4 = jax.random.split(key, 3)
    fc_w = _xavier_uniform(k3, (label_dim, H))
    fc_b = jax.random.uniform(k4, (label_dim,), jnp.float32,
                              -1.0 / (H ** 0.5), 1.0 / (H ** 0.5))
    Lp = _round_up(label_dim, 128)                  # lane-dense FC output
    fc_w_T_pad = (jnp.zeros((Hp, Lp), jnp.float32)
                  .at[:H, :label_dim].set(fc_w.T)).astype(jnp.bfloat16)
    fc_b_pad = jnp.zeros((1, Lp), jnp.float32).at[0, :label_dim].set(fc_b)
    return dict(H=H, Hp=Hp, n_layers=n_layers, label_dim=label_dim,
                layers=layers, fc_w_T_pad=fc_w_T_pad, fc_b_pad=fc_b_pad)


def init_hidden(params, batch_size):
    H = params['hidden_size']
    L = params['layers']
    return (jnp.zeros((L, batch_size, H), jnp.float32),
            jnp.zeros((L, batch_size, H), jnp.float32))


def lstm_forward(weights, x, lengths, hidden):
    """x: (B, T, input_dim), lengths: (B,) int (sorted desc, like pack_padded),
    hidden: tuple of (n_layers, B, H).  Returns (out, (h_n, c_n), hidden_activation)."""
    B, T, D = x.shape
    H, Hp = weights['H'], weights['Hp']
    h0_all, c0_all = hidden
    if Hp != H:                                      # pad state lanes to Hp
        h0_all = jnp.pad(h0_all, ((0, 0), (0, 0), (0, Hp - H)))
        c0_all = jnp.pad(c0_all, ((0, 0), (0, 0), (0, Hp - H)))

    tb = _pick_batch_tile(B)
    vmem = _vmem_limit()
    chunk = _pick_chunk(T, tb, max(D, Hp), Hp, vmem)
    T_pad = _round_up(T, chunk)

    len_bh = jnp.broadcast_to(lengths.astype(jnp.int32)[:, None], (B, Hp))

    seq = jnp.transpose(x, (1, 0, 2)).astype(jnp.bfloat16)   # (T, B, D) bf16
    if T_pad != T:
        seq = jnp.pad(seq, ((0, T_pad - T), (0, 0), (0, 0)))

    h_finals, c_finals = [], []
    for l in range(weights['n_layers']):
        lw = weights['layers'][l]
        out_seq, hT, cT = lstm_layer(seq, lw['wih_T'], lw['whh_T'], lw['b'],
                                     h0_all[l], c0_all[l], len_bh,
                                     chunk=chunk, tb=tb)
        # TODO(synk): inter-layer dropout (drop_prob) omitted — eval-mode identity.
        seq = out_seq                                # bf16, consumed by next layer
        h_finals.append(hT)
        c_finals.append(cT)

    hidden_activation = jnp.transpose(seq[:T, :, :H], (1, 0, 2)).astype(jnp.float32)
    # last_out[j] == hidden_activation[j, lengths[j]-1, :] == final h of top layer
    last_out = h_finals[-1]                          # (B, Hp); pad lanes exactly 0
    # TODO(synk): fully_connected_drop_prob dropout omitted — eval-mode identity.
    out = fc_relu(last_out, weights['fc_w_T_pad'],
                  weights['fc_b_pad'])[:, :weights['label_dim']]
    h_n = jnp.stack(h_finals, axis=0)[:, :, :H]
    c_n = jnp.stack(c_finals, axis=0)[:, :, :H]
    return out, (h_n, c_n), hidden_activation


# ----------------------------------------------------------------------------
# Pure-JAX reference for correctness checking (fp32 math, bf16-stored weights)
# ----------------------------------------------------------------------------
def lstm_forward_ref(weights, x, lengths, hidden):
    B, T, D = x.shape
    H, Hp, L = weights['H'], weights['Hp'], weights['label_dim']
    h0_all, c0_all = hidden
    seq = x.astype(jnp.float32)
    hs, cs = [], []
    for l in range(weights['n_layers']):
        lw = weights['layers'][l]
        d_raw = D if l == 0 else H
        wih = _unpack_gates_cols(lw['wih_T'], d_raw, H, Hp)   # (d_raw, 4H)
        whh = _unpack_gates_cols(lw['whh_T'], H, H, Hp)       # (H, 4H)
        b = jnp.concatenate([lw['b'][:, g * Hp:g * Hp + H] for g in range(4)],
                            axis=1)
        h, c = h0_all[l], c0_all[l]
        outs = []
        for t in range(T):
            x_t = seq[:, t, :]
            gates = x_t @ wih + h @ whh + b
            i_g = jax.nn.sigmoid(gates[:, :H])
            f_g = jax.nn.sigmoid(gates[:, H:2 * H])
            g_g = jnp.tanh(gates[:, 2 * H:3 * H])
            o_g = jax.nn.sigmoid(gates[:, 3 * H:])
            c_new = f_g * c + i_g * g_g
            h_new = o_g * jnp.tanh(c_new)
            valid = (t < lengths)[:, None]
            h = jnp.where(valid, h_new, h)
            c = jnp.where(valid, c_new, c)
            outs.append(jnp.where(valid, h_new, 0.0))
        seq = jnp.stack(outs, axis=1)
        hs.append(h)
        cs.append(c)
    fc_w = weights['fc_w_T_pad'].astype(jnp.float32)[:H, :L]
    fc_b = weights['fc_b_pad'][:, :L]
    out = jnp.maximum(hs[-1] @ fc_w + fc_b, 0.0)
    return out, (jnp.stack(hs), jnp.stack(cs)), seq


# ----------------------------------------------------------------------------
if __name__ == "__main__":
    params = {'input_dim': 16, 'hidden_size': 32, 'layers': 2,
              'drop_prob': 0.0, 'fully_connected_drop_prob': 0.0,
              'label_dim': 4}
    B, T = 2, 8

    key = jax.random.PRNGKey(0)
    k_w, k_x = jax.random.split(key)
    weights = init_lstm_params(params, k_w)

    x = jax.random.normal(k_x, (B, T, params['input_dim']), jnp.float32)
    lengths = jnp.array([T, 5], dtype=jnp.int32)       # sorted descending
    hidden = init_hidden(params, B)

    out, (h_n, c_n), hidden_act = lstm_forward(weights, x, lengths, hidden)
    jax.block_until_ready((out, h_n, c_n, hidden_act))

    out_r, (h_r, c_r), act_r = lstm_forward_ref(weights, x, lengths, hidden)
    # bf16 matmul operands / bf16 inter-layer activations vs fp32 reference
    assert jnp.allclose(out, out_r, rtol=5e-2, atol=5e-2)
    assert jnp.allclose(h_n, h_r, rtol=5e-2, atol=5e-2)
    assert jnp.allclose(c_n, c_r, rtol=5e-2, atol=5e-2)
    assert jnp.allclose(hidden_act, act_r, rtol=5e-2, atol=5e-2)

    print("KERNEL_OK")
</pallas_src>

<mosaic_0001>
module attributes {stable_mosaic.version = 11 : i64} {
  func.func @_lstm_fused_kernel(%arg0: i32, %arg1: i32, %arg2: memref<8x2x16xbf16, #tpu.memory_space<vmem>>, %arg3: memref<16x512xbf16, #tpu.memory_space<vmem>>, %arg4: memref<128x512xbf16, #tpu.memory_space<vmem>>, %arg5: memref<1x512xf32, #tpu.memory_space<vmem>>, %arg6: memref<2x128xf32, #tpu.memory_space<vmem>>, %arg7: memref<2x128xf32, #tpu.memory_space<vmem>>, %arg8: memref<2x128xi32, #tpu.memory_space<vmem>>, %arg9: memref<8x2x128xbf16, #tpu.memory_space<vmem>>, %arg10: memref<2x128xf32, #tpu.memory_space<vmem>>, %arg11: memref<2x128xf32, #tpu.memory_space<vmem>>, %arg12: memref<2x128xf32, #tpu.memory_space<vmem>>, %arg13: memref<2x128xf32, #tpu.memory_space<vmem>>) attributes {dimension_semantics = [#tpu.dimension_semantics<parallel>, #tpu.dimension_semantics<arbitrary>], iteration_bounds = array<i64: 1, 1>, scalar_prefetch = 0 : i64, scratch_operands = 2 : i64, tpu.core_type = #tpu.core_type<tc>, window_params = [{transform_indices = @transform_0, window_bounds = array<i64: 8, 2, 16>}, {pipeline_mode = #tpu.pipeline_mode<synchronous>, transform_indices = @transform_1, window_bounds = array<i64: 16, 512>}, {pipeline_mode = #tpu.pipeline_mode<synchronous>, transform_indices = @transform_2, window_bounds = array<i64: 128, 512>}, {pipeline_mode = #tpu.pipeline_mode<synchronous>, transform_indices = @transform_3, window_bounds = array<i64: 1, 512>}, {transform_indices = @transform_4, window_bounds = array<i64: 2, 128>}, {transform_indices = @transform_5, window_bounds = array<i64: 2, 128>}, {transform_indices = @transform_6, window_bounds = array<i64: 2, 128>}, {transform_indices = @transform_7, window_bounds = array<i64: 8, 2, 128>}, {transform_indices = @transform_8, window_bounds = array<i64: 2, 128>}, {transform_indices = @transform_9, window_bounds = array<i64: 2, 128>}]} {
    %c0_i32 = arith.constant 0 : i32
    %0 = arith.cmpi eq, %arg1, %c0_i32 : i32
    %1 = arith.extui %0 : i1 to i32
    %c0_i32_0 = arith.constant 0 : i32
    %2 = arith.cmpi ne, %1, %c0_i32_0 : i32
    scf.if %2 {
      %c0_127 = arith.constant 0 : index
      %c0_128 = arith.constant 0 : index
      %391 = vector.load %arg6[%c0_127, %c0_128] : memref<2x128xf32, #tpu.memory_space<vmem>>, vector<2x128xf32>
      %c0_129 = arith.constant 0 : index
      %c0_130 = arith.constant 0 : index
      %392 = vector.load %arg12[%c0_129, %c0_130] : memref<2x128xf32, #tpu.memory_space<vmem>>, vector<2x128xf32>
      tpu.vector_store %arg12[%c0_129, %c0_130], %391 {strides = array<i32>} : memref<2x128xf32, #tpu.memory_space<vmem>>, vector<2x128xf32>,
      %c0_131 = arith.constant 0 : index
      %c0_132 = arith.constant 0 : index
      %393 = vector.load %arg7[%c0_131, %c0_132] : memref<2x128xf32, #tpu.memory_space<vmem>>, vector<2x128xf32>
      %c0_133 = arith.constant 0 : index
      %c0_134 = arith.constant 0 : index
      %394 = vector.load %arg13[%c0_133, %c0_134] : memref<2x128xf32, #tpu.memory_space<vmem>>, vector<2x128xf32>
      tpu.vector_store %arg13[%c0_133, %c0_134], %393 {strides = array<i32>} : memref<2x128xf32, #tpu.memory_space<vmem>>, vector<2x128xf32>,
    } else {
    }
    %c0 = arith.constant 0 : index
    %c0_1 = arith.constant 0 : index
    %3 = vector.load %arg8[%c0, %c0_1] : memref<2x128xi32, #tpu.memory_space<vmem>>, vector<2x128xi32>
    %c0_2 = arith.constant 0 : index
    %c0_3 = arith.constant 0 : index
    %4 = vector.load %arg5[%c0_2, %c0_3] : memref<1x512xf32, #tpu.memory_space<vmem>>, vector<1x512xf32>
    %5 = vector.shape_cast %4 : vector<1x512xf32> to vector<1x512xf32>
    %6 = vector.broadcast %5 : vector<1x512xf32> to vector<2x512xf32>
    %c8_i32 = arith.constant 8 : i32
    %7 = arith.muli %arg1, %c8_i32 : i32
    %c0_4 = arith.constant 0 : index
    %c0_5 = arith.constant 0 : index
    %8 = vector.load %arg12[%c0_4, %c0_5] : memref<2x128xf32, #tpu.memory_space<vmem>>, vector<2x128xf32>
    %c0_6 = arith.constant 0 : index
    %c0_7 = arith.constant 0 : index
    %9 = vector.load %arg13[%c0_6, %c0_7] : memref<2x128xf32, #tpu.memory_space<vmem>>, vector<2x128xf32>
    %c0_i32_8 = arith.constant 0 : i32
    %10 = arith.index_cast %c0_i32_8 : i32 to index
    %c0_9 = arith.constant 0 : index
    %c0_10 = arith.constant 0 : index
    %11 = vector.load %arg2[%10, %c0_9, %c0_10] : memref<8x2x16xbf16, #tpu.memory_space<vmem>>, vector<1x2x16xbf16>
    %12 = vector.shape_cast %11 : vector<1x2x16xbf16> to vector<2x16xbf16>
    %c0_11 = arith.constant 0 : index
    %c0_12 = arith.constant 0 : index
    %13 = vector.load %arg3[%c0_11, %c0_12] : memref<16x512xbf16, #tpu.memory_space<vmem>>, vector<16x512xbf16>
    %cst = arith.constant dense<0.000000e+00> : vector<2x512xf32>
    %14 = tpu.matmul %12, %13, %cst {dimension_numbers = #tpu.dot_dimension_numbers<[1], [0], [0], [1], [0, 0, 1, 1], [], []>} : vector<2x16xbf16>, vector<16x512xbf16>, vector<2x512xf32> -> vector<2x512xf32>
    %15 = arith.truncf %8 : vector<2x128xf32> to vector<2x128xbf16>
    %c0_13 = arith.constant 0 : index
    %c0_14 = arith.constant 0 : index
    %16 = vector.load %arg4[%c0_13, %c0_14] : memref<128x512xbf16, #tpu.memory_space<vmem>>, vector<128x512xbf16>
    %cst_15 = arith.constant dense<0.000000e+00> : vector<2x512xf32>
    %17 = tpu.matmul %15, %16, %cst_15 {dimension_numbers = #tpu.dot_dimension_numbers<[1], [0], [0], [1], [0, 0, 1, 1], [], []>} : vector<2x128xbf16>, vector<128x512xbf16>, vector<2x512xf32> -> vector<2x512xf32>
    %18 = arith.addf %14, %17 : vector<2x512xf32>
    %19 = arith.addf %18, %6 : vector<2x512xf32>
    %20 = vector.extract_strided_slice %19 {offsets = [0, 0], sizes = [2, 128], strides = [1, 1]} : vector<2x512xf32> to vector<2x128xf32>
    %21 = arith.negf %20 : vector<2x128xf32>
    %22 = math.exp %21 : vector<2x128xf32>
    %cst_16 = arith.constant 1.000000e+00 : f32
    %23 = vector.broadcast %cst_16 : f32 to vector<2x128xf32>
    %24 = arith.addf %23, %22 : vector<2x128xf32>
    %25 = arith.divf %23, %24 : vector<2x128xf32>
    %26 = vector.extract_strided_slice %19 {offsets = [0, 128], sizes = [2, 128], strides = [1, 1]} : vector<2x512xf32> to vector<2x128xf32>
    %27 = arith.negf %26 : vector<2x128xf32>
    %28 = math.exp %27 : vector<2x128xf32>
    %cst_17 = arith.constant 1.000000e+00 : f32
    %29 = vector.broadcast %cst_17 : f32 to vector<2x128xf32>
    %30 = arith.addf %29, %28 : vector<2x128xf32>
    %31 = arith.divf %29, %30 : vector<2x128xf32>
    %32 = vector.extract_strided_slice %19 {offsets = [0, 256], sizes = [2, 128], strides = [1, 1]} : vector<2x512xf32> to vector<2x128xf32>
    %33 = math.tanh %32 : vector<2x128xf32>
    %34 = vector.extract_strided_slice %19 {offsets = [0, 384], sizes = [2, 128], strides = [1, 1]} : vector<2x512xf32> to vector<2x128xf32>
    %35 = arith.negf %34 : vector<2x128xf32>
    %36 = math.exp %35 : vector<2x128xf32>
    %cst_18 = arith.constant 1.000000e+00 : f32
    %37 = vector.broadcast %cst_18 : f32 to vector<2x128xf32>
    %38 = arith.addf %37, %36 : vector<2x128xf32>
    %39 = arith.divf %37, %38 : vector<2x128xf32>
    %40 = arith.mulf %31, %9 : vector<2x128xf32>
    %41 = arith.mulf %25, %33 : vector<2x128xf32>
    %42 = arith.addf %40, %41 : vector<2x128xf32>
    %43 = math.tanh %42 : vector<2x128xf32>
    %44 = arith.mulf %39, %43 : vector<2x128xf32>
    %45 = arith.addi %7, %c0_i32_8 : i32
    %46 = vector.broadcast %45 : i32 to vector<2x128xi32>
    %47 = arith.cmpi slt, %46, %3 : vector<2x128xi32>
    %48 = arith.select %47, %44, %8 : vector<2x128xi1>, vector<2x128xf32>
    %49 = arith.select %47, %42, %9 : vector<2x128xi1>, vector<2x128xf32>
    %cst_19 = arith.constant 0.000000e+00 : f32
    %50 = vector.broadcast %cst_19 : f32 to vector<2x128xf32>
    %51 = arith.select %47, %44, %50 : vector<2x128xi1>, vector<2x128xf32>
    %52 = arith.truncf %51 : vector<2x128xf32> to vector<2x128xbf16>
    %53 = arith.index_cast %c0_i32_8 : i32 to index
    %c0_20 = arith.constant 0 : index
    %c0_21 = arith.constant 0 : index
    %54 = vector.load %arg9[%53, %c0_20, %c0_21] : memref<8x2x128xbf16, #tpu.memory_space<vmem>>, vector<1x2x128xbf16>
    %55 = vector.shape_cast %54 : vector<1x2x128xbf16> to vector<2x128xbf16>
    %56 = vector.shape_cast %52 : vector<2x128xbf16> to vector<1x2x128xbf16>
    tpu.vector_store %arg9[%53, %c0_20, %c0_21], %56 {strides = array<i32>} : memref<8x2x128xbf16, #tpu.memory_space<vmem>>, vector<1x2x128xbf16>,
    %c1_i32 = arith.constant 1 : i32
    %57 = arith.index_cast %c1_i32 : i32 to index
    %c0_22 = arith.constant 0 : index
    %c0_23 = arith.constant 0 : index
    %58 = vector.load %arg2[%57, %c0_22, %c0_23] : memref<8x2x16xbf16, #tpu.memory_space<vmem>>, vector<1x2x16xbf16>
    %59 = vector.shape_cast %58 : vector<1x2x16xbf16> to vector<2x16xbf16>
    %c0_24 = arith.constant 0 : index
    %c0_25 = arith.constant 0 : index
    %60 = vector.load %arg3[%c0_24, %c0_25] : memref<16x512xbf16, #tpu.memory_space<vmem>>, vector<16x512xbf16>
    %cst_26 = arith.constant dense<0.000000e+00> : vector<2x512xf32>
    %61 = tpu.matmul %59, %60, %cst_26 {dimension_numbers = #tpu.dot_dimension_numbers<[1], [0], [0], [1], [0, 0, 1, 1], [], []>} : vector<2x16xbf16>, vector<16x512xbf16>, vector<2x512xf32> -> vector<2x512xf32>
    %62 = arith.truncf %48 : vector<2x128xf32> to vector<2x128xbf16>
    %c0_27 = arith.constant 0 : index
    %c0_28 = arith.constant 0 : index
    %63 = vector.load %arg4[%c0_27, %c0_28] : memref<128x512xbf16, #tpu.memory_space<vmem>>, vector<128x512xbf16>
    %cst_29 = arith.constant dense<0.000000e+00> : vector<2x512xf32>
    %64 = tpu.matmul %62, %63, %cst_29 {dimension_numbers = #tpu.dot_dimension_numbers<[1], [0], [0], [1], [0, 0, 1, 1], [], []>} : vector<2x128xbf16>, vector<128x512xbf16>, vector<2x512xf32> -> vector<2x512xf32>
    %65 = arith.addf %61, %64 : vector<2x512xf32>
    %66 = arith.addf %65, %6 : vector<2x512xf32>
    %67 = vector.extract_strided_slice %66 {offsets = [0, 0], sizes = [2, 128], strides = [1, 1]} : vector<2x512xf32> to vector<2x128xf32>
    %68 = arith.negf %67 : vector<2x128xf32>
    %69 = math.exp %68 : vector<2x128xf32>
    %cst_30 = arith.constant 1.000000e+00 : f32
    %70 = vector.broadcast %cst_30 : f32 to vector<2x128xf32>
    %71 = arith.addf %70, %69 : vector<2x128xf32>
    %72 = arith.divf %70, %71 : vector<2x128xf32>
    %73 = vector.extract_strided_slice %66 {offsets = [0, 128], sizes = [2, 128], strides = [1, 1]} : vector<2x512xf32> to vector<2x128xf32>
    %74 = arith.negf %73 : vector<2x128xf32>
    %75 = math.exp %74 : vector<2x128xf32>
    %cst_31 = arith.constant 1.000000e+00 : f32
    %76 = vector.broadcast %cst_31 : f32 to vector<2x128xf32>
    %77 = arith.addf %76, %75 : vector<2x128xf32>
    %78 = arith.divf %76, %77 : vector<2x128xf32>
    %79 = vector.extract_strided_slice %66 {offsets = [0, 256], sizes = [2, 128], strides = [1, 1]} : vector<2x512xf32> to vector<2x128xf32>
    %80 = math.tanh %79 : vector<2x128xf32>
    %81 = vector.extract_strided_slice %66 {offsets = [0, 384], sizes = [2, 128], strides = [1, 1]} : vector<2x512xf32> to vector<2x128xf32>
    %82 = arith.negf %81 : vector<2x128xf32>
    %83 = math.exp %82 : vector<2x128xf32>
    %cst_32 = arith.constant 1.000000e+00 : f32
    %84 = vector.broadcast %cst_32 : f32 to vector<2x128xf32>
    %85 = arith.addf %84, %83 : vector<2x128xf32>
    %86 = arith.divf %84, %85 : vector<2x128xf32>
    %87 = arith.mulf %78, %49 : vector<2x128xf32>
    %88 = arith.mulf %72, %80 : vector<2x128xf32>
    %89 = arith.addf %87, %88 : vector<2x128xf32>
    %90 = math.tanh %89 : vector<2x128xf32>
    %91 = arith.mulf %86, %90 : vector<2x128xf32>
    %92 = arith.addi %7, %c1_i32 : i32
    %93 = vector.broadcast %92 : i32 to vector<2x128xi32>
    %94 = arith.cmpi slt, %93, %3 : vector<2x128xi32>
    %95 = arith.select %94, %91, %48 : vector<2x128xi1>, vector<2x128xf32>
    %96 = arith.select %94, %89, %49 : vector<2x128xi1>, vector<2x128xf32>
    %cst_33 = arith.constant 0.000000e+00 : f32
    %97 = vector.broadcast %cst_33 : f32 to vector<2x128xf32>
    %98 = arith.select %94, %91, %97 : vector<2x128xi1>, vector<2x128xf32>
    %99 = arith.truncf %98 : vector<2x128xf32> to vector<2x128xbf16>
    %100 = arith.index_cast %c1_i32 : i32 to index
    %c0_34 = arith.constant 0 : index
    %c0_35 = arith.constant 0 : index
    %101 = vector.load %arg9[%100, %c0_34, %c0_35] : memref<8x2x128xbf16, #tpu.memory_space<vmem>>, vector<1x2x128xbf16>
    %102 = vector.shape_cast %101 : vector<1x2x128xbf16> to vector<2x128xbf16>
    %103 = vector.shape_cast %99 : vector<2x128xbf16> to vector<1x2x128xbf16>
    tpu.vector_store %arg9[%100, %c0_34, %c0_35], %103 {strides = array<i32>} : memref<8x2x128xbf16, #tpu.memory_space<vmem>>, vector<1x2x128xbf16>,
    %c2_i32 = arith.constant 2 : i32
    %104 = arith.index_cast %c2_i32 : i32 to index
    %c0_36 = arith.constant 0 : index
    %c0_37 = arith.constant 0 : index
    %105 = vector.load %arg2[%104, %c0_36, %c0_37] : memref<8x2x16xbf16, #tpu.memory_space<vmem>>, vector<1x2x16xbf16>
    %106 = vector.shape_cast %105 : vector<1x2x16xbf16> to vector<2x16xbf16>
    %c0_38 = arith.constant 0 : index
    %c0_39 = arith.constant 0 : index
    %107 = vector.load %arg3[%c0_38, %c0_39] : memref<16x512xbf16, #tpu.memory_space<vmem>>, vector<16x512xbf16>
    %cst_40 = arith.constant dense<0.000000e+00> : vector<2x512xf32>
    %108 = tpu.matmul %106, %107, %cst_40 {dimension_numbers = #tpu.dot_dimension_numbers<[1], [0], [0], [1], [0, 0, 1, 1], [], []>} : vector<2x16xbf16>, vector<16x512xbf16>, vector<2x512xf32> -> vector<2x512xf32>
    %109 = arith.truncf %95 : vector<2x128xf32> to vector<2x128xbf16>
    %c0_41 = arith.constant 0 : index
    %c0_42 = arith.constant 0 : index
    %110 = vector.load %arg4[%c0_41, %c0_42] : memref<128x512xbf16, #tpu.memory_space<vmem>>, vector<128x512xbf16>
    %cst_43 = arith.constant dense<0.000000e+00> : vector<2x512xf32>
    %111 = tpu.matmul %109, %110, %cst_43 {dimension_numbers = #tpu.dot_dimension_numbers<[1], [0], [0], [1], [0, 0, 1, 1], [], []>} : vector<2x128xbf16>, vector<128x512xbf16>, vector<2x512xf32> -> vector<2x512xf32>
    %112 = arith.addf %108, %111 : vector<2x512xf32>
    %113 = arith.addf %112, %6 : vector<2x512xf32>
    %114 = vector.extract_strided_slice %113 {offsets = [0, 0], sizes = [2, 128], strides = [1, 1]} : vector<2x512xf32> to vector<2x128xf32>
    %115 = arith.negf %114 : vector<2x128xf32>
    %116 = math.exp %115 : vector<2x128xf32>
    %cst_44 = arith.constant 1.000000e+00 : f32
    %117 = vector.broadcast %cst_44 : f32 to vector<2x128xf32>
    %118 = arith.addf %117, %116 : vector<2x128xf32>
    %119 = arith.divf %117, %118 : vector<2x128xf32>
    %120 = vector.extract_strided_slice %113 {offsets = [0, 128], sizes = [2, 128], strides = [1, 1]} : vector<2x512xf32> to vector<2x128xf32>
    %121 = arith.negf %120 : vector<2x128xf32>
    %122 = math.exp %121 : vector<2x128xf32>
    %cst_45 = arith.constant 1.000000e+00 : f32
    %123 = vector.broadcast %cst_45 : f32 to vector<2x128xf32>
    %124 = arith.addf %123, %122 : vector<2x128xf32>
    %125 = arith.divf %123, %124 : vector<2x128xf32>
    %126 = vector.extract_strided_slice %113 {offsets = [0, 256], sizes = [2, 128], strides = [1, 1]} : vector<2x512xf32> to vector<2x128xf32>
    %127 = math.tanh %126 : vector<2x128xf32>
    %128 = vector.extract_strided_slice %113 {offsets = [0, 384], sizes = [2, 128], strides = [1, 1]} : vector<2x512xf32> to vector<2x128xf32>
    %129 = arith.negf %128 : vector<2x128xf32>
    %130 = math.exp %129 : vector<2x128xf32>
    %cst_46 = arith.constant 1.000000e+00 : f32
    %131 = vector.broadcast %cst_46 : f32 to vector<2x128xf32>
    %132 = arith.addf %131, %130 : vector<2x128xf32>
    %133 = arith.divf %131, %132 : vector<2x128xf32>
    %134 = arith.mulf %125, %96 : vector<2x128xf32>
    %135 = arith.mulf %119, %127 : vector<2x128xf32>
    %136 = arith.addf %134, %135 : vector<2x128xf32>
    %137 = math.tanh %136 : vector<2x128xf32>
    %138 = arith.mulf %133, %137 : vector<2x128xf32>
    %139 = arith.addi %7, %c2_i32 : i32
    %140 = vector.broadcast %139 : i32 to vector<2x128xi32>
    %141 = arith.cmpi slt, %140, %3 : vector<2x128xi32>
    %142 = arith.select %141, %138, %95 : vector<2x128xi1>, vector<2x128xf32>
    %143 = arith.select %141, %136, %96 : vector<2x128xi1>, vector<2x128xf32>
    %cst_47 = arith.constant 0.000000e+00 : f32
    %144 = vector.broadcast %cst_47 : f32 to vector<2x128xf32>
    %145 = arith.select %141, %138, %144 : vector<2x128xi1>, vector<2x128xf32>
    %146 = arith.truncf %145 : vector<2x128xf32> to vector<2x128xbf16>
    %147 = arith.index_cast %c2_i32 : i32 to index
    %c0_48 = arith.constant 0 : index
    %c0_49 = arith.constant 0 : index
    %148 = vector.load %arg9[%147, %c0_48, %c0_49] : memref<8x2x128xbf16, #tpu.memory_space<vmem>>, vector<1x2x128xbf16>
    %149 = vector.shape_cast %148 : vector<1x2x128xbf16> to vector<2x128xbf16>
    %150 = vector.shape_cast %146 : vector<2x128xbf16> to vector<1x2x128xbf16>
    tpu.vector_store %arg9[%147, %c0_48, %c0_49], %150 {strides = array<i32>} : memref<8x2x128xbf16, #tpu.memory_space<vmem>>, vector<1x2x128xbf16>,
    %c3_i32 = arith.constant 3 : i32
    %151 = arith.index_cast %c3_i32 : i32 to index
    %c0_50 = arith.constant 0 : index
    %c0_51 = arith.constant 0 : index
    %152 = vector.load %arg2[%151, %c0_50, %c0_51] : memref<8x2x16xbf16, #tpu.memory_space<vmem>>, vector<1x2x16xbf16>
    %153 = vector.shape_cast %152 : vector<1x2x16xbf16> to vector<2x16xbf16>
    %c0_52 = arith.constant 0 : index
    %c0_53 = arith.constant 0 : index
    %154 = vector.load %arg3[%c0_52, %c0_53] : memref<16x512xbf16, #tpu.memory_space<vmem>>, vector<16x512xbf16>
    %cst_54 = arith.constant dense<0.000000e+00> : vector<2x512xf32>
    %155 = tpu.matmul %153, %154, %cst_54 {dimension_numbers = #tpu.dot_dimension_numbers<[1], [0], [0], [1], [0, 0, 1, 1], [], []>} : vector<2x16xbf16>, vector<16x512xbf16>, vector<2x512xf32> -> vector<2x512xf32>
    %156 = arith.truncf %142 : vector<2x128xf32> to vector<2x128xbf16>
    %c0_55 = arith.constant 0 : index
    %c0_56 = arith.constant 0 : index
    %157 = vector.load %arg4[%c0_55, %c0_56] : memref<128x512xbf16, #tpu.memory_space<vmem>>, vector<128x512xbf16>
    %cst_57 = arith.constant dense<0.000000e+00> : vector<2x512xf32>
    %158 = tpu.matmul %156, %157, %cst_57 {dimension_numbers = #tpu.dot_dimension_numbers<[1], [0], [0], [1], [0, 0, 1, 1], [], []>} : vector<2x128xbf16>, vector<128x512xbf16>, vector<2x512xf32> -> vector<2x512xf32>
    %159 = arith.addf %155, %158 : vector<2x512xf32>
    %160 = arith.addf %159, %6 : vector<2x512xf32>
    %161 = vector.extract_strided_slice %160 {offsets = [0, 0], sizes = [2, 128], strides = [1, 1]} : vector<2x512xf32> to vector<2x128xf32>
    %162 = arith.negf %161 : vector<2x128xf32>
    %163 = math.exp %162 : vector<2x128xf32>
    %cst_58 = arith.constant 1.000000e+00 : f32
    %164 = vector.broadcast %cst_58 : f32 to vector<2x128xf32>
    %165 = arith.addf %164, %163 : vector<2x128xf32>
    %166 = arith.divf %164, %165 : vector<2x128xf32>
    %167 = vector.extract_strided_slice %160 {offsets = [0, 128], sizes = [2, 128], strides = [1, 1]} : vector<2x512xf32> to vector<2x128xf32>
    %168 = arith.negf %167 : vector<2x128xf32>
    %169 = math.exp %168 : vector<2x128xf32>
    %cst_59 = arith.constant 1.000000e+00 : f32
    %170 = vector.broadcast %cst_59 : f32 to vector<2x128xf32>
    %171 = arith.addf %170, %169 : vector<2x128xf32>
    %172 = arith.divf %170, %171 : vector<2x128xf32>
    %173 = vector.extract_strided_slice %160 {offsets = [0, 256], sizes = [2, 128], strides = [1, 1]} : vector<2x512xf32> to vector<2x128xf32>
    %174 = math.tanh %173 : vector<2x128xf32>
    %175 = vector.extract_strided_slice %160 {offsets = [0, 384], sizes = [2, 128], strides = [1, 1]} : vector<2x512xf32> to vector<2x128xf32>
    %176 = arith.negf %175 : vector<2x128xf32>
    %177 = math.exp %176 : vector<2x128xf32>
    %cst_60 = arith.constant 1.000000e+00 : f32
    %178 = vector.broadcast %cst_60 : f32 to vector<2x128xf32>
    %179 = arith.addf %178, %177 : vector<2x128xf32>
    %180 = arith.divf %178, %179 : vector<2x128xf32>
    %181 = arith.mulf %172, %143 : vector<2x128xf32>
    %182 = arith.mulf %166, %174 : vector<2x128xf32>
    %183 = arith.addf %181, %182 : vector<2x128xf32>
    %184 = math.tanh %183 : vector<2x128xf32>
    %185 = arith.mulf %180, %184 : vector<2x128xf32>
    %186 = arith.addi %7, %c3_i32 : i32
    %187 = vector.broadcast %186 : i32 to vector<2x128xi32>
    %188 = arith.cmpi slt, %187, %3 : vector<2x128xi32>
    %189 = arith.select %188, %185, %142 : vector<2x128xi1>, vector<2x128xf32>
    %190 = arith.select %188, %183, %143 : vector<2x128xi1>, vector<2x128xf32>
    %cst_61 = arith.constant 0.000000e+00 : f32
    %191 = vector.broadcast %cst_61 : f32 to vector<2x128xf32>
    %192 = arith.select %188, %185, %191 : vector<2x128xi1>, vector<2x128xf32>
    %193 = arith.truncf %192 : vector<2x128xf32> to vector<2x128xbf16>
    %194 = arith.index_cast %c3_i32 : i32 to index
    %c0_62 = arith.constant 0 : index
    %c0_63 = arith.constant 0 : index
    %195 = vector.load %arg9[%194, %c0_62, %c0_63] : memref<8x2x128xbf16, #tpu.memory_space<vmem>>, vector<1x2x128xbf16>
    %196 = vector.shape_cast %195 : vector<1x2x128xbf16> to vector<2x128xbf16>
    %197 = vector.shape_cast %193 : vector<2x128xbf16> to vector<1x2x128xbf16>
    tpu.vector_store %arg9[%194, %c0_62, %c0_63], %197 {strides = array<i32>} : memref<8x2x128xbf16, #tpu.memory_space<vmem>>, vector<1x2x128xbf16>,
    %c4_i32 = arith.constant 4 : i32
    %198 = arith.index_cast %c4_i32 : i32 to index
    %c0_64 = arith.constant 0 : index
    %c0_65 = arith.constant 0 : index
    %199 = vector.load %arg2[%198, %c0_64, %c0_65] : memref<8x2x16xbf16, #tpu.memory_space<vmem>>, vector<1x2x16xbf16>
    %200 = vector.shape_cast %199 : vector<1x2x16xbf16> to vector<2x16xbf16>
    %c0_66 = arith.constant 0 : index
    %c0_67 = arith.constant 0 : index
    %201 = vector.load %arg3[%c0_66, %c0_67] : memref<16x512xbf16, #tpu.memory_space<vmem>>, vector<16x512xbf16>
    %cst_68 = arith.constant dense<0.000000e+00> : vector<2x512xf32>
    %202 = tpu.matmul %200, %201, %cst_68 {dimension_numbers = #tpu.dot_dimension_numbers<[1], [0], [0], [1], [0, 0, 1, 1], [], []>} : vector<2x16xbf16>, vector<16x512xbf16>, vector<2x512xf32> -> vector<2x512xf32>
    %203 = arith.truncf %189 : vector<2x128xf32> to vector<2x128xbf16>
    %c0_69 = arith.constant 0 : index
    %c0_70 = arith.constant 0 : index
    %204 = vector.load %arg4[%c0_69, %c0_70] : memref<128x512xbf16, #tpu.memory_space<vmem>>, vector<128x512xbf16>
    %cst_71 = arith.constant dense<0.000000e+00> : vector<2x512xf32>
    %205 = tpu.matmul %203, %204, %cst_71 {dimension_numbers = #tpu.dot_dimension_numbers<[1], [0], [0], [1], [0, 0, 1, 1], [], []>} : vector<2x128xbf16>, vector<128x512xbf16>, vector<2x512xf32> -> vector<2x512xf32>
    %206 = arith.addf %202, %205 : vector<2x512xf32>
    %207 = arith.addf %206, %6 : vector<2x512xf32>
    %208 = vector.extract_strided_slice %207 {offsets = [0, 0], sizes = [2, 128], strides = [1, 1]} : vector<2x512xf32> to vector<2x128xf32>
    %209 = arith.negf %208 : vector<2x128xf32>
    %210 = math.exp %209 : vector<2x128xf32>
    %cst_72 = arith.constant 1.000000e+00 : f32
    %211 = vector.broadcast %cst_72 : f32 to vector<2x128xf32>
    %212 = arith.addf %211, %210 : vector<2x128xf32>
    %213 = arith.divf %211, %212 : vector<2x128xf32>
    %214 = vector.extract_strided_slice %207 {offsets = [0, 128], sizes = [2, 128], strides = [1, 1]} : vector<2x512xf32> to vector<2x128xf32>
    %215 = arith.negf %214 : vector<2x128xf32>
    %216 = math.exp %215 : vector<2x128xf32>
    %cst_73 = arith.constant 1.000000e+00 : f32
    %217 = vector.broadcast %cst_73 : f32 to vector<2x128xf32>
    %218 = arith.addf %217, %216 : vector<2x128xf32>
    %219 = arith.divf %217, %218 : vector<2x128xf32>
    %220 = vector.extract_strided_slice %207 {offsets = [0, 256], sizes = [2, 128], strides = [1, 1]} : vector<2x512xf32> to vector<2x128xf32>
    %221 = math.tanh %220 : vector<2x128xf32>
    %222 = vector.extract_strided_slice %207 {offsets = [0, 384], sizes = [2, 128], strides = [1, 1]} : vector<2x512xf32> to vector<2x128xf32>
    %223 = arith.negf %222 : vector<2x128xf32>
    %224 = math.exp %223 : vector<2x128xf32>
    %cst_74 = arith.constant 1.000000e+00 : f32
    %225 = vector.broadcast %cst_74 : f32 to vector<2x128xf32>
    %226 = arith.addf %225, %224 : vector<2x128xf32>
    %227 = arith.divf %225, %226 : vector<2x128xf32>
    %228 = arith.mulf %219, %190 : vector<2x128xf32>
    %229 = arith.mulf %213, %221 : vector<2x128xf32>
    %230 = arith.addf %228, %229 : vector<2x128xf32>
    %231 = math.tanh %230 : vector<2x128xf32>
    %232 = arith.mulf %227, %231 : vector<2x128xf32>
    %233 = arith.addi %7, %c4_i32 : i32
    %234 = vector.broadcast %233 : i32 to vector<2x128xi32>
    %235 = arith.cmpi slt, %234, %3 : vector<2x128xi32>
    %236 = arith.select %235, %232, %189 : vector<2x128xi1>, vector<2x128xf32>
    %237 = arith.select %235, %230, %190 : vector<2x128xi1>, vector<2x128xf32>
    %cst_75 = arith.constant 0.000000e+00 : f32
    %238 = vector.broadcast %cst_75 : f32 to vector<2x128xf32>
    %239 = arith.select %235, %232, %238 : vector<2x128xi1>, vector<2x128xf32>
    %240 = arith.truncf %239 : vector<2x128xf32> to vector<2x128xbf16>
    %241 = arith.index_cast %c4_i32 : i32 to index
    %c0_76 = arith.constant 0 : index
    %c0_77 = arith.constant 0 : index
    %242 = vector.load %arg9[%241, %c0_76, %c0_77] : memref<8x2x128xbf16, #tpu.memory_space<vmem>>, vector<1x2x128xbf16>
    %243 = vector.shape_cast %242 : vector<1x2x128xbf16> to vector<2x128xbf16>
    %244 = vector.shape_cast %240 : vector<2x128xbf16> to vector<1x2x128xbf16>
    tpu.vector_store %arg9[%241, %c0_76, %c0_77], %244 {strides = array<i32>} : memref<8x2x128xbf16, #tpu.memory_space<vmem>>, vector<1x2x128xbf16>,
    %c5_i32 = arith.constant 5 : i32
    %245 = arith.index_cast %c5_i32 : i32 to index
    %c0_78 = arith.constant 0 : index
    %c0_79 = arith.constant 0 : index
    %246 = vector.load %arg2[%245, %c0_78, %c0_79] : memref<8x2x16xbf16, #tpu.memory_space<vmem>>, vector<1x2x16xbf16>
    %247 = vector.shape_cast %246 : vector<1x2x16xbf16> to vector<2x16xbf16>
    %c0_80 = arith.constant 0 : index
    %c0_81 = arith.constant 0 : index
    %248 = vector.load %arg3[%c0_80, %c0_81] : memref<16x512xbf16, #tpu.memory_space<vmem>>, vector<16x512xbf16>
    %cst_82 = arith.constant dense<0.000000e+00> : vector<2x512xf32>
    %249 = tpu.matmul %247, %248, %cst_82 {dimension_numbers = #tpu.dot_dimension_numbers<[1], [0], [0], [1], [0, 0, 1, 1], [], []>} : vector<2x16xbf16>, vector<16x512xbf16>, vector<2x512xf32> -> vector<2x512xf32>
    %250 = arith.truncf %236 : vector<2x128xf32> to vector<2x128xbf16>
    %c0_83 = arith.constant 0 : index
    %c0_84 = arith.constant 0 : index
    %251 = vector.load %arg4[%c0_83, %c0_84] : memref<128x512xbf16, #tpu.memory_space<vmem>>, vector<128x512xbf16>
    %cst_85 = arith.constant dense<0.000000e+00> : vector<2x512xf32>
    %252 = tpu.matmul %250, %251, %cst_85 {dimension_numbers = #tpu.dot_dimension_numbers<[1], [0], [0], [1], [0, 0, 1, 1], [], []>} : vector<2x128xbf16>, vector<128x512xbf16>, vector<2x512xf32> -> vector<2x512xf32>
    %253 = arith.addf %249, %252 : vector<2x512xf32>
    %254 = arith.addf %253, %6 : vector<2x512xf32>
    %255 = vector.extract_strided_slice %254 {offsets = [0, 0], sizes = [2, 128], strides = [1, 1]} : vector<2x512xf32> to vector<2x128xf32>
    %256 = arith.negf %255 : vector<2x128xf32>
    %257 = math.exp %256 : vector<2x128xf32>
    %cst_86 = arith.constant 1.000000e+00 : f32
    %258 = vector.broadcast %cst_86 : f32 to vector<2x128xf32>
    %259 = arith.addf %258, %257 : vector<2x128xf32>
    %260 = arith.divf %258, %259 : vector<2x128xf32>
    %261 = vector.extract_strided_slice %254 {offsets = [0, 128], sizes = [2, 128], strides = [1, 1]} : vector<2x512xf32> to vector<2x128xf32>
    %262 = arith.negf %261 : vector<2x128xf32>
    %263 = math.exp %262 : vector<2x128xf32>
    %cst_87 = arith.constant 1.000000e+00 : f32
    %264 = vector.broadcast %cst_87 : f32 to vector<2x128xf32>
    %265 = arith.addf %264, %263 : vector<2x128xf32>
    %266 = arith.divf %264, %265 : vector<2x128xf32>
    %267 = vector.extract_strided_slice %254 {offsets = [0, 256], sizes = [2, 128], strides = [1, 1]} : vector<2x512xf32> to vector<2x128xf32>
    %268 = math.tanh %267 : vector<2x128xf32>
    %269 = vector.extract_strided_slice %254 {offsets = [0, 384], sizes = [2, 128], strides = [1, 1]} : vector<2x512xf32> to vector<2x128xf32>
    %270 = arith.negf %269 : vector<2x128xf32>
    %271 = math.exp %270 : vector<2x128xf32>
    %cst_88 = arith.constant 1.000000e+00 : f32
    %272 = vector.broadcast %cst_88 : f32 to vector<2x128xf32>
    %273 = arith.addf %272, %271 : vector<2x128xf32>
    %274 = arith.divf %272, %273 : vector<2x128xf32>
    %275 = arith.mulf %266, %237 : vector<2x128xf32>
    %276 = arith.mulf %260, %268 : vector<2x128xf32>
    %277 = arith.addf %275, %276 : vector<2x128xf32>
    %278 = math.tanh %277 : vector<2x128xf32>
    %279 = arith.mulf %274, %278 : vector<2x128xf32>
    %280 = arith.addi %7, %c5_i32 : i32
    %281 = vector.broadcast %280 : i32 to vector<2x128xi32>
    %282 = arith.cmpi slt, %281, %3 : vector<2x128xi32>
    %283 = arith.select %282, %279, %236 : vector<2x128xi1>, vector<2x128xf32>
    %284 = arith.select %282, %277, %237 : vector<2x128xi1>, vector<2x128xf32>
    %cst_89 = arith.constant 0.000000e+00 : f32
    %285 = vector.broadcast %cst_89 : f32 to vector<2x128xf32>
    %286 = arith.select %282, %279, %285 : vector<2x128xi1>, vector<2x128xf32>
    %287 = arith.truncf %286 : vector<2x128xf32> to vector<2x128xbf16>
    %288 = arith.index_cast %c5_i32 : i32 to index
    %c0_90 = arith.constant 0 : index
    %c0_91 = arith.constant 0 : index
    %289 = vector.load %arg9[%288, %c0_90, %c0_91] : memref<8x2x128xbf16, #tpu.memory_space<vmem>>, vector<1x2x128xbf16>
    %290 = vector.shape_cast %289 : vector<1x2x128xbf16> to vector<2x128xbf16>
    %291 = vector.shape_cast %287 : vector<2x128xbf16> to vector<1x2x128xbf16>
    tpu.vector_store %arg9[%288, %c0_90, %c0_91], %291 {strides = array<i32>} : memref<8x2x128xbf16, #tpu.memory_space<vmem>>, vector<1x2x128xbf16>,
    %c6_i32 = arith.constant 6 : i32
    %292 = arith.index_cast %c6_i32 : i32 to index
    %c0_92 = arith.constant 0 : index
    %c0_93 = arith.constant 0 : index
    %293 = vector.load %arg2[%292, %c0_92, %c0_93] : memref<8x2x16xbf16, #tpu.memory_space<vmem>>, vector<1x2x16xbf16>
    %294 = vector.shape_cast %293 : vector<1x2x16xbf16> to vector<2x16xbf16>
    %c0_94 = arith.constant 0 : index
    %c0_95 = arith.constant 0 : index
    %295 = vector.load %arg3[%c0_94, %c0_95] : memref<16x512xbf16, #tpu.memory_space<vmem>>, vector<16x512xbf16>
    %cst_96 = arith.constant dense<0.000000e+00> : vector<2x512xf32>
    %296 = tpu.matmul %294, %295, %cst_96 {dimension_numbers = #tpu.dot_dimension_numbers<[1], [0], [0], [1], [0, 0, 1, 1], [], []>} : vector<2x16xbf16>, vector<16x512xbf16>, vector<2x512xf32> -> vector<2x512xf32>
    %297 = arith.truncf %283 : vector<2x128xf32> to vector<2x128xbf16>
    %c0_97 = arith.constant 0 : index
    %c0_98 = arith.constant 0 : index
    %298 = vector.load %arg4[%c0_97, %c0_98] : memref<128x512xbf16, #tpu.memory_space<vmem>>, vector<128x512xbf16>
    %cst_99 = arith.constant dense<0.000000e+00> : vector<2x512xf32>
    %299 = tpu.matmul %297, %298, %cst_99 {dimension_numbers = #tpu.dot_dimension_numbers<[1], [0], [0], [1], [0, 0, 1, 1], [], []>} : vector<2x128xbf16>, vector<128x512xbf16>, vector<2x512xf32> -> vector<2x512xf32>
    %300 = arith.addf %296, %299 : vector<2x512xf32>
    %301 = arith.addf %300, %6 : vector<2x512xf32>
    %302 = vector.extract_strided_slice %301 {offsets = [0, 0], sizes = [2, 128], strides = [1, 1]} : vector<2x512xf32> to vector<2x128xf32>
    %303 = arith.negf %302 : vector<2x128xf32>
    %304 = math.exp %303 : vector<2x128xf32>
    %cst_100 = arith.constant 1.000000e+00 : f32
    %305 = vector.broadcast %cst_100 : f32 to vector<2x128xf32>
    %306 = arith.addf %305, %304 : vector<2x128xf32>
    %307 = arith.divf %305, %306 : vector<2x128xf32>
    %308 = vector.extract_strided_slice %301 {offsets = [0, 128], sizes = [2, 128], strides = [1, 1]} : vector<2x512xf32> to vector<2x128xf32>
    %309 = arith.negf %308 : vector<2x128xf32>
    %310 = math.exp %309 : vector<2x128xf32>
    %cst_101 = arith.constant 1.000000e+00 : f32
    %311 = vector.broadcast %cst_101 : f32 to vector<2x128xf32>
    %312 = arith.addf %311, %310 : vector<2x128xf32>
    %313 = arith.divf %311, %312 : vector<2x128xf32>
    %314 = vector.extract_strided_slice %301 {offsets = [0, 256], sizes = [2, 128], strides = [1, 1]} : vector<2x512xf32> to vector<2x128xf32>
    %315 = math.tanh %314 : vector<2x128xf32>
    %316 = vector.extract_strided_slice %301 {offsets = [0, 384], sizes = [2, 128], strides = [1, 1]} : vector<2x512xf32> to vector<2x128xf32>
    %317 = arith.negf %316 : vector<2x128xf32>
    %318 = math.exp %317 : vector<2x128xf32>
    %cst_102 = arith.constant 1.000000e+00 : f32
    %319 = vector.broadcast %cst_102 : f32 to vector<2x128xf32>
    %320 = arith.addf %319, %318 : vector<2x128xf32>
    %321 = arith.divf %319, %320 : vector<2x128xf32>
    %322 = arith.mulf %313, %284 : vector<2x128xf32>
    %323 = arith.mulf %307, %315 : vector<2x128xf32>
    %324 = arith.addf %322, %323 : vector<2x128xf32>
    %325 = math.tanh %324 : vector<2x128xf32>
    %326 = arith.mulf %321, %325 : vector<2x128xf32>
    %327 = arith.addi %7, %c6_i32 : i32
    %328 = vector.broadcast %327 : i32 to vector<2x128xi32>
    %329 = arith.cmpi slt, %328, %3 : vector<2x128xi32>
    %330 = arith.select %329, %326, %283 : vector<2x128xi1>, vector<2x128xf32>
    %331 = arith.select %329, %324, %284 : vector<2x128xi1>, vector<2x128xf32>
    %cst_103 = arith.constant 0.000000e+00 : f32
    %332 = vector.broadcast %cst_103 : f32 to vector<2x128xf32>
    %333 = arith.select %329, %326, %332 : vector<2x128xi1>, vector<2x128xf32>
    %334 = arith.truncf %333 : vector<2x128xf32> to vector<2x128xbf16>
    %335 = arith.index_cast %c6_i32 : i32 to index
    %c0_104 = arith.constant 0 : index
    %c0_105 = arith.constant 0 : index
    %336 = vector.load %arg9[%335, %c0_104, %c0_105] : memref<8x2x128xbf16, #tpu.memory_space<vmem>>, vector<1x2x128xbf16>
    %337 = vector.shape_cast %336 : vector<1x2x128xbf16> to vector<2x128xbf16>
    %338 = vector.shape_cast %334 : vector<2x128xbf16> to vector<1x2x128xbf16>
    tpu.vector_store %arg9[%335, %c0_104, %c0_105], %338 {strides = array<i32>} : memref<8x2x128xbf16, #tpu.memory_space<vmem>>, vector<1x2x128xbf16>,
    %c7_i32 = arith.constant 7 : i32
    %339 = arith.index_cast %c7_i32 : i32 to index
    %c0_106 = arith.constant 0 : index
    %c0_107 = arith.constant 0 : index
    %340 = vector.load %arg2[%339, %c0_106, %c0_107] : memref<8x2x16xbf16, #tpu.memory_space<vmem>>, vector<1x2x16xbf16>
    %341 = vector.shape_cast %340 : vector<1x2x16xbf16> to vector<2x16xbf16>
    %c0_108 = arith.constant 0 : index
    %c0_109 = arith.constant 0 : index
    %342 = vector.load %arg3[%c0_108, %c0_109] : memref<16x512xbf16, #tpu.memory_space<vmem>>, vector<16x512xbf16>
    %cst_110 = arith.constant dense<0.000000e+00> : vector<2x512xf32>
    %343 = tpu.matmul %341, %342, %cst_110 {dimension_numbers = #tpu.dot_dimension_numbers<[1], [0], [0], [1], [0, 0, 1, 1], [], []>} : vector<2x16xbf16>, vector<16x512xbf16>, vector<2x512xf32> -> vector<2x512xf32>
    %344 = arith.truncf %330 : vector<2x128xf32> to vector<2x128xbf16>
    %c0_111 = arith.constant 0 : index
    %c0_112 = arith.constant 0 : index
    %345 = vector.load %arg4[%c0_111, %c0_112] : memref<128x512xbf16, #tpu.memory_space<vmem>>, vector<128x512xbf16>
    %cst_113 = arith.constant dense<0.000000e+00> : vector<2x512xf32>
    %346 = tpu.matmul %344, %345, %cst_113 {dimension_numbers = #tpu.dot_dimension_numbers<[1], [0], [0], [1], [0, 0, 1, 1], [], []>} : vector<2x128xbf16>, vector<128x512xbf16>, vector<2x512xf32> -> vector<2x512xf32>
    %347 = arith.addf %343, %346 : vector<2x512xf32>
    %348 = arith.addf %347, %6 : vector<2x512xf32>
    %349 = vector.extract_strided_slice %348 {offsets = [0, 0], sizes = [2, 128], strides = [1, 1]} : vector<2x512xf32> to vector<2x128xf32>
    %350 = arith.negf %349 : vector<2x128xf32>
    %351 = math.exp %350 : vector<2x128xf32>
    %cst_114 = arith.constant 1.000000e+00 : f32
    %352 = vector.broadcast %cst_114 : f32 to vector<2x128xf32>
    %353 = arith.addf %352, %351 : vector<2x128xf32>
    %354 = arith.divf %352, %353 : vector<2x128xf32>
    %355 = vector.extract_strided_slice %348 {offsets = [0, 128], sizes = [2, 128], strides = [1, 1]} : vector<2x512xf32> to vector<2x128xf32>
    %356 = arith.negf %355 : vector<2x128xf32>
    %357 = math.exp %356 : vector<2x128xf32>
    %cst_115 = arith.constant 1.000000e+00 : f32
    %358 = vector.broadcast %cst_115 : f32 to vector<2x128xf32>
    %359 = arith.addf %358, %357 : vector<2x128xf32>
    %360 = arith.divf %358, %359 : vector<2x128xf32>
    %361 = vector.extract_strided_slice %348 {offsets = [0, 256], sizes = [2, 128], strides = [1, 1]} : vector<2x512xf32> to vector<2x128xf32>
    %362 = math.tanh %361 : vector<2x128xf32>
    %363 = vector.extract_strided_slice %348 {offsets = [0, 384], sizes = [2, 128], strides = [1, 1]} : vector<2x512xf32> to vector<2x128xf32>
    %364 = arith.negf %363 : vector<2x128xf32>
    %365 = math.exp %364 : vector<2x128xf32>
    %cst_116 = arith.constant 1.000000e+00 : f32
    %366 = vector.broadcast %cst_116 : f32 to vector<2x128xf32>
    %367 = arith.addf %366, %365 : vector<2x128xf32>
    %368 = arith.divf %366, %367 : vector<2x128xf32>
    %369 = arith.mulf %360, %331 : vector<2x128xf32>
    %370 = arith.mulf %354, %362 : vector<2x128xf32>
    %371 = arith.addf %369, %370 : vector<2x128xf32>
    %372 = math.tanh %371 : vector<2x128xf32>
    %373 = arith.mulf %368, %372 : vector<2x128xf32>
    %374 = arith.addi %7, %c7_i32 : i32
    %375 = vector.broadcast %374 : i32 to vector<2x128xi32>
    %376 = arith.cmpi slt, %375, %3 : vector<2x128xi32>
    %377 = arith.select %376, %373, %330 : vector<2x128xi1>, vector<2x128xf32>
    %378 = arith.select %376, %371, %331 : vector<2x128xi1>, vector<2x128xf32>
    %cst_117 = arith.constant 0.000000e+00 : f32
    %379 = vector.broadcast %cst_117 : f32 to vector<2x128xf32>
    %380 = arith.select %376, %373, %379 : vector<2x128xi1>, vector<2x128xf32>
    %381 = arith.truncf %380 : vector<2x128xf32> to vector<2x128xbf16>
    %382 = arith.index_cast %c7_i32 : i32 to index
    %c0_118 = arith.constant 0 : index
    %c0_119 = arith.constant 0 : index
    %383 = vector.load %arg9[%382, %c0_118, %c0_119] : memref<8x2x128xbf16, #tpu.memory_space<vmem>>, vector<1x2x128xbf16>
    %384 = vector.shape_cast %383 : vector<1x2x128xbf16> to vector<2x128xbf16>
    %385 = vector.shape_cast %381 : vector<2x128xbf16> to vector<1x2x128xbf16>
    tpu.vector_store %arg9[%382, %c0_118, %c0_119], %385 {strides = array<i32>} : memref<8x2x128xbf16, #tpu.memory_space<vmem>>, vector<1x2x128xbf16>,
    %c8_i32_120 = arith.constant 8 : i32
    %c0_121 = arith.constant 0 : index
    %c0_122 = arith.constant 0 : index
    %386 = vector.load %arg12[%c0_121, %c0_122] : memref<2x128xf32, #tpu.memory_space<vmem>>, vector<2x128xf32>
    tpu.vector_store %arg12[%c0_121, %c0_122], %377 {strides = array<i32>} : memref<2x128xf32, #tpu.memory_space<vmem>>, vector<2x128xf32>,
    %c0_123 = arith.constant 0 : index
    %c0_124 = arith.constant 0 : index
    %387 = vector.load %arg13[%c0_123, %c0_124] : memref<2x128xf32, #tpu.memory_space<vmem>>, vector<2x128xf32>
    tpu.vector_store %arg13[%c0_123, %c0_124], %378 {strides = array<i32>} : memref<2x128xf32, #tpu.memory_space<vmem>>, vector<2x128xf32>,
    %c0_i32_125 = arith.constant 0 : i32
    %388 = arith.cmpi eq, %arg1, %c0_i32_125 : i32
    %389 = arith.extui %388 : i1 to i32
    %c0_i32_126 = arith.constant 0 : i32
    %390 = arith.cmpi ne, %389, %c0_i32_126 : i32
    scf.if %390 {
      %c0_127 = arith.constant 0 : index
      %c0_128 = arith.constant 0 : index
      %391 = vector.load %arg10[%c0_127, %c0_128] : memref<2x128xf32, #tpu.memory_space<vmem>>, vector<2x128xf32>
      tpu.vector_store %arg10[%c0_127, %c0_128], %377 {strides = array<i32>} : memref<2x128xf32, #tpu.memory_space<vmem>>, vector<2x128xf32>,
      %c0_129 = arith.constant 0 : index
      %c0_130 = arith.constant 0 : index
      %392 = vector.load %arg11[%c0_129, %c0_130] : memref<2x128xf32, #tpu.memory_space<vmem>>, vector<2x128xf32>
      tpu.vector_store %arg11[%c0_129, %c0_130], %378 {strides = array<i32>} : memref<2x128xf32, #tpu.memory_space<vmem>>, vector<2x128xf32>,
    } else {
    }
    return
  }
  func.func @transform_0(%arg0: i32, %arg1: i32) -> (i32, i32, i32) {
    %c0_i32 = arith.constant 0 : i32
    %c0_i32_0 = arith.constant 0 : i32
    return %arg1, %arg0, %c0_i32 : i32, i32, i32
  }
  func.func @transform_1(%arg0: i32, %arg1: i32) -> (i32, i32) {
    %c0_i32 = arith.constant 0 : i32
    %c0_i32_0 = arith.constant 0 : i32
    %c0_i32_1 = arith.constant 0 : i32
    return %c0_i32, %c0_i32_0 : i32, i32
  }
  func.func @transform_2(%arg0: i32, %arg1: i32) -> (i32, i32) {
    %c0_i32 = arith.constant 0 : i32
    %c0_i32_0 = arith.constant 0 : i32
    %c0_i32_1 = arith.constant 0 : i32
    return %c0_i32, %c0_i32_0 : i32, i32
  }
  func.func @transform_3(%arg0: i32, %arg1: i32) -> (i32, i32) {
    %c0_i32 = arith.constant 0 : i32
    %c0_i32_0 = arith.constant 0 : i32
    %c0_i32_1 = arith.constant 0 : i32
    return %c0_i32, %c0_i32_0 : i32, i32
  }
  func.func @transform_4(%arg0: i32, %arg1: i32) -> (i32, i32) {
    %c0_i32 = arith.constant 0 : i32
    %c0_i32_0 = arith.constant 0 : i32
    return %arg0, %c0_i32 : i32, i32
  }
  func.func @transform_5(%arg0: i32, %arg1: i32) -> (i32, i32) {
    %c0_i32 = arith.constant 0 : i32
    %c0_i32_0 = arith.constant 0 : i32
    return %arg0, %c0_i32 : i32, i32
  }
  func.func @transform_6(%arg0: i32, %arg1: i32) -> (i32, i32) {
    %c0_i32 = arith.constant 0 : i32
    %c0_i32_0 = arith.constant 0 : i32
    return %arg0, %c0_i32 : i32, i32
  }
  func.func @transform_7(%arg0: i32, %arg1: i32) -> (i32, i32, i32) {
    %c0_i32 = arith.constant 0 : i32
    %c0_i32_0 = arith.constant 0 : i32
    return %arg1, %arg0, %c0_i32 : i32, i32, i32
  }
  func.func @transform_8(%arg0: i32, %arg1: i32) -> (i32, i32) {
    %c0_i32 = arith.constant 0 : i32
    %c0_i32_0 = arith.constant 0 : i32
    return %arg0, %c0_i32 : i32, i32
  }
  func.func @transform_9(%arg0: i32, %arg1: i32) -> (i32, i32) {
    %c0_i32 = arith.constant 0 : i32
    %c0_i32_0 = arith.constant 0 : i32
    return %arg0, %c0_i32 : i32, i32
  }
}

</mosaic_0001>

<llo_original>
// kernel: tpu_custom_call.1
$region0: #{tpu_custom_call.1}
  #allocation0 [shape = 'u32[]', space=smem, size = 0x4, offset = 0x4, fixed_abs, tag = 'smem constant byte address 0x4 - core index']
  #allocation1 [shape = 'u32[72,128]{1,0:T(1,128)}', space=vmem, size = 0x9000, scoped, tag = 'internal scratch']
  #allocation2 [shape = 'f32[2,128]{1,0:T(2,128)}', space=vmem, size = 0x400, scoped, tag = 'scratch operand']
  #allocation3 [shape = 'f32[2,128]{1,0:T(2,128)}', space=vmem, size = 0x400, scoped, tag = 'scratch operand']
  %s0 = inlined_call_operand.hbm [shape: bf16[8,2,16], index: 0, kind: input, shape index: {}]
  %s1 = inlined_call_operand.hbm [shape: bf16[16,512], index: 1, kind: input, shape index: {}]
  %s2 = inlined_call_operand.hbm [shape: bf16[128,512], index: 2, kind: input, shape index: {}]
  %s3 = inlined_call_operand.hbm [shape: f32[1,512], index: 3, kind: input, shape index: {}]
  %s4 = inlined_call_operand.vmem [shape: f32[2,128], index: 4, kind: input, shape index: {}]
  %s5 = inlined_call_operand.vmem [shape: f32[2,128], index: 5, kind: input, shape index: {}]
  %s6 = inlined_call_operand.hbm [shape: s32[2,128], index: 6, kind: input, shape index: {}]
  %s7 = inlined_call_operand.hbm [shape: bf16[8,2,128], index: 7, kind: output, shape index: {0}]
  %s8 = inlined_call_operand.hbm [shape: f32[2,128], index: 8, kind: output, shape index: {1}]
  %s9 = inlined_call_operand.hbm [shape: f32[2,128], index: 9, kind: output, shape index: {2}]
  %10 = xla_tuple %s7, %s8, %s9
  %s11 = sld [smem:[#allocation0]]
  $region82: #{tpu_custom_call.1} parent=0
    _
  %s13 = ssub.s32 1, %s11
  %s14 = scalar_select 0, %s13, %s11
  $region1: #{tpu_custom_call.1} parent=0
    #allocation4 [shape = 'u8[4096]{0}', space=vmem, size = 0x1000, scoped, tag = 'input window, operand 0, single buffered']
    #allocation5 [shape = 's32[1]{0}', space=sflag, size = 0x4, scoped, tag = 'scoped memory for tpu_custom_call.1']
    #allocation6 [shape = 's32[1]{0}', space=sflag, size = 0x4, scoped, tag = 'scoped memory for tpu_custom_call.1']
    #allocation7 [shape = 'u8[16384]{0}', space=vmem, size = 0x4000, scoped, tag = 'input window, operand 1, single buffered']
    #allocation8 [shape = 's32[1]{0}', space=sflag, size = 0x4, scoped, tag = 'scoped memory for tpu_custom_call.1']
    #allocation9 [shape = 'u8[131072]{0}', space=vmem, size = 0x20000, scoped, tag = 'input window, operand 2, single buffered']
    #allocation10 [shape = 'u8[2048]{0}', space=vmem, size = 0x800, scoped, tag = 'input window, operand 3, single buffered']
    #allocation11 [shape = 's32[1]{0}', space=sflag, size = 0x4, scoped, tag = 'scoped memory for tpu_custom_call.1']
    #allocation12 [shape = 'u8[1024]{0}', space=vmem, size = 0x400, scoped, tag = 'input window, operand 6, single buffered']
    #allocation13 [shape = 'u8[4096]{0}', space=vmem, size = 0x1000, scoped, tag = 'output window, operand 0, single buffered']
    #allocation14 [shape = 'u8[1024]{0}', space=vmem, size = 0x400, scoped, tag = 'output window, operand 1, single buffered']
    #allocation15 [shape = 's32[1]{0}', space=sflag, size = 0x4, scoped, tag = 'scoped memory for tpu_custom_call.1']
    #allocation16 [shape = 'u8[1024]{0}', space=vmem, size = 0x400, scoped, tag = 'output window, operand 2, single buffered']
    %15 = vsyncpa [#allocation5], 0
    %16 = vsyncpa [#allocation8], 0
    %17 = vsyncpa [#allocation11], 0
    %18 = vsyncpa [#allocation6], 0
    %19 = vsyncpa [#allocation15], 0
    // Predicated region
    $region2: #{tpu_custom_call.1} parent=1 // pred_check
      _
    $region3: #{tpu_custom_call.1} parent=1 // pred_check_branch
      %21 = sbr.rel (0) target = $region5
    $region4: #{tpu_custom_call.1} parent=1 // pred_region
      %23 = vsyncadd [#allocation5], 0
      %s24 = sshll.u32 %s0, 4
      %s25 = int_to_ptr.hbm [resolvable:$true] %s24
      %s26 = sshll.u32 [#allocation4], 4
      %s27 = int_to_ptr.vmem [resolvable:$true] %s26
      %32 = dma.hbm_to_vmem [thread:$0]  %s25, 128, %s27, [#allocation5], 16, 16, 1
    $region5: #{tpu_custom_call.1} parent=1 // pred_fallthru
      _
    // Predicated region
    $region6: #{tpu_custom_call.1} parent=1 // pred_check
      _
    $region7: #{tpu_custom_call.1} parent=1 // pred_check_branch
      %34 = sbr.rel (0) target = $region9
    $region8: #{tpu_custom_call.1} parent=1 // pred_region
      %36 = vsyncadd [#allocation8], 0
      %s37 = sshll.u32 %s1, 4
      %s38 = int_to_ptr.hbm [resolvable:$true] %s37
      %s39 = sshll.u32 [#allocation7], 4
      %s40 = int_to_ptr.vmem [resolvable:$true] %s39
      %45 = dma.hbm_to_vmem [thread:$0]  %s38, 512, %s40, [#allocation8], 256, 256, 16
    $region9: #{tpu_custom_call.1} parent=1 // pred_fallthru
      _
    // Predicated region
    $region10: #{tpu_custom_call.1} parent=1 // pred_check
      _
    $region11: #{tpu_custom_call.1} parent=1 // pred_check_branch
      %47 = sbr.rel (0) target = $region13
    $region12: #{tpu_custom_call.1} parent=1 // pred_region
      %49 = vsyncadd [#allocation8], 0
      %s50 = sshll.u32 %s2, 4
      %s51 = int_to_ptr.hbm [resolvable:$true] %s50
      %s52 = sshll.u32 [#allocation9], 4
      %s53 = int_to_ptr.vmem [resolvable:$true] %s52
      %58 = dma.hbm_to_vmem [thread:$0]  %s51, 4096, %s53, [#allocation8], 256, 256, 16
    $region13: #{tpu_custom_call.1} parent=1 // pred_fallthru
      _
    // Predicated region
    $region14: #{tpu_custom_call.1} parent=1 // pred_check
      _
    $region15: #{tpu_custom_call.1} parent=1 // pred_check_branch
      %60 = sbr.rel (0) target = $region17
    $region16: #{tpu_custom_call.1} parent=1 // pred_region
      %62 = vsyncadd [#allocation11], 0
      %s64 = sshll.u32 %s3, 4
      %s65 = int_to_ptr.hbm [resolvable:$true] %s64
      %s66 = sshll.u32 [#allocation10], 4
      %s67 = int_to_ptr.vmem [resolvable:$true] %s66
      %69 = dma.hbm_to_vmem [thread:$0]  %s65, 64, %s67, [#allocation11]
    $region17: #{tpu_custom_call.1} parent=1 // pred_fallthru
      _
    // Predicated region
    $region18: #{tpu_custom_call.1} parent=1 // pred_check
      _
    $region19: #{tpu_custom_call.1} parent=1 // pred_check_branch
      %71 = sbr.rel (0) target = $region21
    $region20: #{tpu_custom_call.1} parent=1 // pred_region
      _
    $region21: #{tpu_custom_call.1} parent=1 // pred_fallthru
      _
    // Predicated region
    $region22: #{tpu_custom_call.1} parent=1 // pred_check
      _
    $region23: #{tpu_custom_call.1} parent=1 // pred_check_branch
      %73 = sbr.rel (0) target = $region25
    $region24: #{tpu_custom_call.1} parent=1 // pred_region
      _
    $region25: #{tpu_custom_call.1} parent=1 // pred_fallthru
      _
    // Predicated region
    $region26: #{tpu_custom_call.1} parent=1 // pred_check
      _
    $region27: #{tpu_custom_call.1} parent=1 // pred_check_branch
      %75 = sbr.rel (0) target = $region29
    $region28: #{tpu_custom_call.1} parent=1 // pred_region
      %77 = vsyncadd [#allocation11], 0
      %s79 = sshll.u32 %s6, 4
      %s80 = int_to_ptr.hbm [resolvable:$true] %s79
      %s81 = sshll.u32 [#allocation12], 4
      %s82 = int_to_ptr.vmem [resolvable:$true] %s81
      %84 = dma.hbm_to_vmem [thread:$0]  %s80, 32, %s82, [#allocation11]
    $region29: #{tpu_custom_call.1} parent=1 // pred_fallthru
      _
    // Predicated region
    $region30: #{tpu_custom_call.1} parent=1 // pred_check
      _
    $region31: #{tpu_custom_call.1} parent=1 // pred_check_branch
      %86 = sbr.rel (0) target = $region33
    $region32: #{tpu_custom_call.1} parent=1 // pred_region
      %88 = dma.done [#allocation5], 128
    $region33: #{tpu_custom_call.1} parent=1 // pred_fallthru
      _
    // Predicated region
    $region34: #{tpu_custom_call.1} parent=1 // pred_check
      _
    $region35: #{tpu_custom_call.1} parent=1 // pred_check_branch
      %90 = sbr.rel (0) target = $region37
    $region36: #{tpu_custom_call.1} parent=1 // pred_region
      %92 = dma.done [#allocation8], 512
    $region37: #{tpu_custom_call.1} parent=1 // pred_fallthru
      _
    // Predicated region
    $region38: #{tpu_custom_call.1} parent=1 // pred_check
      _
    $region39: #{tpu_custom_call.1} parent=1 // pred_check_branch
      %94 = sbr.rel (0) target = $region41
    $region40: #{tpu_custom_call.1} parent=1 // pred_region
      %96 = dma.done [#allocation8], 4096
    $region41: #{tpu_custom_call.1} parent=1 // pred_fallthru
      _
    // Predicated region
    $region42: #{tpu_custom_call.1} parent=1 // pred_check
      _
    $region43: #{tpu_custom_call.1} parent=1 // pred_check_branch
      %98 = sbr.rel (0) target = $region45
    $region44: #{tpu_custom_call.1} parent=1 // pred_region
      %100 = dma.done [#allocation11], 64
    $region45: #{tpu_custom_call.1} parent=1 // pred_fallthru
      _
    // Predicated region
    $region46: #{tpu_custom_call.1} parent=1 // pred_check
      _
    $region47: #{tpu_custom_call.1} parent=1 // pred_check_branch
      %102 = sbr.rel (0) target = $region49
    $region48: #{tpu_custom_call.1} parent=1 // pred_region
      %104 = dma.done [#allocation11], 32
    $region49: #{tpu_custom_call.1} parent=1 // pred_fallthru
      _
    %p106 = scmp.eq.s32.totalorder 0, 0
    // Predicated region
    $region50: #{tpu_custom_call.1} parent=1 // pred_check
      %p107 = pneg %p106
    $region51: #{tpu_custom_call.1} parent=1 // pred_check_branch
      %109 = sbr.rel (%p107) target = $region53
    $region52: #{tpu_custom_call.1} parent=1 // pred_region
      %v110 = vld [vmem:[%s4] sm:$0x3]
      %111 = vst [vmem:[#allocation2] sm:$0x3] %v110
      %v112 = vld [vmem:[%s5] sm:$0x3]
      %113 = vst [vmem:[#allocation3] sm:$0x3] %v112
    $region53: #{tpu_custom_call.1} parent=1 // pred_fallthru
      _
    %v114 = vld [vmem:[#allocation12] sm:$0x3]
    %v115 = vld [vmem:[#allocation10] sm:$0xf]
    %v117 = vperm.slane %v115, 0
    %v118 = vperm.slane %v115, 1
    %v119 = vperm.slane %v115, 2
    %v120 = vperm.slane %v115, 3
    %s125 = smul.u32 0, 8
    %v126 = vld [vmem:[#allocation2] sm:$0x3]
    %v127 = vld [vmem:[#allocation3] sm:$0x3]
    %v128 = vld [vmem:[#allocation4] sm:$0x1]
    %v129 = vld [vmem:[#allocation7] sm:$0xff]
    %v130 = vld [vmem:[#allocation7 + $0x8] sm:$0xff]
    %v131 = vld [vmem:[#allocation7 + $0x10] sm:$0xff]
    %v132 = vld [vmem:[#allocation7 + $0x18] sm:$0xff]
    %v133 = vpack.c.bf16 %v126, %v126
    %v134 = vld [vmem:[#allocation9] sm:$0xff]
    %v135 = vld [vmem:[#allocation9 + $0x8] sm:$0xff]
    %v136 = vld [vmem:[#allocation9 + $0x10] sm:$0xff]
    %v137 = vld [vmem:[#allocation9 + $0x18] sm:$0xff]
    %v138 = vld [vmem:[#allocation9 + $0x20] sm:$0xff]
    %v139 = vld [vmem:[#allocation9 + $0x28] sm:$0xff]
    %v140 = vld [vmem:[#allocation9 + $0x30] sm:$0xff]
    %v141 = vld [vmem:[#allocation9 + $0x38] sm:$0xff]
    %v142 = vld [vmem:[#allocation9 + $0x40] sm:$0xff]
    %v143 = vld [vmem:[#allocation9 + $0x48] sm:$0xff]
    %v144 = vld [vmem:[#allocation9 + $0x50] sm:$0xff]
    %v145 = vld [vmem:[#allocation9 + $0x58] sm:$0xff]
    %v146 = vld [vmem:[#allocation9 + $0x60] sm:$0xff]
    %v147 = vld [vmem:[#allocation9 + $0x68] sm:$0xff]
    %v148 = vld [vmem:[#allocation9 + $0x70] sm:$0xff]
    %v149 = vld [vmem:[#allocation9 + $0x78] sm:$0xff]
    %v150 = vld [vmem:[#allocation9 + $0x80] sm:$0xff]
    %v151 = vld [vmem:[#allocation9 + $0x88] sm:$0xff]
    %v152 = vld [vmem:[#allocation9 + $0x90] sm:$0xff]
    %v153 = vld [vmem:[#allocation9 + $0x98] sm:$0xff]
    %v154 = vld [vmem:[#allocation9 + $0xa0] sm:$0xff]
    %v155 = vld [vmem:[#allocation9 + $0xa8] sm:$0xff]
    %v156 = vld [vmem:[#allocation9 + $0xb0] sm:$0xff]
    %v157 = vld [vmem:[#allocation9 + $0xb8] sm:$0xff]
    %v158 = vld [vmem:[#allocation9 + $0xc0] sm:$0xff]
    %v159 = vld [vmem:[#allocation9 + $0xc8] sm:$0xff]
    %v160 = vld [vmem:[#allocation9 + $0xd0] sm:$0xff]
    %v161 = vld [vmem:[#allocation9 + $0xd8] sm:$0xff]
    %v162 = vld [vmem:[#allocation9 + $0xe0] sm:$0xff]
    %v163 = vld [vmem:[#allocation9 + $0xe8] sm:$0xff]
    %v164 = vld [vmem:[#allocation9 + $0xf0] sm:$0xff]
    %v165 = vld [vmem:[#allocation9 + $0xf8] sm:$0xff]
    %v198 = vunpack.c.l.b16 %v134
    %v199 = vunpack.c.h.b16 %v134
    %v200 = vunpack.c.l.b16 %v135
    %v201 = vunpack.c.h.b16 %v135
    %v202 = vunpack.c.l.b16 %v136
    %v203 = vunpack.c.h.b16 %v136
    %v204 = vunpack.c.l.b16 %v137
    %v205 = vunpack.c.h.b16 %v137
    %v206 = vunpack.c.l.b16 %v138
    %v207 = vunpack.c.h.b16 %v138
    %v208 = vunpack.c.l.b16 %v139
    %v209 = vunpack.c.h.b16 %v139
    %v210 = vunpack.c.l.b16 %v140
    %v211 = vunpack.c.h.b16 %v140
    %v212 = vunpack.c.l.b16 %v141
    %v213 = vunpack.c.h.b16 %v141
    %v214 = vunpack.c.l.b16 %v142
    %v215 = vunpack.c.h.b16 %v142
    %v216 = vunpack.c.l.b16 %v143
    %v217 = vunpack.c.h.b16 %v143
    %v218 = vunpack.c.l.b16 %v144
    %v219 = vunpack.c.h.b16 %v144
    %v220 = vunpack.c.l.b16 %v145
    %v221 = vunpack.c.h.b16 %v145
    %v222 = vunpack.c.l.b16 %v146
    %v223 = vunpack.c.h.b16 %v146
    %v224 = vunpack.c.l.b16 %v147
    %v225 = vunpack.c.h.b16 %v147
    %v226 = vunpack.c.l.b16 %v148
    %v227 = vunpack.c.h.b16 %v148
    %v228 = vunpack.c.l.b16 %v149
    %v229 = vunpack.c.h.b16 %v149
    %v230 = vunpack.c.l.b16 %v150
    %v231 = vunpack.c.h.b16 %v150
    %v232 = vunpack.c.l.b16 %v151
    %v233 = vunpack.c.h.b16 %v151
    %v234 = vunpack.c.l.b16 %v152
    %v235 = vunpack.c.h.b16 %v152
    %v236 = vunpack.c.l.b16 %v153
    %v237 = vunpack.c.h.b16 %v153
    %v238 = vunpack.c.l.b16 %v154
    %v239 = vunpack.c.h.b16 %v154
    %v240 = vunpack.c.l.b16 %v155
    %v241 = vunpack.c.h.b16 %v155
    %v242 = vunpack.c.l.b16 %v156
    %v243 = vunpack.c.h.b16 %v156
    %v244 = vunpack.c.l.b16 %v157
    %v245 = vunpack.c.h.b16 %v157
    %v246 = vunpack.c.l.b16 %v158
    %v247 = vunpack.c.h.b16 %v158
    %v248 = vunpack.c.l.b16 %v159
    %v249 = vunpack.c.h.b16 %v159
    %v250 = vunpack.c.l.b16 %v160
    %v251 = vunpack.c.h.b16 %v160
    %v252 = vunpack.c.l.b16 %v161
    %v253 = vunpack.c.h.b16 %v161
    %v254 = vunpack.c.l.b16 %v162
    %v255 = vunpack.c.h.b16 %v162
    %v256 = vunpack.c.l.b16 %v163
    %v257 = vunpack.c.h.b16 %v163
    %v258 = vunpack.c.l.b16 %v164
    %v259 = vunpack.c.h.b16 %v164
    %v260 = vunpack.c.l.b16 %v165
    %v261 = vunpack.c.h.b16 %v165
    %v262 = vpack.c.b16 %v202, %v198
    %v263 = vpack.c.b16 %v203, %v199
    %v264 = vpack.c.b16 %v204, %v200
    %v265 = vpack.c.b16 %v205, %v201
    %v266 = vpack.c.b16 %v210, %v206
    %v267 = vpack.c.b16 %v211, %v207
    %v268 = vpack.c.b16 %v212, %v208
    %v269 = vpack.c.b16 %v213, %v209
    %v270 = vpack.c.b16 %v218, %v214
    %v271 = vpack.c.b16 %v219, %v215
    %v272 = vpack.c.b16 %v220, %v216
    %v273 = vpack.c.b16 %v221, %v217
    %v274 = vpack.c.b16 %v226, %v222
    %v275 = vpack.c.b16 %v227, %v223
    %v276 = vpack.c.b16 %v228, %v224
    %v277 = vpack.c.b16 %v229, %v225
    %v278 = vpack.c.b16 %v234, %v230
    %v279 = vpack.c.b16 %v235, %v231
    %v280 = vpack.c.b16 %v236, %v232
    %v281 = vpack.c.b16 %v237, %v233
    %v282 = vpack.c.b16 %v242, %v238
    %v283 = vpack.c.b16 %v243, %v239
    %v284 = vpack.c.b16 %v244, %v240
    %v285 = vpack.c.b16 %v245, %v241
    %v286 = vpack.c.b16 %v250, %v246
    %v287 = vpack.c.b16 %v251, %v247
    %v288 = vpack.c.b16 %v252, %v248
    %v289 = vpack.c.b16 %v253, %v249
    %v290 = vpack.c.b16 %v258, %v254
    %v291 = vpack.c.b16 %v259, %v255
    %v292 = vpack.c.b16 %v260, %v256
    %v293 = vpack.c.b16 %v261, %v257
    %326 = vmatpush.bf16.msra.mxu0 %v290
    %327 = vmatpush.bf16.msra.mxu0 %v286
    %328 = vmatpush.bf16.msra.mxu0 %v282
    %329 = vmatpush.bf16.msra.mxu0 %v278
    %330 = vmatpush.bf16.msra.mxu0 %v274
    %331 = vmatpush.bf16.msra.mxu0 %v270
    %332 = vmatpush.bf16.msra.mxu0 %v266
    %333 = vmatpush.bf16.msra.mxu0 %v262
    %334 = vmatmul.bf16.gmra.mxu0 %v133
    %v335 = vpop.f32.mrf.mxu0
    %v336 = vadd.f32 0.0, %v335
    %v337 = vpop.f32.mrf.mxu0
    %338 = vdwg.mxu0
    %339 = vmatpush.bf16.msra.mxu0 %v291
    %340 = vmatpush.bf16.msra.mxu0 %v287
    %341 = vmatpush.bf16.msra.mxu0 %v283
    %342 = vmatpush.bf16.msra.mxu0 %v279
    %343 = vmatpush.bf16.msra.mxu0 %v275
    %344 = vmatpush.bf16.msra.mxu0 %v271
    %345 = vmatpush.bf16.msra.mxu0 %v267
    %346 = vmatpush.bf16.msra.mxu0 %v263
    %347 = vmatmul.bf16.gmra.mxu0 %v133
    %v348 = vpop.f32.mrf.mxu0
    %v349 = vadd.f32 0.0, %v348
    %v350 = vpop.f32.mrf.mxu0
    %351 = vdwg.mxu0
    %352 = vmatpush.bf16.msra.mxu0 %v292
    %353 = vmatpush.bf16.msra.mxu0 %v288
    %354 = vmatpush.bf16.msra.mxu0 %v284
    %355 = vmatpush.bf16.msra.mxu0 %v280
    %356 = vmatpush.bf16.msra.mxu0 %v276
    %357 = vmatpush.bf16.msra.mxu0 %v272
    %358 = vmatpush.bf16.msra.mxu0 %v268
    %359 = vmatpush.bf16.msra.mxu0 %v264
    %360 = vmatmul.bf16.gmra.mxu0 %v133
    %v361 = vpop.f32.mrf.mxu0
    %v362 = vadd.f32 0.0, %v361
    %v363 = vpop.f32.mrf.mxu0
    %364 = vdwg.mxu0
    %365 = vmatpush.bf16.msra.mxu0 %v293
    %366 = vmatpush.bf16.msra.mxu0 %v289
    %367 = vmatpush.bf16.msra.mxu0 %v285
    %368 = vmatpush.bf16.msra.mxu0 %v281
    %369 = vmatpush.bf16.msra.mxu0 %v277
    %370 = vmatpush.bf16.msra.mxu0 %v273
    %371 = vmatpush.bf16.msra.mxu0 %v269
    %372 = vmatpush.bf16.msra.mxu0 %v265
    %373 = vmatmul.bf16.gmra.mxu0 %v133
    %v374 = vpop.f32.mrf.mxu0
    %v375 = vadd.f32 0.0, %v374
    %v376 = vpop.f32.mrf.mxu0
    %377 = vdwg.mxu0
    %v382 = vunpack.c.l.b16 %v129
    %v383 = vunpack.c.h.b16 %v129
    %v384 = vunpack.c.l.b16 %v130
    %v385 = vunpack.c.h.b16 %v130
    %v386 = vunpack.c.l.b16 %v131
    %v387 = vunpack.c.h.b16 %v131
    %v388 = vunpack.c.l.b16 %v132
    %v389 = vunpack.c.h.b16 %v132
    %v390 = vpack.c.b16 %v386, %v382
    %v391 = vpack.c.b16 %v387, %v383
    %v392 = vpack.c.b16 %v388, %v384
    %v393 = vpack.c.b16 %v389, %v385
    %vm398 = vcmask 130048
    %v400 = vsel %vm398, %v128, 0
    %402 = vmatpush.bf16.msra.mxu0 0
    %403 = vmatpush.bf16.msra.mxu0 0
    %404 = vmatpush.bf16.msra.mxu0 0
    %405 = vmatpush.bf16.msra.mxu0 0
    %406 = vmatpush.bf16.msra.mxu0 0
    %407 = vmatpush.bf16.msra.mxu0 0
    %408 = vmatpush.bf16.msra.mxu0 0
    %409 = vmatpush.bf16.msra.mxu0 %v390
    %410 = vmatmul.bf16.gmra.mxu0 %v400
    %v411 = vpop.f32.mrf.mxu0
    %v412 = vadd.f32 %v336, %v411
    %v413 = vpop.f32.mrf.mxu0
    %414 = vdwg.mxu0
    %415 = vmatpush.bf16.msra.mxu0 0
    %416 = vmatpush.bf16.msra.mxu0 0
    %417 = vmatpush.bf16.msra.mxu0 0
    %418 = vmatpush.bf16.msra.mxu0 0
    %419 = vmatpush.bf16.msra.mxu0 0
    %420 = vmatpush.bf16.msra.mxu0 0
    %421 = vmatpush.bf16.msra.mxu0 0
    %422 = vmatpush.bf16.msra.mxu0 %v391
    %423 = vmatmul.bf16.gmra.mxu0 %v400
    %v424 = vpop.f32.mrf.mxu0
    %v425 = vadd.f32 %v349, %v424
    %v426 = vpop.f32.mrf.mxu0
    %427 = vdwg.mxu0
    %428 = vmatpush.bf16.msra.mxu0 0
    %429 = vmatpush.bf16.msra.mxu0 0
    %430 = vmatpush.bf16.msra.mxu0 0
    %431 = vmatpush.bf16.msra.mxu0 0
    %432 = vmatpush.bf16.msra.mxu0 0
    %433 = vmatpush.bf16.msra.mxu0 0
    %434 = vmatpush.bf16.msra.mxu0 0
    %435 = vmatpush.bf16.msra.mxu0 %v392
    %436 = vmatmul.bf16.gmra.mxu0 %v400
    %v437 = vpop.f32.mrf.mxu0
    %v438 = vadd.f32 %v362, %v437
    %v439 = vpop.f32.mrf.mxu0
    %440 = vdwg.mxu0
    %441 = vmatpush.bf16.msra.mxu0 0
    %442 = vmatpush.bf16.msra.mxu0 0
    %443 = vmatpush.bf16.msra.mxu0 0
    %444 = vmatpush.bf16.msra.mxu0 0
    %445 = vmatpush.bf16.msra.mxu0 0
    %446 = vmatpush.bf16.msra.mxu0 0
    %447 = vmatpush.bf16.msra.mxu0 0
    %448 = vmatpush.bf16.msra.mxu0 %v393
    %449 = vmatmul.bf16.gmra.mxu0 %v400
    %v450 = vpop.f32.mrf.mxu0
    %v451 = vadd.f32 %v375, %v450
    %v452 = vpop.f32.mrf.mxu0
    %453 = vdwg.mxu0
    %v454 = vadd.f32 %v412, %v117
    %v455 = vadd.f32 %v425, %v118
    %v456 = vadd.f32 %v438, %v119
    %v457 = vadd.f32 %v451, %v120
    %v458 = vxor.u32 %v454, 2147483648
    %v459 = vmul.f32 %v458, 1.442695
    %v460 = vpow.pop %v459
    %v461 = vadd.f32 %v460, 1.0
    %v462 = vrcp.pop %v461
    %v463 = vmul.f32 %v461, %v462
    %v464 = vsub.f32 1.0, %v463
    %v465 = vmul.f32 %v462, %v464
    %v466 = vadd.f32 %v462, %v465
    %vm467 = vweird.f32 %v461
    %vm468 = vweird.f32 %v462
    %vm469 = vmor %vm467, %vm468
    %v470 = vsel %vm469, %v462, %v466
    %v471 = vand.u32 2147483647, %v461
    %vm472 = vcmp.eq.f32.partialorder %v471, 8.507059e+37
    %v473 = vand.u32 %v461, 2147483648
    %v474 = vor.u32 1.1754944e-38, %v473
    %v475 = vsel %vm472, %v474, %v470
    %v476 = vmul.f32 1.0, %v475
    %v477 = vxor.u32 %v455, 2147483648
    %v478 = vmul.f32 %v477, 1.442695
    %v479 = vpow.pop %v478
    %v480 = vadd.f32 %v479, 1.0
    %v481 = vrcp.pop %v480
    %v482 = vmul.f32 %v480, %v481
    %v483 = vsub.f32 1.0, %v482
    %v484 = vmul.f32 %v481, %v483
    %v485 = vadd.f32 %v481, %v484
    %vm486 = vweird.f32 %v480
    %vm487 = vweird.f32 %v481
    %vm488 = vmor %vm486, %vm487
    %v489 = vsel %vm488, %v481, %v485
    %v490 = vand.u32 2147483647, %v480
    %vm491 = vcmp.eq.f32.partialorder %v490, 8.507059e+37
    %v492 = vand.u32 %v480, 2147483648
    %v493 = vor.u32 1.1754944e-38, %v492
    %v494 = vsel %vm491, %v493, %v489
    %v495 = vmul.f32 1.0, %v494
    %v496 = vtanh.pop %v456
    %v497 = vxor.u32 %v457, 2147483648
    %v498 = vmul.f32 %v497, 1.442695
    %v499 = vpow.pop %v498
    %v500 = vadd.f32 %v499, 1.0
    %v501 = vrcp.pop %v500
    %v502 = vmul.f32 %v500, %v501
    %v503 = vsub.f32 1.0, %v502
    %v504 = vmul.f32 %v501, %v503
    %v505 = vadd.f32 %v501, %v504
    %vm506 = vweird.f32 %v500
    %vm507 = vweird.f32 %v501
    %vm508 = vmor %vm506, %vm507
    %v509 = vsel %vm508, %v501, %v505
    %v510 = vand.u32 2147483647, %v500
    %vm511 = vcmp.eq.f32.partialorder %v510, 8.507059e+37
    %v512 = vand.u32 %v500, 2147483648
    %v513 = vor.u32 1.1754944e-38, %v512
    %v514 = vsel %vm511, %v513, %v509
    %v515 = vmul.f32 1.0, %v514
    %v516 = vmul.f32 %v495, %v127
    %v517 = vmul.f32 %v476, %v496
    %v518 = vadd.f32 %v516, %v517
    %v519 = vtanh.pop %v518
    %v520 = vmul.f32 %v515, %v519
    %v521 = vstv %s125
    %vm522 = vcmp.lt.s32.totalorder %v521, %v114
    %v523 = vsel %vm522, %v520, %v126
    %v524 = vsel %vm522, %v518, %v127
    %v525 = vsel %vm522, %v520, 0.0
    %v526 = vpack.c.bf16 %v525, %v525
    %527 = vst [vmem:[#allocation13] sm:$0x1] %v526
    %s528 = scalar_lea.vmem [#allocation4], 1
    %v529 = vld [vmem:[%s528] sm:$0x1]
    %v530 = vld [vmem:[#allocation7] sm:$0xff]
    %v531 = vld [vmem:[#allocation7 + $0x8] sm:$0xff]
    %v532 = vld [vmem:[#allocation7 + $0x10] sm:$0xff]
    %v533 = vld [vmem:[#allocation7 + $0x18] sm:$0xff]
    %v534 = vpack.c.bf16 %v523, %v523
    %v535 = vld [vmem:[#allocation9] sm:$0xff]
    %v536 = vld [vmem:[#allocation9 + $0x8] sm:$0xff]
    %v537 = vld [vmem:[#allocation9 + $0x10] sm:$0xff]
    %v538 = vld [vmem:[#allocation9 + $0x18] sm:$0xff]
    %v539 = vld [vmem:[#allocation9 + $0x20] sm:$0xff]
    %v540 = vld [vmem:[#allocation9 + $0x28] sm:$0xff]
    %v541 = vld [vmem:[#allocation9 + $0x30] sm:$0xff]
    %v542 = vld [vmem:[#allocation9 + $0x38] sm:$0xff]
    %v543 = vld [vmem:[#allocation9 + $0x40] sm:$0xff]
    %v544 = vld [vmem:[#allocation9 + $0x48] sm:$0xff]
    %v545 = vld [vmem:[#allocation9 + $0x50] sm:$0xff]
    %v546 = vld [vmem:[#allocation9 + $0x58] sm:$0xff]
    %v547 = vld [vmem:[#allocation9 + $0x60] sm:$0xff]
    %v548 = vld [vmem:[#allocation9 + $0x68] sm:$0xff]
    %v549 = vld [vmem:[#allocation9 + $0x70] sm:$0xff]
    %v550 = vld [vmem:[#allocation9 + $0x78] sm:$0xff]
    %v551 = vld [vmem:[#allocation9 + $0x80] sm:$0xff]
    %v552 = vld [vmem:[#allocation9 + $0x88] sm:$0xff]
    %v553 = vld [vmem:[#allocation9 + $0x90] sm:$0xff]
    %v554 = vld [vmem:[#allocation9 + $0x98] sm:$0xff]
    %v555 = vld [vmem:[#allocation9 + $0xa0] sm:$0xff]
    %v556 = vld [vmem:[#allocation9 + $0xa8] sm:$0xff]
    %v557 = vld [vmem:[#allocation9 + $0xb0] sm:$0xff]
    %v558 = vld [vmem:[#allocation9 + $0xb8] sm:$0xff]
    %v559 = vld [vmem:[#allocation9 + $0xc0] sm:$0xff]
    %v560 = vld [vmem:[#allocation9 + $0xc8] sm:$0xff]
    %v561 = vld [vmem:[#allocation9 + $0xd0] sm:$0xff]
    %v562 = vld [vmem:[#allocation9 + $0xd8] sm:$0xff]
    %v563 = vld [vmem:[#allocation9 + $0xe0] sm:$0xff]
    %v564 = vld [vmem:[#allocation9 + $0xe8] sm:$0xff]
    %v565 = vld [vmem:[#allocation9 + $0xf0] sm:$0xff]
    %v566 = vld [vmem:[#allocation9 + $0xf8] sm:$0xff]
    %v599 = vunpack.c.l.b16 %v535
    %v600 = vunpack.c.h.b16 %v535
    %v601 = vunpack.c.l.b16 %v536
    %v602 = vunpack.c.h.b16 %v536
    %v603 = vunpack.c.l.b16 %v537
    %v604 = vunpack.c.h.b16 %v537
    %v605 = vunpack.c.l.b16 %v538
    %v606 = vunpack.c.h.b16 %v538
    %v607 = vunpack.c.l.b16 %v539
    %v608 = vunpack.c.h.b16 %v539
    %v609 = vunpack.c.l.b16 %v540
    %v610 = vunpack.c.h.b16 %v540
    %v611 = vunpack.c.l.b16 %v541
    %v612 = vunpack.c.h.b16 %v541
    %v613 = vunpack.c.l.b16 %v542
    %v614 = vunpack.c.h.b16 %v542
    %v615 = vunpack.c.l.b16 %v543
    %v616 = vunpack.c.h.b16 %v543
    %v617 = vunpack.c.l.b16 %v544
    %v618 = vunpack.c.h.b16 %v544
    %v619 = vunpack.c.l.b16 %v545
    %v620 = vunpack.c.h.b16 %v545
    %v621 = vunpack.c.l.b16 %v546
    %v622 = vunpack.c.h.b16 %v546
    %v623 = vunpack.c.l.b16 %v547
    %v624 = vunpack.c.h.b16 %v547
    %v625 = vunpack.c.l.b16 %v548
    %v626 = vunpack.c.h.b16 %v548
    %v627 = vunpack.c.l.b16 %v549
    %v628 = vunpack.c.h.b16 %v549
    %v629 = vunpack.c.l.b16 %v550
    %v630 = vunpack.c.h.b16 %v550
    %v631 = vunpack.c.l.b16 %v551
    %v632 = vunpack.c.h.b16 %v551
    %v633 = vunpack.c.l.b16 %v552
    %v634 = vunpack.c.h.b16 %v552
    %v635 = vunpack.c.l.b16 %v553
    %v636 = vunpack.c.h.b16 %v553
    %v637 = vunpack.c.l.b16 %v554
    %v638 = vunpack.c.h.b16 %v554
    %v639 = vunpack.c.l.b16 %v555
    %v640 = vunpack.c.h.b16 %v555
    %v641 = vunpack.c.l.b16 %v556
    %v642 = vunpack.c.h.b16 %v556
    %v643 = vunpack.c.l.b16 %v557
    %v644 = vunpack.c.h.b16 %v557
    %v645 = vunpack.c.l.b16 %v558
    %v646 = vunpack.c.h.b16 %v558
    %v647 = vunpack.c.l.b16 %v559
    %v648 = vunpack.c.h.b16 %v559
    %v649 = vunpack.c.l.b16 %v560
    %v650 = vunpack.c.h.b16 %v560
    %v651 = vunpack.c.l.b16 %v561
    %v652 = vunpack.c.h.b16 %v561
    %v653 = vunpack.c.l.b16 %v562
    %v654 = vunpack.c.h.b16 %v562
    %v655 = vunpack.c.l.b16 %v563
    %v656 = vunpack.c.h.b16 %v563
    %v657 = vunpack.c.l.b16 %v564
    %v658 = vunpack.c.h.b16 %v564
    %v659 = vunpack.c.l.b16 %v565
    %v660 = vunpack.c.h.b16 %v565
    %v661 = vunpack.c.l.b16 %v566
    %v662 = vunpack.c.h.b16 %v566
    %v663 = vpack.c.b16 %v603, %v599
    %v664 = vpack.c.b16 %v604, %v600
    %v665 = vpack.c.b16 %v605, %v601
    %v666 = vpack.c.b16 %v606, %v602
    %v667 = vpack.c.b16 %v611, %v607
    %v668 = vpack.c.b16 %v612, %v608
    %v669 = vpack.c.b16 %v613, %v609
    %v670 = vpack.c.b16 %v614, %v610
    %v671 = vpack.c.b16 %v619, %v615
    %v672 = vpack.c.b16 %v620, %v616
    %v673 = vpack.c.b16 %v621, %v617
    %v674 = vpack.c.b16 %v622, %v618
    %v675 = vpack.c.b16 %v627, %v623
    %v676 = vpack.c.b16 %v628, %v624
    %v677 = vpack.c.b16 %v629, %v625
    %v678 = vpack.c.b16 %v630, %v626
    %v679 = vpack.c.b16 %v635, %v631
    %v680 = vpack.c.b16 %v636, %v632
    %v681 = vpack.c.b16 %v637, %v633
    %v682 = vpack.c.b16 %v638, %v634
    %v683 = vpack.c.b16 %v643, %v639
    %v684 = vpack.c.b16 %v644, %v640
    %v685 = vpack.c.b16 %v645, %v641
    %v686 = vpack.c.b16 %v646, %v642
    %v687 = vpack.c.b16 %v651, %v647
    %v688 = vpack.c.b16 %v652, %v648
    %v689 = vpack.c.b16 %v653, %v649
    %v690 = vpack.c.b16 %v654, %v650
    %v691 = vpack.c.b16 %v659, %v655
    %v692 = vpack.c.b16 %v660, %v656
    %v693 = vpack.c.b16 %v661, %v657
    %v694 = vpack.c.b16 %v662, %v658
    %727 = vmatpush.bf16.msra.mxu0 %v691
    %728 = vmatpush.bf16.msra.mxu0 %v687
    %729 = vmatpush.bf16.msra.mxu0 %v683
    %730 = vmatpush.bf16.msra.mxu0 %v679
    %731 = vmatpush.bf16.msra.mxu0 %v675
    %732 = vmatpush.bf16.msra.mxu0 %v671
    %733 = vmatpush.bf16.msra.mxu0 %v667
    %734 = vmatpush.bf16.msra.mxu0 %v663
    %735 = vmatmul.bf16.gmra.mxu0 %v534
    %v736 = vpop.f32.mrf.mxu0
    %v737 = vadd.f32 0.0, %v736
    %v738 = vpop.f32.mrf.mxu0
    %739 = vdwg.mxu0
    %740 = vmatpush.bf16.msra.mxu0 %v692
    %741 = vmatpush.bf16.msra.mxu0 %v688
    %742 = vmatpush.bf16.msra.mxu0 %v684
    %743 = vmatpush.bf16.msra.mxu0 %v680
    %744 = vmatpush.bf16.msra.mxu0 %v676
    %745 = vmatpush.bf16.msra.mxu0 %v672
    %746 = vmatpush.bf16.msra.mxu0 %v668
    %747 = vmatpush.bf16.msra.mxu0 %v664
    %748 = vmatmul.bf16.gmra.mxu0 %v534
    %v749 = vpop.f32.mrf.mxu0
    %v750 = vadd.f32 0.0, %v749
    %v751 = vpop.f32.mrf.mxu0
    %752 = vdwg.mxu0
    %753 = vmatpush.bf16.msra.mxu0 %v693
    %754 = vmatpush.bf16.msra.mxu0 %v689
    %755 = vmatpush.bf16.msra.mxu0 %v685
    %756 = vmatpush.bf16.msra.mxu0 %v681
    %757 = vmatpush.bf16.msra.mxu0 %v677
    %758 = vmatpush.bf16.msra.mxu0 %v673
    %759 = vmatpush.bf16.msra.mxu0 %v669
    %760 = vmatpush.bf16.msra.mxu0 %v665
    %761 = vmatmul.bf16.gmra.mxu0 %v534
    %v762 = vpop.f32.mrf.mxu0
    %v763 = vadd.f32 0.0, %v762
    %v764 = vpop.f32.mrf.mxu0
    %765 = vdwg.mxu0
    %766 = vmatpush.bf16.msra.mxu0 %v694
    %767 = vmatpush.bf16.msra.mxu0 %v690
    %768 = vmatpush.bf16.msra.mxu0 %v686
    %769 = vmatpush.bf16.msra.mxu0 %v682
    %770 = vmatpush.bf16.msra.mxu0 %v678
    %771 = vmatpush.bf16.msra.mxu0 %v674
    %772 = vmatpush.bf16.msra.mxu0 %v670
    %773 = vmatpush.bf16.msra.mxu0 %v666
    %774 = vmatmul.bf16.gmra.mxu0 %v534
    %v775 = vpop.f32.mrf.mxu0
    %v776 = vadd.f32 0.0, %v775
    %v777 = vpop.f32.mrf.mxu0
    %778 = vdwg.mxu0
    %v783 = vunpack.c.l.b16 %v530
    %v784 = vunpack.c.h.b16 %v530
    %v785 = vunpack.c.l.b16 %v531
    %v786 = vunpack.c.h.b16 %v531
    %v787 = vunpack.c.l.b16 %v532
    %v788 = vunpack.c.h.b16 %v532
    %v789 = vunpack.c.l.b16 %v533
    %v790 = vunpack.c.h.b16 %v533
    %v791 = vpack.c.b16 %v787, %v783
    %v792 = vpack.c.b16 %v788, %v784
    %v793 = vpack.c.b16 %v789, %v785
    %v794 = vpack.c.b16 %v790, %v786
    %v800 = vsel %vm398, %v529, 0
    %802 = vmatpush.bf16.msra.mxu0 0
    %803 = vmatpush.bf16.msra.mxu0 0
    %804 = vmatpush.bf16.msra.mxu0 0
    %805 = vmatpush.bf16.msra.mxu0 0
    %806 = vmatpush.bf16.msra.mxu0 0
    %807 = vmatpush.bf16.msra.mxu0 0
    %808 = vmatpush.bf16.msra.mxu0 0
    %809 = vmatpush.bf16.msra.mxu0 %v791
    %810 = vmatmul.bf16.gmra.mxu0 %v800
    %v811 = vpop.f32.mrf.mxu0
    %v812 = vadd.f32 %v737, %v811
    %v813 = vpop.f32.mrf.mxu0
    %814 = vdwg.mxu0
    %815 = vmatpush.bf16.msra.mxu0 0
    %816 = vmatpush.bf16.msra.mxu0 0
    %817 = vmatpush.bf16.msra.mxu0 0
    %818 = vmatpush.bf16.msra.mxu0 0
    %819 = vmatpush.bf16.msra.mxu0 0
    %820 = vmatpush.bf16.msra.mxu0 0
    %821 = vmatpush.bf16.msra.mxu0 0
    %822 = vmatpush.bf16.msra.mxu0 %v792
    %823 = vmatmul.bf16.gmra.mxu0 %v800
    %v824 = vpop.f32.mrf.mxu0
    %v825 = vadd.f32 %v750, %v824
    %v826 = vpop.f32.mrf.mxu0
    %827 = vdwg.mxu0
    %828 = vmatpush.bf16.msra.mxu0 0
    %829 = vmatpush.bf16.msra.mxu0 0
    %830 = vmatpush.bf16.msra.mxu0 0
    %831 = vmatpush.bf16.msra.mxu0 0
    %832 = vmatpush.bf16.msra.mxu0 0
    %833 = vmatpush.bf16.msra.mxu0 0
    %834 = vmatpush.bf16.msra.mxu0 0
    %835 = vmatpush.bf16.msra.mxu0 %v793
    %836 = vmatmul.bf16.gmra.mxu0 %v800
    %v837 = vpop.f32.mrf.mxu0
    %v838 = vadd.f32 %v763, %v837
    %v839 = vpop.f32.mrf.mxu0
    %840 = vdwg.mxu0
    %841 = vmatpush.bf16.msra.mxu0 0
    %842 = vmatpush.bf16.msra.mxu0 0
    %843 = vmatpush.bf16.msra.mxu0 0
    %844 = vmatpush.bf16.msra.mxu0 0
    %845 = vmatpush.bf16.msra.mxu0 0
    %846 = vmatpush.bf16.msra.mxu0 0
    %847 = vmatpush.bf16.msra.mxu0 0
    %848 = vmatpush.bf16.msra.mxu0 %v794
    %849 = vmatmul.bf16.gmra.mxu0 %v800
    %v850 = vpop.f32.mrf.mxu0
    %v851 = vadd.f32 %v776, %v850
    %v852 = vpop.f32.mrf.mxu0
    %853 = vdwg.mxu0
    %v854 = vadd.f32 %v812, %v117
    %v855 = vadd.f32 %v825, %v118
    %v856 = vadd.f32 %v838, %v119
    %v857 = vadd.f32 %v851, %v120
    %v858 = vxor.u32 %v854, 2147483648
    %v859 = vmul.f32 %v858, 1.442695
    %v860 = vpow.pop %v859
    %v861 = vadd.f32 %v860, 1.0
    %v862 = vrcp.pop %v861
    %v863 = vmul.f32 %v861, %v862
    %v864 = vsub.f32 1.0, %v863
    %v865 = vmul.f32 %v862, %v864
    %v866 = vadd.f32 %v862, %v865
    %vm867 = vweird.f32 %v861
    %vm868 = vweird.f32 %v862
    %vm869 = vmor %vm867, %vm868
    %v870 = vsel %vm869, %v862, %v866
    %v871 = vand.u32 2147483647, %v861
    %vm872 = vcmp.eq.f32.partialorder %v871, 8.507059e+37
    %v873 = vand.u32 %v861, 2147483648
    %v874 = vor.u32 1.1754944e-38, %v873
    %v875 = vsel %vm872, %v874, %v870
    %v876 = vmul.f32 1.0, %v875
    %v877 = vxor.u32 %v855, 2147483648
    %v878 = vmul.f32 %v877, 1.442695
    %v879 = vpow.pop %v878
    %v880 = vadd.f32 %v879, 1.0
    %v881 = vrcp.pop %v880
    %v882 = vmul.f32 %v880, %v881
    %v883 = vsub.f32 1.0, %v882
    %v884 = vmul.f32 %v881, %v883
    %v885 = vadd.f32 %v881, %v884
    %vm886 = vweird.f32 %v880
    %vm887 = vweird.f32 %v881
    %vm888 = vmor %vm886, %vm887
    %v889 = vsel %vm888, %v881, %v885
    %v890 = vand.u32 2147483647, %v880
    %vm891 = vcmp.eq.f32.partialorder %v890, 8.507059e+37
    %v892 = vand.u32 %v880, 2147483648
    %v893 = vor.u32 1.1754944e-38, %v892
    %v894 = vsel %vm891, %v893, %v889
    %v895 = vmul.f32 1.0, %v894
    %v896 = vtanh.pop %v856
    %v897 = vxor.u32 %v857, 2147483648
    %v898 = vmul.f32 %v897, 1.442695
    %v899 = vpow.pop %v898
    %v900 = vadd.f32 %v899, 1.0
    %v901 = vrcp.pop %v900
    %v902 = vmul.f32 %v900, %v901
    %v903 = vsub.f32 1.0, %v902
    %v904 = vmul.f32 %v901, %v903
    %v905 = vadd.f32 %v901, %v904
    %vm906 = vweird.f32 %v900
    %vm907 = vweird.f32 %v901
    %vm908 = vmor %vm906, %vm907
    %v909 = vsel %vm908, %v901, %v905
    %v910 = vand.u32 2147483647, %v900
    %vm911 = vcmp.eq.f32.partialorder %v910, 8.507059e+37
    %v912 = vand.u32 %v900, 2147483648
    %v913 = vor.u32 1.1754944e-38, %v912
    %v914 = vsel %vm911, %v913, %v909
    %v915 = vmul.f32 1.0, %v914
    %v916 = vmul.f32 %v895, %v524
    %v917 = vmul.f32 %v876, %v896
    %v918 = vadd.f32 %v916, %v917
    %v919 = vtanh.pop %v918
    %v920 = vmul.f32 %v915, %v919
    %s921 = sadd.s32 %s125, 1
    %v922 = vstv %s921
    %vm923 = vcmp.lt.s32.totalorder %v922, %v114
    %v924 = vsel %vm923, %v920, %v523
    %v925 = vsel %vm923, %v918, %v524
    %v926 = vsel %vm923, %v920, 0.0
    %v927 = vpack.c.bf16 %v926, %v926
    %s928 = scalar_lea.vmem [#allocation13], 1
    %929 = vst [vmem:[%s928] sm:$0x1] %v927
    %s930 = scalar_lea.vmem [#allocation4], 2
    %v931 = vld [vmem:[%s930] sm:$0x1]
    %v932 = vld [vmem:[#allocation7] sm:$0xff]
    %v933 = vld [vmem:[#allocation7 + $0x8] sm:$0xff]
    %v934 = vld [vmem:[#allocation7 + $0x10] sm:$0xff]
    %v935 = vld [vmem:[#allocation7 + $0x18] sm:$0xff]
    %v936 = vpack.c.bf16 %v924, %v924
    %v937 = vld [vmem:[#allocation9] sm:$0xff]
    %v938 = vld [vmem:[#allocation9 + $0x8] sm:$0xff]
    %v939 = vld [vmem:[#allocation9 + $0x10] sm:$0xff]
    %v940 = vld [vmem:[#allocation9 + $0x18] sm:$0xff]
    %v941 = vld [vmem:[#allocation9 + $0x20] sm:$0xff]
    %v942 = vld [vmem:[#allocation9 + $0x28] sm:$0xff]
    %v943 = vld [vmem:[#allocation9 + $0x30] sm:$0xff]
    %v944 = vld [vmem:[#allocation9 + $0x38] sm:$0xff]
    %v945 = vld [vmem:[#allocation9 + $0x40] sm:$0xff]
    %v946 = vld [vmem:[#allocation9 + $0x48] sm:$0xff]
    %v947 = vld [vmem:[#allocation9 + $0x50] sm:$0xff]
    %v948 = vld [vmem:[#allocation9 + $0x58] sm:$0xff]
    %v949 = vld [vmem:[#allocation9 + $0x60] sm:$0xff]
    %v950 = vld [vmem:[#allocation9 + $0x68] sm:$0xff]
    %v951 = vld [vmem:[#allocation9 + $0x70] sm:$0xff]
    %v952 = vld [vmem:[#allocation9 + $0x78] sm:$0xff]
    %v953 = vld [vmem:[#allocation9 + $0x80] sm:$0xff]
    %v954 = vld [vmem:[#allocation9 + $0x88] sm:$0xff]
    %v955 = vld [vmem:[#allocation9 + $0x90] sm:$0xff]
    %v956 = vld [vmem:[#allocation9 + $0x98] sm:$0xff]
    %v957 = vld [vmem:[#allocation9 + $0xa0] sm:$0xff]
    %v958 = vld [vmem:[#allocation9 + $0xa8] sm:$0xff]
    %v959 = vld [vmem:[#allocation9 + $0xb0] sm:$0xff]
    %v960 = vld [vmem:[#allocation9 + $0xb8] sm:$0xff]
    %v961 = vld [vmem:[#allocation9 + $0xc0] sm:$0xff]
    %v962 = vld [vmem:[#allocation9 + $0xc8] sm:$0xff]
    %v963 = vld [vmem:[#allocation9 + $0xd0] sm:$0xff]
    %v964 = vld [vmem:[#allocation9 + $0xd8] sm:$0xff]
    %v965 = vld [vmem:[#allocation9 + $0xe0] sm:$0xff]
    %v966 = vld [vmem:[#allocation9 + $0xe8] sm:$0xff]
    %v967 = vld [vmem:[#allocation9 + $0xf0] sm:$0xff]
    %v968 = vld [vmem:[#allocation9 + $0xf8] sm:$0xff]
    %v1001 = vunpack.c.l.b16 %v937
    %v1002 = vunpack.c.h.b16 %v937
    %v1003 = vunpack.c.l.b16 %v938
    %v1004 = vunpack.c.h.b16 %v938
    %v1005 = vunpack.c.l.b16 %v939
    %v1006 = vunpack.c.h.b16 %v939
    %v1007 = vunpack.c.l.b16 %v940
    %v1008 = vunpack.c.h.b16 %v940
    %v1009 = vunpack.c.l.b16 %v941
    %v1010 = vunpack.c.h.b16 %v941
    %v1011 = vunpack.c.l.b16 %v942
    %v1012 = vunpack.c.h.b16 %v942
    %v1013 = vunpack.c.l.b16 %v943
    %v1014 = vunpack.c.h.b16 %v943
    %v1015 = vunpack.c.l.b16 %v944
    %v1016 = vunpack.c.h.b16 %v944
    %v1017 = vunpack.c.l.b16 %v945
    %v1018 = vunpack.c.h.b16 %v945
    %v1019 = vunpack.c.l.b16 %v946
    %v1020 = vunpack.c.h.b16 %v946
    %v1021 = vunpack.c.l.b16 %v947
    %v1022 = vunpack.c.h.b16 %v947
    %v1023 = vunpack.c.l.b16 %v948
    %v1024 = vunpack.c.h.b16 %v948
    %v1025 = vunpack.c.l.b16 %v949
    %v1026 = vunpack.c.h.b16 %v949
    %v1027 = vunpack.c.l.b16 %v950
    %v1028 = vunpack.c.h.b16 %v950
    %v1029 = vunpack.c.l.b16 %v951
    %v1030 = vunpack.c.h.b16 %v951
    %v1031 = vunpack.c.l.b16 %v952
    %v1032 = vunpack.c.h.b16 %v952
    %v1033 = vunpack.c.l.b16 %v953
    %v1034 = vunpack.c.h.b16 %v953
    %v1035 = vunpack.c.l.b16 %v954
    %v1036 = vunpack.c.h.b16 %v954
    %v1037 = vunpack.c.l.b16 %v955
    %v1038 = vunpack.c.h.b16 %v955
    %v1039 = vunpack.c.l.b16 %v956
    %v1040 = vunpack.c.h.b16 %v956
    %v1041 = vunpack.c.l.b16 %v957
    %v1042 = vunpack.c.h.b16 %v957
    %v1043 = vunpack.c.l.b16 %v958
    %v1044 = vunpack.c.h.b16 %v958
    %v1045 = vunpack.c.l.b16 %v959
    %v1046 = vunpack.c.h.b16 %v959
    %v1047 = vunpack.c.l.b16 %v960
    %v1048 = vunpack.c.h.b16 %v960
    %v1049 = vunpack.c.l.b16 %v961
    %v1050 = vunpack.c.h.b16 %v961
    %v1051 = vunpack.c.l.b16 %v962
    %v1052 = vunpack.c.h.b16 %v962
    %v1053 = vunpack.c.l.b16 %v963
    %v1054 = vunpack.c.h.b16 %v963
    %v1055 = vunpack.c.l.b16 %v964
    %v1056 = vunpack.c.h.b16 %v964
    %v1057 = vunpack.c.l.b16 %v965
    %v1058 = vunpack.c.h.b16 %v965
    %v1059 = vunpack.c.l.b16 %v966
    %v1060 = vunpack.c.h.b16 %v966
    %v1061 = vunpack.c.l.b16 %v967
    %v1062 = vunpack.c.h.b16 %v967
    %v1063 = vunpack.c.l.b16 %v968
    %v1064 = vunpack.c.h.b16 %v968
    %v1065 = vpack.c.b16 %v1005, %v1001
    %v1066 = vpack.c.b16 %v1006, %v1002
    %v1067 = vpack.c.b16 %v1007, %v1003
    %v1068 = vpack.c.b16 %v1008, %v1004
    %v1069 = vpack.c.b16 %v1013, %v1009
    %v1070 = vpack.c.b16 %v1014, %v1010
    %v1071 = vpack.c.b16 %v1015, %v1011
    %v1072 = vpack.c.b16 %v1016, %v1012
    %v1073 = vpack.c.b16 %v1021, %v1017
    %v1074 = vpack.c.b16 %v1022, %v1018
    %v1075 = vpack.c.b16 %v1023, %v1019
    %v1076 = vpack.c.b16 %v1024, %v1020
    %v1077 = vpack.c.b16 %v1029, %v1025
    %v1078 = vpack.c.b16 %v1030, %v1026
    %v1079 = vpack.c.b16 %v1031, %v1027
    %v1080 = vpack.c.b16 %v1032, %v1028
    %v1081 = vpack.c.b16 %v1037, %v1033
    %v1082 = vpack.c.b16 %v1038, %v1034
    %v1083 = vpack.c.b16 %v1039, %v1035
    %v1084 = vpack.c.b16 %v1040, %v1036
    %v1085 = vpack.c.b16 %v1045, %v1041
    %v1086 = vpack.c.b16 %v1046, %v1042
    %v1087 = vpack.c.b16 %v1047, %v1043
    %v1088 = vpack.c.b16 %v1048, %v1044
    %v1089 = vpack.c.b16 %v1053, %v1049
    %v1090 = vpack.c.b16 %v1054, %v1050
    %v1091 = vpack.c.b16 %v1055, %v1051
    %v1092 = vpack.c.b16 %v1056, %v1052
    %v1093 = vpack.c.b16 %v1061, %v1057
    %v1094 = vpack.c.b16 %v1062, %v1058
    %v1095 = vpack.c.b16 %v1063, %v1059
    %v1096 = vpack.c.b16 %v1064, %v1060
    %1129 = vmatpush.bf16.msra.mxu0 %v1093
    %1130 = vmatpush.bf16.msra.mxu0 %v1089
    %1131 = vmatpush.bf16.msra.mxu0 %v1085
    %1132 = vmatpush.bf16.msra.mxu0 %v1081
    %1133 = vmatpush.bf16.msra.mxu0 %v1077
    %1134 = vmatpush.bf16.msra.mxu0 %v1073
    %1135 = vmatpush.bf16.msra.mxu0 %v1069
    %1136 = vmatpush.bf16.msra.mxu0 %v1065
    %1137 = vmatmul.bf16.gmra.mxu0 %v936
    %v1138 = vpop.f32.mrf.mxu0
    %v1139 = vadd.f32 0.0, %v1138
    %v1140 = vpop.f32.mrf.mxu0
    %1141 = vdwg.mxu0
    %1142 = vmatpush.bf16.msra.mxu0 %v1094
    %1143 = vmatpush.bf16.msra.mxu0 %v1090
    %1144 = vmatpush.bf16.msra.mxu0 %v1086
    %1145 = vmatpush.bf16.msra.mxu0 %v1082
    %1146 = vmatpush.bf16.msra.mxu0 %v1078
    %1147 = vmatpush.bf16.msra.mxu0 %v1074
    %1148 = vmatpush.bf16.msra.mxu0 %v1070
    %1149 = vmatpush.bf16.msra.mxu0 %v1066
    %1150 = vmatmul.bf16.gmra.mxu0 %v936
    %v1151 = vpop.f32.mrf.mxu0
    %v1152 = vadd.f32 0.0, %v1151
    %v1153 = vpop.f32.mrf.mxu0
    %1154 = vdwg.mxu0
    %1155 = vmatpush.bf16.msra.mxu0 %v1095
    %1156 = vmatpush.bf16.msra.mxu0 %v1091
    %1157 = vmatpush.bf16.msra.mxu0 %v1087
    %1158 = vmatpush.bf16.msra.mxu0 %v1083
    %1159 = vmatpush.bf16.msra.mxu0 %v1079
    %1160 = vmatpush.bf16.msra.mxu0 %v1075
    %1161 = vmatpush.bf16.msra.mxu0 %v1071
    %1162 = vmatpush.bf16.msra.mxu0 %v1067
    %1163 = vmatmul.bf16.gmra.mxu0 %v936
    %v1164 = vpop.f32.mrf.mxu0
    %v1165 = vadd.f32 0.0, %v1164
    %v1166 = vpop.f32.mrf.mxu0
    %1167 = vdwg.mxu0
    %1168 = vmatpush.bf16.msra.mxu0 %v1096
    %1169 = vmatpush.bf16.msra.mxu0 %v1092
    %1170 = vmatpush.bf16.msra.mxu0 %v1088
    %1171 = vmatpush.bf16.msra.mxu0 %v1084
    %1172 = vmatpush.bf16.msra.mxu0 %v1080
    %1173 = vmatpush.bf16.msra.mxu0 %v1076
    %1174 = vmatpush.bf16.msra.mxu0 %v1072
    %1175 = vmatpush.bf16.msra.mxu0 %v1068
    %1176 = vmatmul.bf16.gmra.mxu0 %v936
    %v1177 = vpop.f32.mrf.mxu0
    %v1178 = vadd.f32 0.0, %v1177
    %v1179 = vpop.f32.mrf.mxu0
    %1180 = vdwg.mxu0
    %v1185 = vunpack.c.l.b16 %v932
    %v1186 = vunpack.c.h.b16 %v932
    %v1187 = vunpack.c.l.b16 %v933
    %v1188 = vunpack.c.h.b16 %v933
    %v1189 = vunpack.c.l.b16 %v934
    %v1190 = vunpack.c.h.b16 %v934
    %v1191 = vunpack.c.l.b16 %v935
    %v1192 = vunpack.c.h.b16 %v935
    %v1193 = vpack.c.b16 %v1189, %v1185
    %v1194 = vpack.c.b16 %v1190, %v1186
    %v1195 = vpack.c.b16 %v1191, %v1187
    %v1196 = vpack.c.b16 %v1192, %v1188
    %v1202 = vsel %vm398, %v931, 0
    %1204 = vmatpush.bf16.msra.mxu0 0
    %1205 = vmatpush.bf16.msra.mxu0 0
    %1206 = vmatpush.bf16.msra.mxu0 0
    %1207 = vmatpush.bf16.msra.mxu0 0
    %1208 = vmatpush.bf16.msra.mxu0 0
    %1209 = vmatpush.bf16.msra.mxu0 0
    %1210 = vmatpush.bf16.msra.mxu0 0
    %1211 = vmatpush.bf16.msra.mxu0 %v1193
    %1212 = vmatmul.bf16.gmra.mxu0 %v1202
    %v1213 = vpop.f32.mrf.mxu0
    %v1214 = vadd.f32 %v1139, %v1213
    %v1215 = vpop.f32.mrf.mxu0
    %1216 = vdwg.mxu0
    %1217 = vmatpush.bf16.msra.mxu0 0
    %1218 = vmatpush.bf16.msra.mxu0 0
    %1219 = vmatpush.bf16.msra.mxu0 0
    %1220 = vmatpush.bf16.msra.mxu0 0
    %1221 = vmatpush.bf16.msra.mxu0 0
    %1222 = vmatpush.bf16.msra.mxu0 0
    %1223 = vmatpush.bf16.msra.mxu0 0
    %1224 = vmatpush.bf16.msra.mxu0 %v1194
    %1225 = vmatmul.bf16.gmra.mxu0 %v1202
    %v1226 = vpop.f32.mrf.mxu0
    %v1227 = vadd.f32 %v1152, %v1226
    %v1228 = vpop.f32.mrf.mxu0
    %1229 = vdwg.mxu0
    %1230 = vmatpush.bf16.msra.mxu0 0
    %1231 = vmatpush.bf16.msra.mxu0 0
    %1232 = vmatpush.bf16.msra.mxu0 0
    %1233 = vmatpush.bf16.msra.mxu0 0
    %1234 = vmatpush.bf16.msra.mxu0 0
    %1235 = vmatpush.bf16.msra.mxu0 0
    %1236 = vmatpush.bf16.msra.mxu0 0
    %1237 = vmatpush.bf16.msra.mxu0 %v1195
    %1238 = vmatmul.bf16.gmra.mxu0 %v1202
    %v1239 = vpop.f32.mrf.mxu0
    %v1240 = vadd.f32 %v1165, %v1239
    %v1241 = vpop.f32.mrf.mxu0
    %1242 = vdwg.mxu0
    %1243 = vmatpush.bf16.msra.mxu0 0
    %1244 = vmatpush.bf16.msra.mxu0 0
    %1245 = vmatpush.bf16.msra.mxu0 0
    %1246 = vmatpush.bf16.msra.mxu0 0
    %1247 = vmatpush.bf16.msra.mxu0 0
    %1248 = vmatpush.bf16.msra.mxu0 0
    %1249 = vmatpush.bf16.msra.mxu0 0
    %1250 = vmatpush.bf16.msra.mxu0 %v1196
    %1251 = vmatmul.bf16.gmra.mxu0 %v1202
    %v1252 = vpop.f32.mrf.mxu0
    %v1253 = vadd.f32 %v1178, %v1252
    %v1254 = vpop.f32.mrf.mxu0
    %1255 = vdwg.mxu0
    %v1256 = vadd.f32 %v1214, %v117
    %v1257 = vadd.f32 %v1227, %v118
    %v1258 = vadd.f32 %v1240, %v119
    %v1259 = vadd.f32 %v1253, %v120
    %v1260 = vxor.u32 %v1256, 2147483648
    %v1261 = vmul.f32 %v1260, 1.442695
    %v1262 = vpow.pop %v1261
    %v1263 = vadd.f32 %v1262, 1.0
    %v1264 = vrcp.pop %v1263
    %v1265 = vmul.f32 %v1263, %v1264
    %v1266 = vsub.f32 1.0, %v1265
    %v1267 = vmul.f32 %v1264, %v1266
    %v1268 = vadd.f32 %v1264, %v1267
    %vm1269 = vweird.f32 %v1263
    %vm1270 = vweird.f32 %v1264
    %vm1271 = vmor %vm1269, %vm1270
    %v1272 = vsel %vm1271, %v1264, %v1268
    %v1273 = vand.u32 2147483647, %v1263
    %vm1274 = vcmp.eq.f32.partialorder %v1273, 8.507059e+37
    %v1275 = vand.u32 %v1263, 2147483648
    %v1276 = vor.u32 1.1754944e-38, %v1275
    %v1277 = vsel %vm1274, %v1276, %v1272
    %v1278 = vmul.f32 1.0, %v1277
    %v1279 = vxor.u32 %v1257, 2147483648
    %v1280 = vmul.f32 %v1279, 1.442695
    %v1281 = vpow.pop %v1280
    %v1282 = vadd.f32 %v1281, 1.0
    %v1283 = vrcp.pop %v1282
    %v1284 = vmul.f32 %v1282, %v1283
    %v1285 = vsub.f32 1.0, %v1284
    %v1286 = vmul.f32 %v1283, %v1285
    %v1287 = vadd.f32 %v1283, %v1286
    %vm1288 = vweird.f32 %v1282
    %vm1289 = vweird.f32 %v1283
    %vm1290 = vmor %vm1288, %vm1289
    %v1291 = vsel %vm1290, %v1283, %v1287
    %v1292 = vand.u32 2147483647, %v1282
    %vm1293 = vcmp.eq.f32.partialorder %v1292, 8.507059e+37
    %v1294 = vand.u32 %v1282, 2147483648
    %v1295 = vor.u32 1.1754944e-38, %v1294
    %v1296 = vsel %vm1293, %v1295, %v1291
    %v1297 = vmul.f32 1.0, %v1296
    %v1298 = vtanh.pop %v1258
    %v1299 = vxor.u32 %v1259, 2147483648
    %v1300 = vmul.f32 %v1299, 1.442695
    %v1301 = vpow.pop %v1300
    %v1302 = vadd.f32 %v1301, 1.0
    %v1303 = vrcp.pop %v1302
    %v1304 = vmul.f32 %v1302, %v1303
    %v1305 = vsub.f32 1.0, %v1304
    %v1306 = vmul.f32 %v1303, %v1305
    %v1307 = vadd.f32 %v1303, %v1306
    %vm1308 = vweird.f32 %v1302
    %vm1309 = vweird.f32 %v1303
    %vm1310 = vmor %vm1308, %vm1309
    %v1311 = vsel %vm1310, %v1303, %v1307
    %v1312 = vand.u32 2147483647, %v1302
    %vm1313 = vcmp.eq.f32.partialorder %v1312, 8.507059e+37
    %v1314 = vand.u32 %v1302, 2147483648
    %v1315 = vor.u32 1.1754944e-38, %v1314
    %v1316 = vsel %vm1313, %v1315, %v1311
    %v1317 = vmul.f32 1.0, %v1316
    %v1318 = vmul.f32 %v1297, %v925
    %v1319 = vmul.f32 %v1278, %v1298
    %v1320 = vadd.f32 %v1318, %v1319
    %v1321 = vtanh.pop %v1320
    %v1322 = vmul.f32 %v1317, %v1321
    %s1323 = sadd.s32 %s125, 2
    %v1324 = vstv %s1323
    %vm1325 = vcmp.lt.s32.totalorder %v1324, %v114
    %v1326 = vsel %vm1325, %v1322, %v924
    %v1327 = vsel %vm1325, %v1320, %v925
    %v1328 = vsel %vm1325, %v1322, 0.0
    %v1329 = vpack.c.bf16 %v1328, %v1328
    %s1330 = scalar_lea.vmem [#allocation13], 2
    %1331 = vst [vmem:[%s1330] sm:$0x1] %v1329
    %s1332 = scalar_lea.vmem [#allocation4], 3
    %v1333 = vld [vmem:[%s1332] sm:$0x1]
    %v1334 = vld [vmem:[#allocation7] sm:$0xff]
    %v1335 = vld [vmem:[#allocation7 + $0x8] sm:$0xff]
    %v1336 = vld [vmem:[#allocation7 + $0x10] sm:$0xff]
    %v1337 = vld [vmem:[#allocation7 + $0x18] sm:$0xff]
    %v1338 = vpack.c.bf16 %v1326, %v1326
    %v1339 = vld [vmem:[#allocation9] sm:$0xff]
    %v1340 = vld [vmem:[#allocation9 + $0x8] sm:$0xff]
    %v1341 = vld [vmem:[#allocation9 + $0x10] sm:$0xff]
    %v1342 = vld [vmem:[#allocation9 + $0x18] sm:$0xff]
    %v1343 = vld [vmem:[#allocation9 + $0x20] sm:$0xff]
    %v1344 = vld [vmem:[#allocation9 + $0x28] sm:$0xff]
    %v1345 = vld [vmem:[#allocation9 + $0x30] sm:$0xff]
    %v1346 = vld [vmem:[#allocation9 + $0x38] sm:$0xff]
    %v1347 = vld [vmem:[#allocation9 + $0x40] sm:$0xff]
    %v1348 = vld [vmem:[#allocation9 + $0x48] sm:$0xff]
    %v1349 = vld [vmem:[#allocation9 + $0x50] sm:$0xff]
    %v1350 = vld [vmem:[#allocation9 + $0x58] sm:$0xff]
    %v1351 = vld [vmem:[#allocation9 + $0x60] sm:$0xff]
    %v1352 = vld [vmem:[#allocation9 + $0x68] sm:$0xff]
    %v1353 = vld [vmem:[#allocation9 + $0x70] sm:$0xff]
    %v1354 = vld [vmem:[#allocation9 + $0x78] sm:$0xff]
    %v1355 = vld [vmem:[#allocation9 + $0x80] sm:$0xff]
    %v1356 = vld [vmem:[#allocation9 + $0x88] sm:$0xff]
    %v1357 = vld [vmem:[#allocation9 + $0x90] sm:$0xff]
    %v1358 = vld [vmem:[#allocation9 + $0x98] sm:$0xff]
    %v1359 = vld [vmem:[#allocation9 + $0xa0] sm:$0xff]
    %v1360 = vld [vmem:[#allocation9 + $0xa8] sm:$0xff]
    %v1361 = vld [vmem:[#allocation9 + $0xb0] sm:$0xff]
    %v1362 = vld [vmem:[#allocation9 + $0xb8] sm:$0xff]
    %v1363 = vld [vmem:[#allocation9 + $0xc0] sm:$0xff]
    %v1364 = vld [vmem:[#allocation9 + $0xc8] sm:$0xff]
    %v1365 = vld [vmem:[#allocation9 + $0xd0] sm:$0xff]
    %v1366 = vld [vmem:[#allocation9 + $0xd8] sm:$0xff]
    %v1367 = vld [vmem:[#allocation9 + $0xe0] sm:$0xff]
    %v1368 = vld [vmem:[#allocation9 + $0xe8] sm:$0xff]
    %v1369 = vld [vmem:[#allocation9 + $0xf0] sm:$0xff]
    %v1370 = vld [vmem:[#allocation9 + $0xf8] sm:$0xff]
    %v1403 = vunpack.c.l.b16 %v1339
    %v1404 = vunpack.c.h.b16 %v1339
    %v1405 = vunpack.c.l.b16 %v1340
    %v1406 = vunpack.c.h.b16 %v1340
    %v1407 = vunpack.c.l.b16 %v1341
    %v1408 = vunpack.c.h.b16 %v1341
    %v1409 = vunpack.c.l.b16 %v1342
    %v1410 = vunpack.c.h.b16 %v1342
    %v1411 = vunpack.c.l.b16 %v1343
    %v1412 = vunpack.c.h.b16 %v1343
    %v1413 = vunpack.c.l.b16 %v1344
    %v1414 = vunpack.c.h.b16 %v1344
    %v1415 = vunpack.c.l.b16 %v1345
    %v1416 = vunpack.c.h.b16 %v1345
    %v1417 = vunpack.c.l.b16 %v1346
    %v1418 = vunpack.c.h.b16 %v1346
    %v1419 = vunpack.c.l.b16 %v1347
    %v1420 = vunpack.c.h.b16 %v1347
    %v1421 = vunpack.c.l.b16 %v1348
    %v1422 = vunpack.c.h.b16 %v1348
    %v1423 = vunpack.c.l.b16 %v1349
    %v1424 = vunpack.c.h.b16 %v1349
    %v1425 = vunpack.c.l.b16 %v1350
    %v1426 = vunpack.c.h.b16 %v1350
    %v1427 = vunpack.c.l.b16 %v1351
    %v1428 = vunpack.c.h.b16 %v1351
    %v1429 = vunpack.c.l.b16 %v1352
    %v1430 = vunpack.c.h.b16 %v1352
    %v1431 = vunpack.c.l.b16 %v1353
    %v1432 = vunpack.c.h.b16 %v1353
    %v1433 = vunpack.c.l.b16 %v1354
    %v1434 = vunpack.c.h.b16 %v1354
    %v1435 = vunpack.c.l.b16 %v1355
    %v1436 = vunpack.c.h.b16 %v1355
    %v1437 = vunpack.c.l.b16 %v1356
    %v1438 = vunpack.c.h.b16 %v1356
    %v1439 = vunpack.c.l.b16 %v1357
    %v1440 = vunpack.c.h.b16 %v1357
    %v1441 = vunpack.c.l.b16 %v1358
    %v1442 = vunpack.c.h.b16 %v1358
    %v1443 = vunpack.c.l.b16 %v1359
    %v1444 = vunpack.c.h.b16 %v1359
    %v1445 = vunpack.c.l.b16 %v1360
    %v1446 = vunpack.c.h.b16 %v1360
    %v1447 = vunpack.c.l.b16 %v1361
    %v1448 = vunpack.c.h.b16 %v1361
    %v1449 = vunpack.c.l.b16 %v1362
    %v1450 = vunpack.c.h.b16 %v1362
    %v1451 = vunpack.c.l.b16 %v1363
    %v1452 = vunpack.c.h.b16 %v1363
    %v1453 = vunpack.c.l.b16 %v1364
    %v1454 = vunpack.c.h.b16 %v1364
    %v1455 = vunpack.c.l.b16 %v1365
    %v1456 = vunpack.c.h.b16 %v1365
    %v1457 = vunpack.c.l.b16 %v1366
    %v1458 = vunpack.c.h.b16 %v1366
    %v1459 = vunpack.c.l.b16 %v1367
    %v1460 = vunpack.c.h.b16 %v1367
    %v1461 = vunpack.c.l.b16 %v1368
    %v1462 = vunpack.c.h.b16 %v1368
    %v1463 = vunpack.c.l.b16 %v1369
    %v1464 = vunpack.c.h.b16 %v1369
    %v1465 = vunpack.c.l.b16 %v1370
    %v1466 = vunpack.c.h.b16 %v1370
    %v1467 = vpack.c.b16 %v1407, %v1403
    %v1468 = vpack.c.b16 %v1408, %v1404
    %v1469 = vpack.c.b16 %v1409, %v1405
    %v1470 = vpack.c.b16 %v1410, %v1406
    %v1471 = vpack.c.b16 %v1415, %v1411
    %v1472 = vpack.c.b16 %v1416, %v1412
    %v1473 = vpack.c.b16 %v1417, %v1413
    %v1474 = vpack.c.b16 %v1418, %v1414
    %v1475 = vpack.c.b16 %v1423, %v1419
    %v1476 = vpack.c.b16 %v1424, %v1420
    %v1477 = vpack.c.b16 %v1425, %v1421
    %v1478 = vpack.c.b16 %v1426, %v1422
    %v1479 = vpack.c.b16 %v1431, %v1427
    %v1480 = vpack.c.b16 %v1432, %v1428
    %v1481 = vpack.c.b16 %v1433, %v1429
    %v1482 = vpack.c.b16 %v1434, %v1430
    %v1483 = vpack.c.b16 %v1439, %v1435
    %v1484 = vpack.c.b16 %v1440, %v1436
    %v1485 = vpack.c.b16 %v1441, %v1437
    %v1486 = vpack.c.b16 %v1442, %v1438
    %v1487 = vpack.c.b16 %v1447, %v1443
    %v1488 = vpack.c.b16 %v1448, %v1444
    %v1489 = vpack.c.b16 %v1449, %v1445
    %v1490 = vpack.c.b16 %v1450, %v1446
    %v1491 = vpack.c.b16 %v1455, %v1451
    %v1492 = vpack.c.b16 %v1456, %v1452
    %v1493 = vpack.c.b16 %v1457, %v1453
    %v1494 = vpack.c.b16 %v1458, %v1454
    %v1495 = vpack.c.b16 %v1463, %v1459
    %v1496 = vpack.c.b16 %v1464, %v1460
    %v1497 = vpack.c.b16 %v1465, %v1461
    %v1498 = vpack.c.b16 %v1466, %v1462
    %1531 = vmatpush.bf16.msra.mxu0 %v1495
    %1532 = vmatpush.bf16.msra.mxu0 %v1491
    %1533 = vmatpush.bf16.msra.mxu0 %v1487
    %1534 = vmatpush.bf16.msra.mxu0 %v1483
    %1535 = vmatpush.bf16.msra.mxu0 %v1479
    %1536 = vmatpush.bf16.msra.mxu0 %v1475
    %1537 = vmatpush.bf16.msra.mxu0 %v1471
    %1538 = vmatpush.bf16.msra.mxu0 %v1467
    %1539 = vmatmul.bf16.gmra.mxu0 %v1338
    %v1540 = vpop.f32.mrf.mxu0
    %v1541 = vadd.f32 0.0, %v1540
    %v1542 = vpop.f32.mrf.mxu0
    %1543 = vdwg.mxu0
    %1544 = vmatpush.bf16.msra.mxu0 %v1496
    %1545 = vmatpush.bf16.msra.mxu0 %v1492
    %1546 = vmatpush.bf16.msra.mxu0 %v1488
    %1547 = vmatpush.bf16.msra.mxu0 %v1484
    %1548 = vmatpush.bf16.msra.mxu0 %v1480
    %1549 = vmatpush.bf16.msra.mxu0 %v1476
    %1550 = vmatpush.bf16.msra.mxu0 %v1472
    %1551 = vmatpush.bf16.msra.mxu0 %v1468
    %1552 = vmatmul.bf16.gmra.mxu0 %v1338
    %v1553 = vpop.f32.mrf.mxu0
    %v1554 = vadd.f32 0.0, %v1553
    %v1555 = vpop.f32.mrf.mxu0
    %1556 = vdwg.mxu0
    %1557 = vmatpush.bf16.msra.mxu0 %v1497
    %1558 = vmatpush.bf16.msra.mxu0 %v1493
    %1559 = vmatpush.bf16.msra.mxu0 %v1489
    %1560 = vmatpush.bf16.msra.mxu0 %v1485
    %1561 = vmatpush.bf16.msra.mxu0 %v1481
    %1562 = vmatpush.bf16.msra.mxu0 %v1477
    %1563 = vmatpush.bf16.msra.mxu0 %v1473
    %1564 = vmatpush.bf16.msra.mxu0 %v1469
    %1565 = vmatmul.bf16.gmra.mxu0 %v1338
    %v1566 = vpop.f32.mrf.mxu0
    %v1567 = vadd.f32 0.0, %v1566
    %v1568 = vpop.f32.mrf.mxu0
    %1569 = vdwg.mxu0
    %1570 = vmatpush.bf16.msra.mxu0 %v1498
    %1571 = vmatpush.bf16.msra.mxu0 %v1494
    %1572 = vmatpush.bf16.msra.mxu0 %v1490
    %1573 = vmatpush.bf16.msra.mxu0 %v1486
    %1574 = vmatpush.bf16.msra.mxu0 %v1482
    %1575 = vmatpush.bf16.msra.mxu0 %v1478
    %1576 = vmatpush.bf16.msra.mxu0 %v1474
    %1577 = vmatpush.bf16.msra.mxu0 %v1470
    %1578 = vmatmul.bf16.gmra.mxu0 %v1338
    %v1579 = vpop.f32.mrf.mxu0
    %v1580 = vadd.f32 0.0, %v1579
    %v1581 = vpop.f32.mrf.mxu0
    %1582 = vdwg.mxu0
    %v1587 = vunpack.c.l.b16 %v1334
    %v1588 = vunpack.c.h.b16 %v1334
    %v1589 = vunpack.c.l.b16 %v1335
    %v1590 = vunpack.c.h.b16 %v1335
    %v1591 = vunpack.c.l.b16 %v1336
    %v1592 = vunpack.c.h.b16 %v1336
    %v1593 = vunpack.c.l.b16 %v1337
    %v1594 = vunpack.c.h.b16 %v1337
    %v1595 = vpack.c.b16 %v1591, %v1587
    %v1596 = vpack.c.b16 %v1592, %v1588
    %v1597 = vpack.c.b16 %v1593, %v1589
    %v1598 = vpack.c.b16 %v1594, %v1590
    %v1604 = vsel %vm398, %v1333, 0
    %1606 = vmatpush.bf16.msra.mxu0 0
    %1607 = vmatpush.bf16.msra.mxu0 0
    %1608 = vmatpush.bf16.msra.mxu0 0
    %1609 = vmatpush.bf16.msra.mxu0 0
    %1610 = vmatpush.bf16.msra.mxu0 0
    %1611 = vmatpush.bf16.msra.mxu0 0
    %1612 = vmatpush.bf16.msra.mxu0 0
    %1613 = vmatpush.bf16.msra.mxu0 %v1595
    %1614 = vmatmul.bf16.gmra.mxu0 %v1604
    %v1615 = vpop.f32.mrf.mxu0
    %v1616 = vadd.f32 %v1541, %v1615
    %v1617 = vpop.f32.mrf.mxu0
    %1618 = vdwg.mxu0
    %1619 = vmatpush.bf16.msra.mxu0 0
    %1620 = vmatpush.bf16.msra.mxu0 0
    %1621 = vmatpush.bf16.msra.mxu0 0
    %1622 = vmatpush.bf16.msra.mxu0 0
    %1623 = vmatpush.bf16.msra.mxu0 0
    %1624 = vmatpush.bf16.msra.mxu0 0
    %1625 = vmatpush.bf16.msra.mxu0 0
    %1626 = vmatpush.bf16.msra.mxu0 %v1596
    %1627 = vmatmul.bf16.gmra.mxu0 %v1604
    %v1628 = vpop.f32.mrf.mxu0
    %v1629 = vadd.f32 %v1554, %v1628
    %v1630 = vpop.f32.mrf.mxu0
    %1631 = vdwg.mxu0
    %1632 = vmatpush.bf16.msra.mxu0 0
    %1633 = vmatpush.bf16.msra.mxu0 0
    %1634 = vmatpush.bf16.msra.mxu0 0
    %1635 = vmatpush.bf16.msra.mxu0 0
    %1636 = vmatpush.bf16.msra.mxu0 0
    %1637 = vmatpush.bf16.msra.mxu0 0
    %1638 = vmatpush.bf16.msra.mxu0 0
    %1639 = vmatpush.bf16.msra.mxu0 %v1597
    %1640 = vmatmul.bf16.gmra.mxu0 %v1604
    %v1641 = vpop.f32.mrf.mxu0
    %v1642 = vadd.f32 %v1567, %v1641
    %v1643 = vpop.f32.mrf.mxu0
    %1644 = vdwg.mxu0
    %1645 = vmatpush.bf16.msra.mxu0 0
    %1646 = vmatpush.bf16.msra.mxu0 0
    %1647 = vmatpush.bf16.msra.mxu0 0
    %1648 = vmatpush.bf16.msra.mxu0 0
    %1649 = vmatpush.bf16.msra.mxu0 0
    %1650 = vmatpush.bf16.msra.mxu0 0
    %1651 = vmatpush.bf16.msra.mxu0 0
    %1652 = vmatpush.bf16.msra.mxu0 %v1598
    %1653 = vmatmul.bf16.gmra.mxu0 %v1604
    %v1654 = vpop.f32.mrf.mxu0
    %v1655 = vadd.f32 %v1580, %v1654
    %v1656 = vpop.f32.mrf.mxu0
    %1657 = vdwg.mxu0
    %v1658 = vadd.f32 %v1616, %v117
    %v1659 = vadd.f32 %v1629, %v118
    %v1660 = vadd.f32 %v1642, %v119
    %v1661 = vadd.f32 %v1655, %v120
    %v1662 = vxor.u32 %v1658, 2147483648
    %v1663 = vmul.f32 %v1662, 1.442695
    %v1664 = vpow.pop %v1663
    %v1665 = vadd.f32 %v1664, 1.0
    %v1666 = vrcp.pop %v1665
    %v1667 = vmul.f32 %v1665, %v1666
    %v1668 = vsub.f32 1.0, %v1667
    %v1669 = vmul.f32 %v1666, %v1668
    %v1670 = vadd.f32 %v1666, %v1669
    %vm1671 = vweird.f32 %v1665
    %vm1672 = vweird.f32 %v1666
    %vm1673 = vmor %vm1671, %vm1672
    %v1674 = vsel %vm1673, %v1666, %v1670
    %v1675 = vand.u32 2147483647, %v1665
    %vm1676 = vcmp.eq.f32.partialorder %v1675, 8.507059e+37
    %v1677 = vand.u32 %v1665, 2147483648
    %v1678 = vor.u32 1.1754944e-38, %v1677
    %v1679 = vsel %vm1676, %v1678, %v1674
    %v1680 = vmul.f32 1.0, %v1679
    %v1681 = vxor.u32 %v1659, 2147483648
    %v1682 = vmul.f32 %v1681, 1.442695
    %v1683 = vpow.pop %v1682
    %v1684 = vadd.f32 %v1683, 1.0
    %v1685 = vrcp.pop %v1684
    %v1686 = vmul.f32 %v1684, %v1685
    %v1687 = vsub.f32 1.0, %v1686
    %v1688 = vmul.f32 %v1685, %v1687
    %v1689 = vadd.f32 %v1685, %v1688
    %vm1690 = vweird.f32 %v1684
    %vm1691 = vweird.f32 %v1685
    %vm1692 = vmor %vm1690, %vm1691
    %v1693 = vsel %vm1692, %v1685, %v1689
    %v1694 = vand.u32 2147483647, %v1684
    %vm1695 = vcmp.eq.f32.partialorder %v1694, 8.507059e+37
    %v1696 = vand.u32 %v1684, 2147483648
    %v1697 = vor.u32 1.1754944e-38, %v1696
    %v1698 = vsel %vm1695, %v1697, %v1693
    %v1699 = vmul.f32 1.0, %v1698
    %v1700 = vtanh.pop %v1660
    %v1701 = vxor.u32 %v1661, 2147483648
    %v1702 = vmul.f32 %v1701, 1.442695
    %v1703 = vpow.pop %v1702
    %v1704 = vadd.f32 %v1703, 1.0
    %v1705 = vrcp.pop %v1704
    %v1706 = vmul.f32 %v1704, %v1705
    %v1707 = vsub.f32 1.0, %v1706
    %v1708 = vmul.f32 %v1705, %v1707
    %v1709 = vadd.f32 %v1705, %v1708
    %vm1710 = vweird.f32 %v1704
    %vm1711 = vweird.f32 %v1705
    %vm1712 = vmor %vm1710, %vm1711
    %v1713 = vsel %vm1712, %v1705, %v1709
    %v1714 = vand.u32 2147483647, %v1704
    %vm1715 = vcmp.eq.f32.partialorder %v1714, 8.507059e+37
    %v1716 = vand.u32 %v1704, 2147483648
    %v1717 = vor.u32 1.1754944e-38, %v1716
    %v1718 = vsel %vm1715, %v1717, %v1713
    %v1719 = vmul.f32 1.0, %v1718
    %v1720 = vmul.f32 %v1699, %v1327
    %v1721 = vmul.f32 %v1680, %v1700
    %v1722 = vadd.f32 %v1720, %v1721
    %v1723 = vtanh.pop %v1722
    %v1724 = vmul.f32 %v1719, %v1723
    %s1725 = sadd.s32 %s125, 3
    %v1726 = vstv %s1725
    %vm1727 = vcmp.lt.s32.totalorder %v1726, %v114
    %v1728 = vsel %vm1727, %v1724, %v1326
    %v1729 = vsel %vm1727, %v1722, %v1327
    %v1730 = vsel %vm1727, %v1724, 0.0
    %v1731 = vpack.c.bf16 %v1730, %v1730
    %s1732 = scalar_lea.vmem [#allocation13], 3
    %1733 = vst [vmem:[%s1732] sm:$0x1] %v1731
    %s1734 = scalar_lea.vmem [#allocation4], 4
    %v1735 = vld [vmem:[%s1734] sm:$0x1]
    %v1736 = vld [vmem:[#allocation7] sm:$0xff]
    %v1737 = vld [vmem:[#allocation7 + $0x8] sm:$0xff]
    %v1738 = vld [vmem:[#allocation7 + $0x10] sm:$0xff]
    %v1739 = vld [vmem:[#allocation7 + $0x18] sm:$0xff]
    %v1740 = vpack.c.bf16 %v1728, %v1728
    %v1741 = vld [vmem:[#allocation9] sm:$0xff]
    %v1742 = vld [vmem:[#allocation9 + $0x8] sm:$0xff]
    %v1743 = vld [vmem:[#allocation9 + $0x10] sm:$0xff]
    %v1744 = vld [vmem:[#allocation9 + $0x18] sm:$0xff]
    %v1745 = vld [vmem:[#allocation9 + $0x20] sm:$0xff]
    %v1746 = vld [vmem:[#allocation9 + $0x28] sm:$0xff]
    %v1747 = vld [vmem:[#allocation9 + $0x30] sm:$0xff]
    %v1748 = vld [vmem:[#allocation9 + $0x38] sm:$0xff]
    %v1749 = vld [vmem:[#allocation9 + $0x40] sm:$0xff]
    %v1750 = vld [vmem:[#allocation9 + $0x48] sm:$0xff]
    %v1751 = vld [vmem:[#allocation9 + $0x50] sm:$0xff]
    %v1752 = vld [vmem:[#allocation9 + $0x58] sm:$0xff]
    %v1753 = vld [vmem:[#allocation9 + $0x60] sm:$0xff]
    %v1754 = vld [vmem:[#allocation9 + $0x68] sm:$0xff]
    %v1755 = vld [vmem:[#allocation9 + $0x70] sm:$0xff]
    %v1756 = vld [vmem:[#allocation9 + $0x78] sm:$0xff]
    %v1757 = vld [vmem:[#allocation9 + $0x80] sm:$0xff]
    %v1758 = vld [vmem:[#allocation9 + $0x88] sm:$0xff]
    %v1759 = vld [vmem:[#allocation9 + $0x90] sm:$0xff]
    %v1760 = vld [vmem:[#allocation9 + $0x98] sm:$0xff]
    %v1761 = vld [vmem:[#allocation9 + $0xa0] sm:$0xff]
    %v1762 = vld [vmem:[#allocation9 + $0xa8] sm:$0xff]
    %v1763 = vld [vmem:[#allocation9 + $0xb0] sm:$0xff]
    %v1764 = vld [vmem:[#allocation9 + $0xb8] sm:$0xff]
    %v1765 = vld [vmem:[#allocation9 + $0xc0] sm:$0xff]
    %v1766 = vld [vmem:[#allocation9 + $0xc8] sm:$0xff]
    %v1767 = vld [vmem:[#allocation9 + $0xd0] sm:$0xff]
    %v1768 = vld [vmem:[#allocation9 + $0xd8] sm:$0xff]
    %v1769 = vld [vmem:[#allocation9 + $0xe0] sm:$0xff]
    %v1770 = vld [vmem:[#allocation9 + $0xe8] sm:$0xff]
    %v1771 = vld [vmem:[#allocation9 + $0xf0] sm:$0xff]
    %v1772 = vld [vmem:[#allocation9 + $0xf8] sm:$0xff]
    %v1805 = vunpack.c.l.b16 %v1741
    %v1806 = vunpack.c.h.b16 %v1741
    %v1807 = vunpack.c.l.b16 %v1742
    %v1808 = vunpack.c.h.b16 %v1742
    %v1809 = vunpack.c.l.b16 %v1743
    %v1810 = vunpack.c.h.b16 %v1743
    %v1811 = vunpack.c.l.b16 %v1744
    %v1812 = vunpack.c.h.b16 %v1744
    %v1813 = vunpack.c.l.b16 %v1745
    %v1814 = vunpack.c.h.b16 %v1745
    %v1815 = vunpack.c.l.b16 %v1746
    %v1816 = vunpack.c.h.b16 %v1746
    %v1817 = vunpack.c.l.b16 %v1747
    %v1818 = vunpack.c.h.b16 %v1747
    %v1819 = vunpack.c.l.b16 %v1748
    %v1820 = vunpack.c.h.b16 %v1748
    %v1821 = vunpack.c.l.b16 %v1749
    %v1822 = vunpack.c.h.b16 %v1749
    %v1823 = vunpack.c.l.b16 %v1750
    %v1824 = vunpack.c.h.b16 %v1750
    %v1825 = vunpack.c.l.b16 %v1751
    %v1826 = vunpack.c.h.b16 %v1751
    %v1827 = vunpack.c.l.b16 %v1752
    %v1828 = vunpack.c.h.b16 %v1752
    %v1829 = vunpack.c.l.b16 %v1753
    %v1830 = vunpack.c.h.b16 %v1753
    %v1831 = vunpack.c.l.b16 %v1754
    %v1832 = vunpack.c.h.b16 %v1754
    %v1833 = vunpack.c.l.b16 %v1755
    %v1834 = vunpack.c.h.b16 %v1755
    %v1835 = vunpack.c.l.b16 %v1756
    %v1836 = vunpack.c.h.b16 %v1756
    %v1837 = vunpack.c.l.b16 %v1757
    %v1838 = vunpack.c.h.b16 %v1757
    %v1839 = vunpack.c.l.b16 %v1758
    %v1840 = vunpack.c.h.b16 %v1758
    %v1841 = vunpack.c.l.b16 %v1759
    %v1842 = vunpack.c.h.b16 %v1759
    %v1843 = vunpack.c.l.b16 %v1760
    %v1844 = vunpack.c.h.b16 %v1760
    %v1845 = vunpack.c.l.b16 %v1761
    %v1846 = vunpack.c.h.b16 %v1761
    %v1847 = vunpack.c.l.b16 %v1762
    %v1848 = vunpack.c.h.b16 %v1762
    %v1849 = vunpack.c.l.b16 %v1763
    %v1850 = vunpack.c.h.b16 %v1763
    %v1851 = vunpack.c.l.b16 %v1764
    %v1852 = vunpack.c.h.b16 %v1764
    %v1853 = vunpack.c.l.b16 %v1765
    %v1854 = vunpack.c.h.b16 %v1765
    %v1855 = vunpack.c.l.b16 %v1766
    %v1856 = vunpack.c.h.b16 %v1766
    %v1857 = vunpack.c.l.b16 %v1767
    %v1858 = vunpack.c.h.b16 %v1767
    %v1859 = vunpack.c.l.b16 %v1768
    %v1860 = vunpack.c.h.b16 %v1768
    %v1861 = vunpack.c.l.b16 %v1769
    %v1862 = vunpack.c.h.b16 %v1769
    %v1863 = vunpack.c.l.b16 %v1770
    %v1864 = vunpack.c.h.b16 %v1770
    %v1865 = vunpack.c.l.b16 %v1771
    %v1866 = vunpack.c.h.b16 %v1771
    %v1867 = vunpack.c.l.b16 %v1772
    %v1868 = vunpack.c.h.b16 %v1772
    %v1869 = vpack.c.b16 %v1809, %v1805
    %v1870 = vpack.c.b16 %v1810, %v1806
    %v1871 = vpack.c.b16 %v1811, %v1807
    %v1872 = vpack.c.b16 %v1812, %v1808
    %v1873 = vpack.c.b16 %v1817, %v1813
    %v1874 = vpack.c.b16 %v1818, %v1814
    %v1875 = vpack.c.b16 %v1819, %v1815
    %v1876 = vpack.c.b16 %v1820, %v1816
    %v1877 = vpack.c.b16 %v1825, %v1821
    %v1878 = vpack.c.b16 %v1826, %v1822
    %v1879 = vpack.c.b16 %v1827, %v1823
    %v1880 = vpack.c.b16 %v1828, %v1824
    %v1881 = vpack.c.b16 %v1833, %v1829
    %v1882 = vpack.c.b16 %v1834, %v1830
    %v1883 = vpack.c.b16 %v1835, %v1831
    %v1884 = vpack.c.b16 %v1836, %v1832
    %v1885 = vpack.c.b16 %v1841, %v1837
    %v1886 = vpack.c.b16 %v1842, %v1838
    %v1887 = vpack.c.b16 %v1843, %v1839
    %v1888 = vpack.c.b16 %v1844, %v1840
    %v1889 = vpack.c.b16 %v1849, %v1845
    %v1890 = vpack.c.b16 %v1850, %v1846
    %v1891 = vpack.c.b16 %v1851, %v1847
    %v1892 = vpack.c.b16 %v1852, %v1848
    %v1893 = vpack.c.b16 %v1857, %v1853
    %v1894 = vpack.c.b16 %v1858, %v1854
    %v1895 = vpack.c.b16 %v1859, %v1855
    %v1896 = vpack.c.b16 %v1860, %v1856
    %v1897 = vpack.c.b16 %v1865, %v1861
    %v1898 = vpack.c.b16 %v1866, %v1862
    %v1899 = vpack.c.b16 %v1867, %v1863
    %v1900 = vpack.c.b16 %v1868, %v1864
    %1933 = vmatpush.bf16.msra.mxu0 %v1897
    %1934 = vmatpush.bf16.msra.mxu0 %v1893
    %1935 = vmatpush.bf16.msra.mxu0 %v1889
    %1936 = vmatpush.bf16.msra.mxu0 %v1885
    %1937 = vmatpush.bf16.msra.mxu0 %v1881
    %1938 = vmatpush.bf16.msra.mxu0 %v1877
    %1939 = vmatpush.bf16.msra.mxu0 %v1873
    %1940 = vmatpush.bf16.msra.mxu0 %v1869
    %1941 = vmatmul.bf16.gmra.mxu0 %v1740
    %v1942 = vpop.f32.mrf.mxu0
    %v1943 = vadd.f32 0.0, %v1942
    %v1944 = vpop.f32.mrf.mxu0
    %1945 = vdwg.mxu0
    %1946 = vmatpush.bf16.msra.mxu0 %v1898
    %1947 = vmatpush.bf16.msra.mxu0 %v1894
    %1948 = vmatpush.bf16.msra.mxu0 %v1890
    %1949 = vmatpush.bf16.msra.mxu0 %v1886
    %1950 = vmatpush.bf16.msra.mxu0 %v1882
    %1951 = vmatpush.bf16.msra.mxu0 %v1878
    %1952 = vmatpush.bf16.msra.mxu0 %v1874
    %1953 = vmatpush.bf16.msra.mxu0 %v1870
    %1954 = vmatmul.bf16.gmra.mxu0 %v1740
    %v1955 = vpop.f32.mrf.mxu0
    %v1956 = vadd.f32 0.0, %v1955
    %v1957 = vpop.f32.mrf.mxu0
    %1958 = vdwg.mxu0
    %1959 = vmatpush.bf16.msra.mxu0 %v1899
    %1960 = vmatpush.bf16.msra.mxu0 %v1895
    %1961 = vmatpush.bf16.msra.mxu0 %v1891
    %1962 = vmatpush.bf16.msra.mxu0 %v1887
    %1963 = vmatpush.bf16.msra.mxu0 %v1883
    %1964 = vmatpush.bf16.msra.mxu0 %v1879
    %1965 = vmatpush.bf16.msra.mxu0 %v1875
    %1966 = vmatpush.bf16.msra.mxu0 %v1871
    %1967 = vmatmul.bf16.gmra.mxu0 %v1740
    %v1968 = vpop.f32.mrf.mxu0
    %v1969 = vadd.f32 0.0, %v1968
    %v1970 = vpop.f32.mrf.mxu0
    %1971 = vdwg.mxu0
    %1972 = vmatpush.bf16.msra.mxu0 %v1900
    %1973 = vmatpush.bf16.msra.mxu0 %v1896
    %1974 = vmatpush.bf16.msra.mxu0 %v1892
    %1975 = vmatpush.bf16.msra.mxu0 %v1888
    %1976 = vmatpush.bf16.msra.mxu0 %v1884
    %1977 = vmatpush.bf16.msra.mxu0 %v1880
    %1978 = vmatpush.bf16.msra.mxu0 %v1876
    %1979 = vmatpush.bf16.msra.mxu0 %v1872
    %1980 = vmatmul.bf16.gmra.mxu0 %v1740
    %v1981 = vpop.f32.mrf.mxu0
    %v1982 = vadd.f32 0.0, %v1981
    %v1983 = vpop.f32.mrf.mxu0
    %1984 = vdwg.mxu0
    %v1989 = vunpack.c.l.b16 %v1736
    %v1990 = vunpack.c.h.b16 %v1736
    %v1991 = vunpack.c.l.b16 %v1737
    %v1992 = vunpack.c.h.b16 %v1737
    %v1993 = vunpack.c.l.b16 %v1738
    %v1994 = vunpack.c.h.b16 %v1738
    %v1995 = vunpack.c.l.b16 %v1739
    %v1996 = vunpack.c.h.b16 %v1739
    %v1997 = vpack.c.b16 %v1993, %v1989
    %v1998 = vpack.c.b16 %v1994, %v1990
    %v1999 = vpack.c.b16 %v1995, %v1991
    %v2000 = vpack.c.b16 %v1996, %v1992
    %v2006 = vsel %vm398, %v1735, 0
    %2008 = vmatpush.bf16.msra.mxu0 0
    %2009 = vmatpush.bf16.msra.mxu0 0
    %2010 = vmatpush.bf16.msra.mxu0 0
    %2011 = vmatpush.bf16.msra.mxu0 0
    %2012 = vmatpush.bf16.msra.mxu0 0
    %2013 = vmatpush.bf16.msra.mxu0 0
    %2014 = vmatpush.bf16.msra.mxu0 0
    %2015 = vmatpush.bf16.msra.mxu0 %v1997
    %2016 = vmatmul.bf16.gmra.mxu0 %v2006
    %v2017 = vpop.f32.mrf.mxu0
    %v2018 = vadd.f32 %v1943, %v2017
    %v2019 = vpop.f32.mrf.mxu0
    %2020 = vdwg.mxu0
    %2021 = vmatpush.bf16.msra.mxu0 0
    %2022 = vmatpush.bf16.msra.mxu0 0
    %2023 = vmatpush.bf16.msra.mxu0 0
    %2024 = vmatpush.bf16.msra.mxu0 0
    %2025 = vmatpush.bf16.msra.mxu0 0
    %2026 = vmatpush.bf16.msra.mxu0 0
    %2027 = vmatpush.bf16.msra.mxu0 0
    %2028 = vmatpush.bf16.msra.mxu0 %v1998
    %2029 = vmatmul.bf16.gmra.mxu0 %v2006
    %v2030 = vpop.f32.mrf.mxu0
    %v2031 = vadd.f32 %v1956, %v2030
    %v2032 = vpop.f32.mrf.mxu0
    %2033 = vdwg.mxu0
    %2034 = vmatpush.bf16.msra.mxu0 0
    %2035 = vmatpush.bf16.msra.mxu0 0
    %2036 = vmatpush.bf16.msra.mxu0 0
    %2037 = vmatpush.bf16.msra.mxu0 0
    %2038 = vmatpush.bf16.msra.mxu0 0
    %2039 = vmatpush.bf16.msra.mxu0 0
    %2040 = vmatpush.bf16.msra.mxu0 0
    %2041 = vmatpush.bf16.msra.mxu0 %v1999
    %2042 = vmatmul.bf16.gmra.mxu0 %v2006
    %v2043 = vpop.f32.mrf.mxu0
    %v2044 = vadd.f32 %v1969, %v2043
    %v2045 = vpop.f32.mrf.mxu0
    %2046 = vdwg.mxu0
    %2047 = vmatpush.bf16.msra.mxu0 0
    %2048 = vmatpush.bf16.msra.mxu0 0
    %2049 = vmatpush.bf16.msra.mxu0 0
    %2050 = vmatpush.bf16.msra.mxu0 0
    %2051 = vmatpush.bf16.msra.mxu0 0
    %2052 = vmatpush.bf16.msra.mxu0 0
    %2053 = vmatpush.bf16.msra.mxu0 0
    %2054 = vmatpush.bf16.msra.mxu0 %v2000
    %2055 = vmatmul.bf16.gmra.mxu0 %v2006
    %v2056 = vpop.f32.mrf.mxu0
    %v2057 = vadd.f32 %v1982, %v2056
    %v2058 = vpop.f32.mrf.mxu0
    %2059 = vdwg.mxu0
    %v2060 = vadd.f32 %v2018, %v117
    %v2061 = vadd.f32 %v2031, %v118
    %v2062 = vadd.f32 %v2044, %v119
    %v2063 = vadd.f32 %v2057, %v120
    %v2064 = vxor.u32 %v2060, 2147483648
    %v2065 = vmul.f32 %v2064, 1.442695
    %v2066 = vpow.pop %v2065
    %v2067 = vadd.f32 %v2066, 1.0
    %v2068 = vrcp.pop %v2067
    %v2069 = vmul.f32 %v2067, %v2068
    %v2070 = vsub.f32 1.0, %v2069
    %v2071 = vmul.f32 %v2068, %v2070
    %v2072 = vadd.f32 %v2068, %v2071
    %vm2073 = vweird.f32 %v2067
    %vm2074 = vweird.f32 %v2068
    %vm2075 = vmor %vm2073, %vm2074
    %v2076 = vsel %vm2075, %v2068, %v2072
    %v2077 = vand.u32 2147483647, %v2067
    %vm2078 = vcmp.eq.f32.partialorder %v2077, 8.507059e+37
    %v2079 = vand.u32 %v2067, 2147483648
    %v2080 = vor.u32 1.1754944e-38, %v2079
    %v2081 = vsel %vm2078, %v2080, %v2076
    %v2082 = vmul.f32 1.0, %v2081
    %v2083 = vxor.u32 %v2061, 2147483648
    %v2084 = vmul.f32 %v2083, 1.442695
    %v2085 = vpow.pop %v2084
    %v2086 = vadd.f32 %v2085, 1.0
    %v2087 = vrcp.pop %v2086
    %v2088 = vmul.f32 %v2086, %v2087
    %v2089 = vsub.f32 1.0, %v2088
    %v2090 = vmul.f32 %v2087, %v2089
    %v2091 = vadd.f32 %v2087, %v2090
    %vm2092 = vweird.f32 %v2086
    %vm2093 = vweird.f32 %v2087
    %vm2094 = vmor %vm2092, %vm2093
    %v2095 = vsel %vm2094, %v2087, %v2091
    %v2096 = vand.u32 2147483647, %v2086
    %vm2097 = vcmp.eq.f32.partialorder %v2096, 8.507059e+37
    %v2098 = vand.u32 %v2086, 2147483648
    %v2099 = vor.u32 1.1754944e-38, %v2098
    %v2100 = vsel %vm2097, %v2099, %v2095
    %v2101 = vmul.f32 1.0, %v2100
    %v2102 = vtanh.pop %v2062
    %v2103 = vxor.u32 %v2063, 2147483648
    %v2104 = vmul.f32 %v2103, 1.442695
    %v2105 = vpow.pop %v2104
    %v2106 = vadd.f32 %v2105, 1.0
    %v2107 = vrcp.pop %v2106
    %v2108 = vmul.f32 %v2106, %v2107
    %v2109 = vsub.f32 1.0, %v2108
    %v2110 = vmul.f32 %v2107, %v2109
    %v2111 = vadd.f32 %v2107, %v2110
    %vm2112 = vweird.f32 %v2106
    %vm2113 = vweird.f32 %v2107
    %vm2114 = vmor %vm2112, %vm2113
    %v2115 = vsel %vm2114, %v2107, %v2111
    %v2116 = vand.u32 2147483647, %v2106
    %vm2117 = vcmp.eq.f32.partialorder %v2116, 8.507059e+37
    %v2118 = vand.u32 %v2106, 2147483648
    %v2119 = vor.u32 1.1754944e-38, %v2118
    %v2120 = vsel %vm2117, %v2119, %v2115
    %v2121 = vmul.f32 1.0, %v2120
    %v2122 = vmul.f32 %v2101, %v1729
    %v2123 = vmul.f32 %v2082, %v2102
    %v2124 = vadd.f32 %v2122, %v2123
    %v2125 = vtanh.pop %v2124
    %v2126 = vmul.f32 %v2121, %v2125
    %s2127 = sadd.s32 %s125, 4
    %v2128 = vstv %s2127
    %vm2129 = vcmp.lt.s32.totalorder %v2128, %v114
    %v2130 = vsel %vm2129, %v2126, %v1728
    %v2131 = vsel %vm2129, %v2124, %v1729
    %v2132 = vsel %vm2129, %v2126, 0.0
    %v2133 = vpack.c.bf16 %v2132, %v2132
    %s2134 = scalar_lea.vmem [#allocation13], 4
    %2135 = vst [vmem:[%s2134] sm:$0x1] %v2133
    %s2136 = scalar_lea.vmem [#allocation4], 5
    %v2137 = vld [vmem:[%s2136] sm:$0x1]
    %v2138 = vld [vmem:[#allocation7] sm:$0xff]
    %v2139 = vld [vmem:[#allocation7 + $0x8] sm:$0xff]
    %v2140 = vld [vmem:[#allocation7 + $0x10] sm:$0xff]
    %v2141 = vld [vmem:[#allocation7 + $0x18] sm:$0xff]
    %v2142 = vpack.c.bf16 %v2130, %v2130
    %v2143 = vld [vmem:[#allocation9] sm:$0xff]
    %v2144 = vld [vmem:[#allocation9 + $0x8] sm:$0xff]
    %v2145 = vld [vmem:[#allocation9 + $0x10] sm:$0xff]
    %v2146 = vld [vmem:[#allocation9 + $0x18] sm:$0xff]
    %v2147 = vld [vmem:[#allocation9 + $0x20] sm:$0xff]
    %v2148 = vld [vmem:[#allocation9 + $0x28] sm:$0xff]
    %v2149 = vld [vmem:[#allocation9 + $0x30] sm:$0xff]
    %v2150 = vld [vmem:[#allocation9 + $0x38] sm:$0xff]
    %v2151 = vld [vmem:[#allocation9 + $0x40] sm:$0xff]
    %v2152 = vld [vmem:[#allocation9 + $0x48] sm:$0xff]
    %v2153 = vld [vmem:[#allocation9 + $0x50] sm:$0xff]
    %v2154 = vld [vmem:[#allocation9 + $0x58] sm:$0xff]
    %v2155 = vld [vmem:[#allocation9 + $0x60] sm:$0xff]
    %v2156 = vld [vmem:[#allocation9 + $0x68] sm:$0xff]
    %v2157 = vld [vmem:[#allocation9 + $0x70] sm:$0xff]
    %v2158 = vld [vmem:[#allocation9 + $0x78] sm:$0xff]
    %v2159 = vld [vmem:[#allocation9 + $0x80] sm:$0xff]
    %v2160 = vld [vmem:[#allocation9 + $0x88] sm:$0xff]
    %v2161 = vld [vmem:[#allocation9 + $0x90] sm:$0xff]
    %v2162 = vld [vmem:[#allocation9 + $0x98] sm:$0xff]
    %v2163 = vld [vmem:[#allocation9 + $0xa0] sm:$0xff]
    %v2164 = vld [vmem:[#allocation9 + $0xa8] sm:$0xff]
    %v2165 = vld [vmem:[#allocation9 + $0xb0] sm:$0xff]
    %v2166 = vld [vmem:[#allocation9 + $0xb8] sm:$0xff]
    %v2167 = vld [vmem:[#allocation9 + $0xc0] sm:$0xff]
    %v2168 = vld [vmem:[#allocation9 + $0xc8] sm:$0xff]
    %v2169 = vld [vmem:[#allocation9 + $0xd0] sm:$0xff]
    %v2170 = vld [vmem:[#allocation9 + $0xd8] sm:$0xff]
    %v2171 = vld [vmem:[#allocation9 + $0xe0] sm:$0xff]
    %v2172 = vld [vmem:[#allocation9 + $0xe8] sm:$0xff]
    %v2173 = vld [vmem:[#allocation9 + $0xf0] sm:$0xff]
    %v2174 = vld [vmem:[#allocation9 + $0xf8] sm:$0xff]
    %v2207 = vunpack.c.l.b16 %v2143
    %v2208 = vunpack.c.h.b16 %v2143
    %v2209 = vunpack.c.l.b16 %v2144
    %v2210 = vunpack.c.h.b16 %v2144
    %v2211 = vunpack.c.l.b16 %v2145
    %v2212 = vunpack.c.h.b16 %v2145
    %v2213 = vunpack.c.l.b16 %v2146
    %v2214 = vunpack.c.h.b16 %v2146
    %v2215 = vunpack.c.l.b16 %v2147
    %v2216 = vunpack.c.h.b16 %v2147
    %v2217 = vunpack.c.l.b16 %v2148
    %v2218 = vunpack.c.h.b16 %v2148
    %v2219 = vunpack.c.l.b16 %v2149
    %v2220 = vunpack.c.h.b16 %v2149
    %v2221 = vunpack.c.l.b16 %v2150
    %v2222 = vunpack.c.h.b16 %v2150
    %v2223 = vunpack.c.l.b16 %v2151
    %v2224 = vunpack.c.h.b16 %v2151
    %v2225 = vunpack.c.l.b16 %v2152
    %v2226 = vunpack.c.h.b16 %v2152
    %v2227 = vunpack.c.l.b16 %v2153
    %v2228 = vunpack.c.h.b16 %v2153
    %v2229 = vunpack.c.l.b16 %v2154
    %v2230 = vunpack.c.h.b16 %v2154
    %v2231 = vunpack.c.l.b16 %v2155
    %v2232 = vunpack.c.h.b16 %v2155
    %v2233 = vunpack.c.l.b16 %v2156
    %v2234 = vunpack.c.h.b16 %v2156
    %v2235 = vunpack.c.l.b16 %v2157
    %v2236 = vunpack.c.h.b16 %v2157
    %v2237 = vunpack.c.l.b16 %v2158
    %v2238 = vunpack.c.h.b16 %v2158
    %v2239 = vunpack.c.l.b16 %v2159
    %v2240 = vunpack.c.h.b16 %v2159
    %v2241 = vunpack.c.l.b16 %v2160
    %v2242 = vunpack.c.h.b16 %v2160
    %v2243 = vunpack.c.l.b16 %v2161
    %v2244 = vunpack.c.h.b16 %v2161
    %v2245 = vunpack.c.l.b16 %v2162
    %v2246 = vunpack.c.h.b16 %v2162
    %v2247 = vunpack.c.l.b16 %v2163
    %v2248 = vunpack.c.h.b16 %v2163
    %v2249 = vunpack.c.l.b16 %v2164
    %v2250 = vunpack.c.h.b16 %v2164
    %v2251 = vunpack.c.l.b16 %v2165
    %v2252 = vunpack.c.h.b16 %v2165
    %v2253 = vunpack.c.l.b16 %v2166
    %v2254 = vunpack.c.h.b16 %v2166
    %v2255 = vunpack.c.l.b16 %v2167
    %v2256 = vunpack.c.h.b16 %v2167
    %v2257 = vunpack.c.l.b16 %v2168
    %v2258 = vunpack.c.h.b16 %v2168
    %v2259 = vunpack.c.l.b16 %v2169
    %v2260 = vunpack.c.h.b16 %v2169
    %v2261 = vunpack.c.l.b16 %v2170
    %v2262 = vunpack.c.h.b16 %v2170
    %v2263 = vunpack.c.l.b16 %v2171
    %v2264 = vunpack.c.h.b16 %v2171
    %v2265 = vunpack.c.l.b16 %v2172
    %v2266 = vunpack.c.h.b16 %v2172
    %v2267 = vunpack.c.l.b16 %v2173
    %v2268 = vunpack.c.h.b16 %v2173
    %v2269 = vunpack.c.l.b16 %v2174
    %v2270 = vunpack.c.h.b16 %v2174
    %v2271 = vpack.c.b16 %v2211, %v2207
    %v2272 = vpack.c.b16 %v2212, %v2208
    %v2273 = vpack.c.b16 %v2213, %v2209
    %v2274 = vpack.c.b16 %v2214, %v2210
    %v2275 = vpack.c.b16 %v2219, %v2215
    %v2276 = vpack.c.b16 %v2220, %v2216
    %v2277 = vpack.c.b16 %v2221, %v2217
    %v2278 = vpack.c.b16 %v2222, %v2218
    %v2279 = vpack.c.b16 %v2227, %v2223
    %v2280 = vpack.c.b16 %v2228, %v2224
    %v2281 = vpack.c.b16 %v2229, %v2225
    %v2282 = vpack.c.b16 %v2230, %v2226
    %v2283 = vpack.c.b16 %v2235, %v2231
    %v2284 = vpack.c.b16 %v2236, %v2232
    %v2285 = vpack.c.b16 %v2237, %v2233
    %v2286 = vpack.c.b16 %v2238, %v2234
    %v2287 = vpack.c.b16 %v2243, %v2239
    %v2288 = vpack.c.b16 %v2244, %v2240
    %v2289 = vpack.c.b16 %v2245, %v2241
    %v2290 = vpack.c.b16 %v2246, %v2242
    %v2291 = vpack.c.b16 %v2251, %v2247
    %v2292 = vpack.c.b16 %v2252, %v2248
    %v2293 = vpack.c.b16 %v2253, %v2249
    %v2294 = vpack.c.b16 %v2254, %v2250
    %v2295 = vpack.c.b16 %v2259, %v2255
    %v2296 = vpack.c.b16 %v2260, %v2256
    %v2297 = vpack.c.b16 %v2261, %v2257
    %v2298 = vpack.c.b16 %v2262, %v2258
    %v2299 = vpack.c.b16 %v2267, %v2263
    %v2300 = vpack.c.b16 %v2268, %v2264
    %v2301 = vpack.c.b16 %v2269, %v2265
    %v2302 = vpack.c.b16 %v2270, %v2266
    %2335 = vmatpush.bf16.msra.mxu0 %v2299
    %2336 = vmatpush.bf16.msra.mxu0 %v2295
    %2337 = vmatpush.bf16.msra.mxu0 %v2291
    %2338 = vmatpush.bf16.msra.mxu0 %v2287
    %2339 = vmatpush.bf16.msra.mxu0 %v2283
    %2340 = vmatpush.bf16.msra.mxu0 %v2279
    %2341 = vmatpush.bf16.msra.mxu0 %v2275
    %2342 = vmatpush.bf16.msra.mxu0 %v2271
    %2343 = vmatmul.bf16.gmra.mxu0 %v2142
    %v2344 = vpop.f32.mrf.mxu0
    %v2345 = vadd.f32 0.0, %v2344
    %v2346 = vpop.f32.mrf.mxu0
    %2347 = vdwg.mxu0
    %2348 = vmatpush.bf16.msra.mxu0 %v2300
    %2349 = vmatpush.bf16.msra.mxu0 %v2296
    %2350 = vmatpush.bf16.msra.mxu0 %v2292
    %2351 = vmatpush.bf16.msra.mxu0 %v2288
    %2352 = vmatpush.bf16.msra.mxu0 %v2284
    %2353 = vmatpush.bf16.msra.mxu0 %v2280
    %2354 = vmatpush.bf16.msra.mxu0 %v2276
    %2355 = vmatpush.bf16.msra.mxu0 %v2272
    %2356 = vmatmul.bf16.gmra.mxu0 %v2142
    %v2357 = vpop.f32.mrf.mxu0
    %v2358 = vadd.f32 0.0, %v2357
    %v2359 = vpop.f32.mrf.mxu0
    %2360 = vdwg.mxu0
    %2361 = vmatpush.bf16.msra.mxu0 %v2301
    %2362 = vmatpush.bf16.msra.mxu0 %v2297
    %2363 = vmatpush.bf16.msra.mxu0 %v2293
    %2364 = vmatpush.bf16.msra.mxu0 %v2289
    %2365 = vmatpush.bf16.msra.mxu0 %v2285
    %2366 = vmatpush.bf16.msra.mxu0 %v2281
    %2367 = vmatpush.bf16.msra.mxu0 %v2277
    %2368 = vmatpush.bf16.msra.mxu0 %v2273
    %2369 = vmatmul.bf16.gmra.mxu0 %v2142
    %v2370 = vpop.f32.mrf.mxu0
    %v2371 = vadd.f32 0.0, %v2370
    %v2372 = vpop.f32.mrf.mxu0
    %2373 = vdwg.mxu0
    %2374 = vmatpush.bf16.msra.mxu0 %v2302
    %2375 = vmatpush.bf16.msra.mxu0 %v2298
    %2376 = vmatpush.bf16.msra.mxu0 %v2294
    %2377 = vmatpush.bf16.msra.mxu0 %v2290
    %2378 = vmatpush.bf16.msra.mxu0 %v2286
    %2379 = vmatpush.bf16.msra.mxu0 %v2282
    %2380 = vmatpush.bf16.msra.mxu0 %v2278
    %2381 = vmatpush.bf16.msra.mxu0 %v2274
    %2382 = vmatmul.bf16.gmra.mxu0 %v2142
    %v2383 = vpop.f32.mrf.mxu0
    %v2384 = vadd.f32 0.0, %v2383
    %v2385 = vpop.f32.mrf.mxu0
    %2386 = vdwg.mxu0
    %v2391 = vunpack.c.l.b16 %v2138
    %v2392 = vunpack.c.h.b16 %v2138
    %v2393 = vunpack.c.l.b16 %v2139
    %v2394 = vunpack.c.h.b16 %v2139
    %v2395 = vunpack.c.l.b16 %v2140
    %v2396 = vunpack.c.h.b16 %v2140
    %v2397 = vunpack.c.l.b16 %v2141
    %v2398 = vunpack.c.h.b16 %v2141
    %v2399 = vpack.c.b16 %v2395, %v2391
    %v2400 = vpack.c.b16 %v2396, %v2392
    %v2401 = vpack.c.b16 %v2397, %v2393
    %v2402 = vpack.c.b16 %v2398, %v2394
    %v2408 = vsel %vm398, %v2137, 0
    %2410 = vmatpush.bf16.msra.mxu0 0
    %2411 = vmatpush.bf16.msra.mxu0 0
    %2412 = vmatpush.bf16.msra.mxu0 0
    %2413 = vmatpush.bf16.msra.mxu0 0
    %2414 = vmatpush.bf16.msra.mxu0 0
    %2415 = vmatpush.bf16.msra.mxu0 0
    %2416 = vmatpush.bf16.msra.mxu0 0
    %2417 = vmatpush.bf16.msra.mxu0 %v2399
    %2418 = vmatmul.bf16.gmra.mxu0 %v2408
    %v2419 = vpop.f32.mrf.mxu0
    %v2420 = vadd.f32 %v2345, %v2419
    %v2421 = vpop.f32.mrf.mxu0
    %2422 = vdwg.mxu0
    %2423 = vmatpush.bf16.msra.mxu0 0
    %2424 = vmatpush.bf16.msra.mxu0 0
    %2425 = vmatpush.bf16.msra.mxu0 0
    %2426 = vmatpush.bf16.msra.mxu0 0
    %2427 = vmatpush.bf16.msra.mxu0 0
    %2428 = vmatpush.bf16.msra.mxu0 0
    %2429 = vmatpush.bf16.msra.mxu0 0
    %2430 = vmatpush.bf16.msra.mxu0 %v2400
    %2431 = vmatmul.bf16.gmra.mxu0 %v2408
    %v2432 = vpop.f32.mrf.mxu0
    %v2433 = vadd.f32 %v2358, %v2432
    %v2434 = vpop.f32.mrf.mxu0
    %2435 = vdwg.mxu0
    %2436 = vmatpush.bf16.msra.mxu0 0
    %2437 = vmatpush.bf16.msra.mxu0 0
    %2438 = vmatpush.bf16.msra.mxu0 0
    %2439 = vmatpush.bf16.msra.mxu0 0
    %2440 = vmatpush.bf16.msra.mxu0 0
    %2441 = vmatpush.bf16.msra.mxu0 0
    %2442 = vmatpush.bf16.msra.mxu0 0
    %2443 = vmatpush.bf16.msra.mxu0 %v2401
    %2444 = vmatmul.bf16.gmra.mxu0 %v2408
    %v2445 = vpop.f32.mrf.mxu0
    %v2446 = vadd.f32 %v2371, %v2445
    %v2447 = vpop.f32.mrf.mxu0
    %2448 = vdwg.mxu0
    %2449 = vmatpush.bf16.msra.mxu0 0
    %2450 = vmatpush.bf16.msra.mxu0 0
    %2451 = vmatpush.bf16.msra.mxu0 0
    %2452 = vmatpush.bf16.msra.mxu0 0
    %2453 = vmatpush.bf16.msra.mxu0 0
    %2454 = vmatpush.bf16.msra.mxu0 0
    %2455 = vmatpush.bf16.msra.mxu0 0
    %2456 = vmatpush.bf16.msra.mxu0 %v2402
    %2457 = vmatmul.bf16.gmra.mxu0 %v2408
    %v2458 = vpop.f32.mrf.mxu0
    %v2459 = vadd.f32 %v2384, %v2458
    %v2460 = vpop.f32.mrf.mxu0
    %2461 = vdwg.mxu0
    %v2462 = vadd.f32 %v2420, %v117
    %v2463 = vadd.f32 %v2433, %v118
    %v2464 = vadd.f32 %v2446, %v119
    %v2465 = vadd.f32 %v2459, %v120
    %v2466 = vxor.u32 %v2462, 2147483648
    %v2467 = vmul.f32 %v2466, 1.442695
    %v2468 = vpow.pop %v2467
    %v2469 = vadd.f32 %v2468, 1.0
    %v2470 = vrcp.pop %v2469
    %v2471 = vmul.f32 %v2469, %v2470
    %v2472 = vsub.f32 1.0, %v2471
    %v2473 = vmul.f32 %v2470, %v2472
    %v2474 = vadd.f32 %v2470, %v2473
    %vm2475 = vweird.f32 %v2469
    %vm2476 = vweird.f32 %v2470
    %vm2477 = vmor %vm2475, %vm2476
    %v2478 = vsel %vm2477, %v2470, %v2474
    %v2479 = vand.u32 2147483647, %v2469
    %vm2480 = vcmp.eq.f32.partialorder %v2479, 8.507059e+37
    %v2481 = vand.u32 %v2469, 2147483648
    %v2482 = vor.u32 1.1754944e-38, %v2481
    %v2483 = vsel %vm2480, %v2482, %v2478
    %v2484 = vmul.f32 1.0, %v2483
    %v2485 = vxor.u32 %v2463, 2147483648
    %v2486 = vmul.f32 %v2485, 1.442695
    %v2487 = vpow.pop %v2486
    %v2488 = vadd.f32 %v2487, 1.0
    %v2489 = vrcp.pop %v2488
    %v2490 = vmul.f32 %v2488, %v2489
    %v2491 = vsub.f32 1.0, %v2490
    %v2492 = vmul.f32 %v2489, %v2491
    %v2493 = vadd.f32 %v2489, %v2492
    %vm2494 = vweird.f32 %v2488
    %vm2495 = vweird.f32 %v2489
    %vm2496 = vmor %vm2494, %vm2495
    %v2497 = vsel %vm2496, %v2489, %v2493
    %v2498 = vand.u32 2147483647, %v2488
    %vm2499 = vcmp.eq.f32.partialorder %v2498, 8.507059e+37
    %v2500 = vand.u32 %v2488, 2147483648
    %v2501 = vor.u32 1.1754944e-38, %v2500
    %v2502 = vsel %vm2499, %v2501, %v2497
    %v2503 = vmul.f32 1.0, %v2502
    %v2504 = vtanh.pop %v2464
    %v2505 = vxor.u32 %v2465, 2147483648
    %v2506 = vmul.f32 %v2505, 1.442695
    %v2507 = vpow.pop %v2506
    %v2508 = vadd.f32 %v2507, 1.0
    %v2509 = vrcp.pop %v2508
    %v2510 = vmul.f32 %v2508, %v2509
    %v2511 = vsub.f32 1.0, %v2510
    %v2512 = vmul.f32 %v2509, %v2511
    %v2513 = vadd.f32 %v2509, %v2512
    %vm2514 = vweird.f32 %v2508
    %vm2515 = vweird.f32 %v2509
    %vm2516 = vmor %vm2514, %vm2515
    %v2517 = vsel %vm2516, %v2509, %v2513
    %v2518 = vand.u32 2147483647, %v2508
    %vm2519 = vcmp.eq.f32.partialorder %v2518, 8.507059e+37
    %v2520 = vand.u32 %v2508, 2147483648
    %v2521 = vor.u32 1.1754944e-38, %v2520
    %v2522 = vsel %vm2519, %v2521, %v2517
    %v2523 = vmul.f32 1.0, %v2522
    %v2524 = vmul.f32 %v2503, %v2131
    %v2525 = vmul.f32 %v2484, %v2504
    %v2526 = vadd.f32 %v2524, %v2525
    %v2527 = vtanh.pop %v2526
    %v2528 = vmul.f32 %v2523, %v2527
    %s2529 = sadd.s32 %s125, 5
    %v2530 = vstv %s2529
    %vm2531 = vcmp.lt.s32.totalorder %v2530, %v114
    %v2532 = vsel %vm2531, %v2528, %v2130
    %v2533 = vsel %vm2531, %v2526, %v2131
    %v2534 = vsel %vm2531, %v2528, 0.0
    %v2535 = vpack.c.bf16 %v2534, %v2534
    %s2536 = scalar_lea.vmem [#allocation13], 5
    %2537 = vst [vmem:[%s2536] sm:$0x1] %v2535
    %s2538 = scalar_lea.vmem [#allocation4], 6
    %v2539 = vld [vmem:[%s2538] sm:$0x1]
    %v2540 = vld [vmem:[#allocation7] sm:$0xff]
    %v2541 = vld [vmem:[#allocation7 + $0x8] sm:$0xff]
    %v2542 = vld [vmem:[#allocation7 + $0x10] sm:$0xff]
    %v2543 = vld [vmem:[#allocation7 + $0x18] sm:$0xff]
    %v2544 = vpack.c.bf16 %v2532, %v2532
    %v2545 = vld [vmem:[#allocation9] sm:$0xff]
    %v2546 = vld [vmem:[#allocation9 + $0x8] sm:$0xff]
    %v2547 = vld [vmem:[#allocation9 + $0x10] sm:$0xff]
    %v2548 = vld [vmem:[#allocation9 + $0x18] sm:$0xff]
    %v2549 = vld [vmem:[#allocation9 + $0x20] sm:$0xff]
    %v2550 = vld [vmem:[#allocation9 + $0x28] sm:$0xff]
    %v2551 = vld [vmem:[#allocation9 + $0x30] sm:$0xff]
    %v2552 = vld [vmem:[#allocation9 + $0x38] sm:$0xff]
    %v2553 = vld [vmem:[#allocation9 + $0x40] sm:$0xff]
    %v2554 = vld [vmem:[#allocation9 + $0x48] sm:$0xff]
    %v2555 = vld [vmem:[#allocation9 + $0x50] sm:$0xff]
    %v2556 = vld [vmem:[#allocation9 + $0x58] sm:$0xff]
    %v2557 = vld [vmem:[#allocation9 + $0x60] sm:$0xff]
    %v2558 = vld [vmem:[#allocation9 + $0x68] sm:$0xff]
    %v2559 = vld [vmem:[#allocation9 + $0x70] sm:$0xff]
    %v2560 = vld [vmem:[#allocation9 + $0x78] sm:$0xff]
    %v2561 = vld [vmem:[#allocation9 + $0x80] sm:$0xff]
    %v2562 = vld [vmem:[#allocation9 + $0x88] sm:$0xff]
    %v2563 = vld [vmem:[#allocation9 + $0x90] sm:$0xff]
    %v2564 = vld [vmem:[#allocation9 + $0x98] sm:$0xff]
    %v2565 = vld [vmem:[#allocation9 + $0xa0] sm:$0xff]
    %v2566 = vld [vmem:[#allocation9 + $0xa8] sm:$0xff]
    %v2567 = vld [vmem:[#allocation9 + $0xb0] sm:$0xff]
    %v2568 = vld [vmem:[#allocation9 + $0xb8] sm:$0xff]
    %v2569 = vld [vmem:[#allocation9 + $0xc0] sm:$0xff]
    %v2570 = vld [vmem:[#allocation9 + $0xc8] sm:$0xff]
    %v2571 = vld [vmem:[#allocation9 + $0xd0] sm:$0xff]
    %v2572 = vld [vmem:[#allocation9 + $0xd8] sm:$0xff]
    %v2573 = vld [vmem:[#allocation9 + $0xe0] sm:$0xff]
    %v2574 = vld [vmem:[#allocation9 + $0xe8] sm:$0xff]
    %v2575 = vld [vmem:[#allocation9 + $0xf0] sm:$0xff]
    %v2576 = vld [vmem:[#allocation9 + $0xf8] sm:$0xff]
    %v2609 = vunpack.c.l.b16 %v2545
    %v2610 = vunpack.c.h.b16 %v2545
    %v2611 = vunpack.c.l.b16 %v2546
    %v2612 = vunpack.c.h.b16 %v2546
    %v2613 = vunpack.c.l.b16 %v2547
    %v2614 = vunpack.c.h.b16 %v2547
    %v2615 = vunpack.c.l.b16 %v2548
    %v2616 = vunpack.c.h.b16 %v2548
    %v2617 = vunpack.c.l.b16 %v2549
    %v2618 = vunpack.c.h.b16 %v2549
    %v2619 = vunpack.c.l.b16 %v2550
    %v2620 = vunpack.c.h.b16 %v2550
    %v2621 = vunpack.c.l.b16 %v2551
    %v2622 = vunpack.c.h.b16 %v2551
    %v2623 = vunpack.c.l.b16 %v2552
    %v2624 = vunpack.c.h.b16 %v2552
    %v2625 = vunpack.c.l.b16 %v2553
    %v2626 = vunpack.c.h.b16 %v2553
    %v2627 = vunpack.c.l.b16 %v2554
    %v2628 = vunpack.c.h.b16 %v2554
    %v2629 = vunpack.c.l.b16 %v2555
    %v2630 = vunpack.c.h.b16 %v2555
    %v2631 = vunpack.c.l.b16 %v2556
    %v2632 = vunpack.c.h.b16 %v2556
    %v2633 = vunpack.c.l.b16 %v2557
    %v2634 = vunpack.c.h.b16 %v2557
    %v2635 = vunpack.c.l.b16 %v2558
    %v2636 = vunpack.c.h.b16 %v2558
    %v2637 = vunpack.c.l.b16 %v2559
    %v2638 = vunpack.c.h.b16 %v2559
    %v2639 = vunpack.c.l.b16 %v2560
    %v2640 = vunpack.c.h.b16 %v2560
    %v2641 = vunpack.c.l.b16 %v2561
    %v2642 = vunpack.c.h.b16 %v2561
    %v2643 = vunpack.c.l.b16 %v2562
    %v2644 = vunpack.c.h.b16 %v2562
    %v2645 = vunpack.c.l.b16 %v2563
    %v2646 = vunpack.c.h.b16 %v2563
    %v2647 = vunpack.c.l.b16 %v2564
    %v2648 = vunpack.c.h.b16 %v2564
    %v2649 = vunpack.c.l.b16 %v2565
    %v2650 = vunpack.c.h.b16 %v2565
    %v2651 = vunpack.c.l.b16 %v2566
    %v2652 = vunpack.c.h.b16 %v2566
    %v2653 = vunpack.c.l.b16 %v2567
    %v2654 = vunpack.c.h.b16 %v2567
    %v2655 = vunpack.c.l.b16 %v2568
    %v2656 = vunpack.c.h.b16 %v2568
    %v2657 = vunpack.c.l.b16 %v2569
    %v2658 = vunpack.c.h.b16 %v2569
    %v2659 = vunpack.c.l.b16 %v2570
    %v2660 = vunpack.c.h.b16 %v2570
    %v2661 = vunpack.c.l.b16 %v2571
    %v2662 = vunpack.c.h.b16 %v2571
    %v2663 = vunpack.c.l.b16 %v2572
    %v2664 = vunpack.c.h.b16 %v2572
    %v2665 = vunpack.c.l.b16 %v2573
    %v2666 = vunpack.c.h.b16 %v2573
    %v2667 = vunpack.c.l.b16 %v2574
    %v2668 = vunpack.c.h.b16 %v2574
    %v2669 = vunpack.c.l.b16 %v2575
    %v2670 = vunpack.c.h.b16 %v2575
    %v2671 = vunpack.c.l.b16 %v2576
    %v2672 = vunpack.c.h.b16 %v2576
    %v2673 = vpack.c.b16 %v2613, %v2609
    %v2674 = vpack.c.b16 %v2614, %v2610
    %v2675 = vpack.c.b16 %v2615, %v2611
    %v2676 = vpack.c.b16 %v2616, %v2612
    %v2677 = vpack.c.b16 %v2621, %v2617
    %v2678 = vpack.c.b16 %v2622, %v2618
    %v2679 = vpack.c.b16 %v2623, %v2619
    %v2680 = vpack.c.b16 %v2624, %v2620
    %v2681 = vpack.c.b16 %v2629, %v2625
    %v2682 = vpack.c.b16 %v2630, %v2626
    %v2683 = vpack.c.b16 %v2631, %v2627
    %v2684 = vpack.c.b16 %v2632, %v2628
    %v2685 = vpack.c.b16 %v2637, %v2633
    %v2686 = vpack.c.b16 %v2638, %v2634
    %v2687 = vpack.c.b16 %v2639, %v2635
    %v2688 = vpack.c.b16 %v2640, %v2636
    %v2689 = vpack.c.b16 %v2645, %v2641
    %v2690 = vpack.c.b16 %v2646, %v2642
    %v2691 = vpack.c.b16 %v2647, %v2643
    %v2692 = vpack.c.b16 %v2648, %v2644
    %v2693 = vpack.c.b16 %v2653, %v2649
    %v2694 = vpack.c.b16 %v2654, %v2650
    %v2695 = vpack.c.b16 %v2655, %v2651
    %v2696 = vpack.c.b16 %v2656, %v2652
    %v2697 = vpack.c.b16 %v2661, %v2657
    %v2698 = vpack.c.b16 %v2662, %v2658
    %v2699 = vpack.c.b16 %v2663, %v2659
    %v2700 = vpack.c.b16 %v2664, %v2660
    %v2701 = vpack.c.b16 %v2669, %v2665
    %v2702 = vpack.c.b16 %v2670, %v2666
    %v2703 = vpack.c.b16 %v2671, %v2667
    %v2704 = vpack.c.b16 %v2672, %v2668
    %2737 = vmatpush.bf16.msra.mxu0 %v2701
    %2738 = vmatpush.bf16.msra.mxu0 %v2697
    %2739 = vmatpush.bf16.msra.mxu0 %v2693
    %2740 = vmatpush.bf16.msra.mxu0 %v2689
    %2741 = vmatpush.bf16.msra.mxu0 %v2685
    %2742 = vmatpush.bf16.msra.mxu0 %v2681
    %2743 = vmatpush.bf16.msra.mxu0 %v2677
    %2744 = vmatpush.bf16.msra.mxu0 %v2673
    %2745 = vmatmul.bf16.gmra.mxu0 %v2544
    %v2746 = vpop.f32.mrf.mxu0
    %v2747 = vadd.f32 0.0, %v2746
    %v2748 = vpop.f32.mrf.mxu0
    %2749 = vdwg.mxu0
    %2750 = vmatpush.bf16.msra.mxu0 %v2702
    %2751 = vmatpush.bf16.msra.mxu0 %v2698
    %2752 = vmatpush.bf16.msra.mxu0 %v2694
    %2753 = vmatpush.bf16.msra.mxu0 %v2690
    %2754 = vmatpush.bf16.msra.mxu0 %v2686
    %2755 = vmatpush.bf16.msra.mxu0 %v2682
    %2756 = vmatpush.bf16.msra.mxu0 %v2678
    %2757 = vmatpush.bf16.msra.mxu0 %v2674
    %2758 = vmatmul.bf16.gmra.mxu0 %v2544
    %v2759 = vpop.f32.mrf.mxu0
    %v2760 = vadd.f32 0.0, %v2759
    %v2761 = vpop.f32.mrf.mxu0
    %2762 = vdwg.mxu0
    %2763 = vmatpush.bf16.msra.mxu0 %v2703
    %2764 = vmatpush.bf16.msra.mxu0 %v2699
    %2765 = vmatpush.bf16.msra.mxu0 %v2695
    %2766 = vmatpush.bf16.msra.mxu0 %v2691
    %2767 = vmatpush.bf16.msra.mxu0 %v2687
    %2768 = vmatpush.bf16.msra.mxu0 %v2683
    %2769 = vmatpush.bf16.msra.mxu0 %v2679
    %2770 = vmatpush.bf16.msra.mxu0 %v2675
    %2771 = vmatmul.bf16.gmra.mxu0 %v2544
    %v2772 = vpop.f32.mrf.mxu0
    %v2773 = vadd.f32 0.0, %v2772
    %v2774 = vpop.f32.mrf.mxu0
    %2775 = vdwg.mxu0
    %2776 = vmatpush.bf16.msra.mxu0 %v2704
    %2777 = vmatpush.bf16.msra.mxu0 %v2700
    %2778 = vmatpush.bf16.msra.mxu0 %v2696
    %2779 = vmatpush.bf16.msra.mxu0 %v2692
    %2780 = vmatpush.bf16.msra.mxu0 %v2688
    %2781 = vmatpush.bf16.msra.mxu0 %v2684
    %2782 = vmatpush.bf16.msra.mxu0 %v2680
    %2783 = vmatpush.bf16.msra.mxu0 %v2676
    %2784 = vmatmul.bf16.gmra.mxu0 %v2544
    %v2785 = vpop.f32.mrf.mxu0
    %v2786 = vadd.f32 0.0, %v2785
    %v2787 = vpop.f32.mrf.mxu0
    %2788 = vdwg.mxu0
    %v2793 = vunpack.c.l.b16 %v2540
    %v2794 = vunpack.c.h.b16 %v2540
    %v2795 = vunpack.c.l.b16 %v2541
    %v2796 = vunpack.c.h.b16 %v2541
    %v2797 = vunpack.c.l.b16 %v2542
    %v2798 = vunpack.c.h.b16 %v2542
    %v2799 = vunpack.c.l.b16 %v2543
    %v2800 = vunpack.c.h.b16 %v2543
    %v2801 = vpack.c.b16 %v2797, %v2793
    %v2802 = vpack.c.b16 %v2798, %v2794
    %v2803 = vpack.c.b16 %v2799, %v2795
    %v2804 = vpack.c.b16 %v2800, %v2796
    %v2810 = vsel %vm398, %v2539, 0
    %2812 = vmatpush.bf16.msra.mxu0 0
    %2813 = vmatpush.bf16.msra.mxu0 0
    %2814 = vmatpush.bf16.msra.mxu0 0
    %2815 = vmatpush.bf16.msra.mxu0 0
    %2816 = vmatpush.bf16.msra.mxu0 0
    %2817 = vmatpush.bf16.msra.mxu0 0
    %2818 = vmatpush.bf16.msra.mxu0 0
    %2819 = vmatpush.bf16.msra.mxu0 %v2801
    %2820 = vmatmul.bf16.gmra.mxu0 %v2810
    %v2821 = vpop.f32.mrf.mxu0
    %v2822 = vadd.f32 %v2747, %v2821
    %v2823 = vpop.f32.mrf.mxu0
    %2824 = vdwg.mxu0
    %2825 = vmatpush.bf16.msra.mxu0 0
    %2826 = vmatpush.bf16.msra.mxu0 0
    %2827 = vmatpush.bf16.msra.mxu0 0
    %2828 = vmatpush.bf16.msra.mxu0 0
    %2829 = vmatpush.bf16.msra.mxu0 0
    %2830 = vmatpush.bf16.msra.mxu0 0
    %2831 = vmatpush.bf16.msra.mxu0 0
    %2832 = vmatpush.bf16.msra.mxu0 %v2802
    %2833 = vmatmul.bf16.gmra.mxu0 %v2810
    %v2834 = vpop.f32.mrf.mxu0
    %v2835 = vadd.f32 %v2760, %v2834
    %v2836 = vpop.f32.mrf.mxu0
    %2837 = vdwg.mxu0
    %2838 = vmatpush.bf16.msra.mxu0 0
    %2839 = vmatpush.bf16.msra.mxu0 0
    %2840 = vmatpush.bf16.msra.mxu0 0
    %2841 = vmatpush.bf16.msra.mxu0 0
    %2842 = vmatpush.bf16.msra.mxu0 0
    %2843 = vmatpush.bf16.msra.mxu0 0
    %2844 = vmatpush.bf16.msra.mxu0 0
    %2845 = vmatpush.bf16.msra.mxu0 %v2803
    %2846 = vmatmul.bf16.gmra.mxu0 %v2810
    %v2847 = vpop.f32.mrf.mxu0
    %v2848 = vadd.f32 %v2773, %v2847
    %v2849 = vpop.f32.mrf.mxu0
    %2850 = vdwg.mxu0
    %2851 = vmatpush.bf16.msra.mxu0 0
    %2852 = vmatpush.bf16.msra.mxu0 0
    %2853 = vmatpush.bf16.msra.mxu0 0
    %2854 = vmatpush.bf16.msra.mxu0 0
    %2855 = vmatpush.bf16.msra.mxu0 0
    %2856 = vmatpush.bf16.msra.mxu0 0
    %2857 = vmatpush.bf16.msra.mxu0 0
    %2858 = vmatpush.bf16.msra.mxu0 %v2804
    %2859 = vmatmul.bf16.gmra.mxu0 %v2810
    %v2860 = vpop.f32.mrf.mxu0
    %v2861 = vadd.f32 %v2786, %v2860
    %v2862 = vpop.f32.mrf.mxu0
    %2863 = vdwg.mxu0
    %v2864 = vadd.f32 %v2822, %v117
    %v2865 = vadd.f32 %v2835, %v118
    %v2866 = vadd.f32 %v2848, %v119
    %v2867 = vadd.f32 %v2861, %v120
    %v2868 = vxor.u32 %v2864, 2147483648
    %v2869 = vmul.f32 %v2868, 1.442695
    %v2870 = vpow.pop %v2869
    %v2871 = vadd.f32 %v2870, 1.0
    %v2872 = vrcp.pop %v2871
    %v2873 = vmul.f32 %v2871, %v2872
    %v2874 = vsub.f32 1.0, %v2873
    %v2875 = vmul.f32 %v2872, %v2874
    %v2876 = vadd.f32 %v2872, %v2875
    %vm2877 = vweird.f32 %v2871
    %vm2878 = vweird.f32 %v2872
    %vm2879 = vmor %vm2877, %vm2878
    %v2880 = vsel %vm2879, %v2872, %v2876
    %v2881 = vand.u32 2147483647, %v2871
    %vm2882 = vcmp.eq.f32.partialorder %v2881, 8.507059e+37
    %v2883 = vand.u32 %v2871, 2147483648
    %v2884 = vor.u32 1.1754944e-38, %v2883
    %v2885 = vsel %vm2882, %v2884, %v2880
    %v2886 = vmul.f32 1.0, %v2885
    %v2887 = vxor.u32 %v2865, 2147483648
    %v2888 = vmul.f32 %v2887, 1.442695
    %v2889 = vpow.pop %v2888
    %v2890 = vadd.f32 %v2889, 1.0
    %v2891 = vrcp.pop %v2890
    %v2892 = vmul.f32 %v2890, %v2891
    %v2893 = vsub.f32 1.0, %v2892
    %v2894 = vmul.f32 %v2891, %v2893
    %v2895 = vadd.f32 %v2891, %v2894
    %vm2896 = vweird.f32 %v2890
    %vm2897 = vweird.f32 %v2891
    %vm2898 = vmor %vm2896, %vm2897
    %v2899 = vsel %vm2898, %v2891, %v2895
    %v2900 = vand.u32 2147483647, %v2890
    %vm2901 = vcmp.eq.f32.partialorder %v2900, 8.507059e+37
    %v2902 = vand.u32 %v2890, 2147483648
    %v2903 = vor.u32 1.1754944e-38, %v2902
    %v2904 = vsel %vm2901, %v2903, %v2899
    %v2905 = vmul.f32 1.0, %v2904
    %v2906 = vtanh.pop %v2866
    %v2907 = vxor.u32 %v2867, 2147483648
    %v2908 = vmul.f32 %v2907, 1.442695
    %v2909 = vpow.pop %v2908
    %v2910 = vadd.f32 %v2909, 1.0
    %v2911 = vrcp.pop %v2910
    %v2912 = vmul.f32 %v2910, %v2911
    %v2913 = vsub.f32 1.0, %v2912
    %v2914 = vmul.f32 %v2911, %v2913
    %v2915 = vadd.f32 %v2911, %v2914
    %vm2916 = vweird.f32 %v2910
    %vm2917 = vweird.f32 %v2911
    %vm2918 = vmor %vm2916, %vm2917
    %v2919 = vsel %vm2918, %v2911, %v2915
    %v2920 = vand.u32 2147483647, %v2910
    %vm2921 = vcmp.eq.f32.partialorder %v2920, 8.507059e+37
    %v2922 = vand.u32 %v2910, 2147483648
    %v2923 = vor.u32 1.1754944e-38, %v2922
    %v2924 = vsel %vm2921, %v2923, %v2919
    %v2925 = vmul.f32 1.0, %v2924
    %v2926 = vmul.f32 %v2905, %v2533
    %v2927 = vmul.f32 %v2886, %v2906
    %v2928 = vadd.f32 %v2926, %v2927
    %v2929 = vtanh.pop %v2928
    %v2930 = vmul.f32 %v2925, %v2929
    %s2931 = sadd.s32 %s125, 6
    %v2932 = vstv %s2931
    %vm2933 = vcmp.lt.s32.totalorder %v2932, %v114
    %v2934 = vsel %vm2933, %v2930, %v2532
    %v2935 = vsel %vm2933, %v2928, %v2533
    %v2936 = vsel %vm2933, %v2930, 0.0
    %v2937 = vpack.c.bf16 %v2936, %v2936
    %s2938 = scalar_lea.vmem [#allocation13], 6
    %2939 = vst [vmem:[%s2938] sm:$0x1] %v2937
    %s2940 = scalar_lea.vmem [#allocation4], 7
    %v2941 = vld [vmem:[%s2940] sm:$0x1]
    %v2942 = vld [vmem:[#allocation7] sm:$0xff]
    %v2943 = vld [vmem:[#allocation7 + $0x8] sm:$0xff]
    %v2944 = vld [vmem:[#allocation7 + $0x10] sm:$0xff]
    %v2945 = vld [vmem:[#allocation7 + $0x18] sm:$0xff]
    %v2946 = vpack.c.bf16 %v2934, %v2934
    %v2947 = vld [vmem:[#allocation9] sm:$0xff]
    %v2948 = vld [vmem:[#allocation9 + $0x8] sm:$0xff]
    %v2949 = vld [vmem:[#allocation9 + $0x10] sm:$0xff]
    %v2950 = vld [vmem:[#allocation9 + $0x18] sm:$0xff]
    %v2951 = vld [vmem:[#allocation9 + $0x20] sm:$0xff]
    %v2952 = vld [vmem:[#allocation9 + $0x28] sm:$0xff]
    %v2953 = vld [vmem:[#allocation9 + $0x30] sm:$0xff]
    %v2954 = vld [vmem:[#allocation9 + $0x38] sm:$0xff]
    %v2955 = vld [vmem:[#allocation9 + $0x40] sm:$0xff]
    %v2956 = vld [vmem:[#allocation9 + $0x48] sm:$0xff]
    %v2957 = vld [vmem:[#allocation9 + $0x50] sm:$0xff]
    %v2958 = vld [vmem:[#allocation9 + $0x58] sm:$0xff]
    %v2959 = vld [vmem:[#allocation9 + $0x60] sm:$0xff]
    %v2960 = vld [vmem:[#allocation9 + $0x68] sm:$0xff]
    %v2961 = vld [vmem:[#allocation9 + $0x70] sm:$0xff]
    %v2962 = vld [vmem:[#allocation9 + $0x78] sm:$0xff]
    %v2963 = vld [vmem:[#allocation9 + $0x80] sm:$0xff]
    %v2964 = vld [vmem:[#allocation9 + $0x88] sm:$0xff]
    %v2965 = vld [vmem:[#allocation9 + $0x90] sm:$0xff]
    %v2966 = vld [vmem:[#allocation9 + $0x98] sm:$0xff]
    %v2967 = vld [vmem:[#allocation9 + $0xa0] sm:$0xff]
    %v2968 = vld [vmem:[#allocation9 + $0xa8] sm:$0xff]
    %v2969 = vld [vmem:[#allocation9 + $0xb0] sm:$0xff]
    %v2970 = vld [vmem:[#allocation9 + $0xb8] sm:$0xff]
    %v2971 = vld [vmem:[#allocation9 + $0xc0] sm:$0xff]
    %v2972 = vld [vmem:[#allocation9 + $0xc8] sm:$0xff]
    %v2973 = vld [vmem:[#allocation9 + $0xd0] sm:$0xff]
    %v2974 = vld [vmem:[#allocation9 + $0xd8] sm:$0xff]
    %v2975 = vld [vmem:[#allocation9 + $0xe0] sm:$0xff]
    %v2976 = vld [vmem:[#allocation9 + $0xe8] sm:$0xff]
    %v2977 = vld [vmem:[#allocation9 + $0xf0] sm:$0xff]
    %v2978 = vld [vmem:[#allocation9 + $0xf8] sm:$0xff]
    %v3011 = vunpack.c.l.b16 %v2947
    %v3012 = vunpack.c.h.b16 %v2947
    %v3013 = vunpack.c.l.b16 %v2948
    %v3014 = vunpack.c.h.b16 %v2948
    %v3015 = vunpack.c.l.b16 %v2949
    %v3016 = vunpack.c.h.b16 %v2949
    %v3017 = vunpack.c.l.b16 %v2950
    %v3018 = vunpack.c.h.b16 %v2950
    %v3019 = vunpack.c.l.b16 %v2951
    %v3020 = vunpack.c.h.b16 %v2951
    %v3021 = vunpack.c.l.b16 %v2952
    %v3022 = vunpack.c.h.b16 %v2952
    %v3023 = vunpack.c.l.b16 %v2953
    %v3024 = vunpack.c.h.b16 %v2953
    %v3025 = vunpack.c.l.b16 %v2954
    %v3026 = vunpack.c.h.b16 %v2954
    %v3027 = vunpack.c.l.b16 %v2955
    %v3028 = vunpack.c.h.b16 %v2955
    %v3029 = vunpack.c.l.b16 %v2956
    %v3030 = vunpack.c.h.b16 %v2956
    %v3031 = vunpack.c.l.b16 %v2957
    %v3032 = vunpack.c.h.b16 %v2957
    %v3033 = vunpack.c.l.b16 %v2958
    %v3034 = vunpack.c.h.b16 %v2958
    %v3035 = vunpack.c.l.b16 %v2959
    %v3036 = vunpack.c.h.b16 %v2959
    %v3037 = vunpack.c.l.b16 %v2960
    %v3038 = vunpack.c.h.b16 %v2960
    %v3039 = vunpack.c.l.b16 %v2961
    %v3040 = vunpack.c.h.b16 %v2961
    %v3041 = vunpack.c.l.b16 %v2962
    %v3042 = vunpack.c.h.b16 %v2962
    %v3043 = vunpack.c.l.b16 %v2963
    %v3044 = vunpack.c.h.b16 %v2963
    %v3045 = vunpack.c.l.b16 %v2964
    %v3046 = vunpack.c.h.b16 %v2964
    %v3047 = vunpack.c.l.b16 %v2965
    %v3048 = vunpack.c.h.b16 %v2965
    %v3049 = vunpack.c.l.b16 %v2966
    %v3050 = vunpack.c.h.b16 %v2966
    %v3051 = vunpack.c.l.b16 %v2967
    %v3052 = vunpack.c.h.b16 %v2967
    %v3053 = vunpack.c.l.b16 %v2968
    %v3054 = vunpack.c.h.b16 %v2968
    %v3055 = vunpack.c.l.b16 %v2969
    %v3056 = vunpack.c.h.b16 %v2969
    %v3057 = vunpack.c.l.b16 %v2970
    %v3058 = vunpack.c.h.b16 %v2970
    %v3059 = vunpack.c.l.b16 %v2971
    %v3060 = vunpack.c.h.b16 %v2971
    %v3061 = vunpack.c.l.b16 %v2972
    %v3062 = vunpack.c.h.b16 %v2972
    %v3063 = vunpack.c.l.b16 %v2973
    %v3064 = vunpack.c.h.b16 %v2973
    %v3065 = vunpack.c.l.b16 %v2974
    %v3066 = vunpack.c.h.b16 %v2974
    %v3067 = vunpack.c.l.b16 %v2975
    %v3068 = vunpack.c.h.b16 %v2975
    %v3069 = vunpack.c.l.b16 %v2976
    %v3070 = vunpack.c.h.b16 %v2976
    %v3071 = vunpack.c.l.b16 %v2977
    %v3072 = vunpack.c.h.b16 %v2977
    %v3073 = vunpack.c.l.b16 %v2978
    %v3074 = vunpack.c.h.b16 %v2978
    %v3075 = vpack.c.b16 %v3015, %v3011
    %v3076 = vpack.c.b16 %v3016, %v3012
    %v3077 = vpack.c.b16 %v3017, %v3013
    %v3078 = vpack.c.b16 %v3018, %v3014
    %v3079 = vpack.c.b16 %v3023, %v3019
    %v3080 = vpack.c.b16 %v3024, %v3020
    %v3081 = vpack.c.b16 %v3025, %v3021
    %v3082 = vpack.c.b16 %v3026, %v3022
    %v3083 = vpack.c.b16 %v3031, %v3027
    %v3084 = vpack.c.b16 %v3032, %v3028
    %v3085 = vpack.c.b16 %v3033, %v3029
    %v3086 = vpack.c.b16 %v3034, %v3030
    %v3087 = vpack.c.b16 %v3039, %v3035
    %v3088 = vpack.c.b16 %v3040, %v3036
    %v3089 = vpack.c.b16 %v3041, %v3037
    %v3090 = vpack.c.b16 %v3042, %v3038
    %v3091 = vpack.c.b16 %v3047, %v3043
    %v3092 = vpack.c.b16 %v3048, %v3044
    %v3093 = vpack.c.b16 %v3049, %v3045
    %v3094 = vpack.c.b16 %v3050, %v3046
    %v3095 = vpack.c.b16 %v3055, %v3051
    %v3096 = vpack.c.b16 %v3056, %v3052
    %v3097 = vpack.c.b16 %v3057, %v3053
    %v3098 = vpack.c.b16 %v3058, %v3054
    %v3099 = vpack.c.b16 %v3063, %v3059
    %v3100 = vpack.c.b16 %v3064, %v3060
    %v3101 = vpack.c.b16 %v3065, %v3061
    %v3102 = vpack.c.b16 %v3066, %v3062
    %v3103 = vpack.c.b16 %v3071, %v3067
    %v3104 = vpack.c.b16 %v3072, %v3068
    %v3105 = vpack.c.b16 %v3073, %v3069
    %v3106 = vpack.c.b16 %v3074, %v3070
    %3139 = vmatpush.bf16.msra.mxu0 %v3103
    %3140 = vmatpush.bf16.msra.mxu0 %v3099
    %3141 = vmatpush.bf16.msra.mxu0 %v3095
    %3142 = vmatpush.bf16.msra.mxu0 %v3091
    %3143 = vmatpush.bf16.msra.mxu0 %v3087
    %3144 = vmatpush.bf16.msra.mxu0 %v3083
    %3145 = vmatpush.bf16.msra.mxu0 %v3079
    %3146 = vmatpush.bf16.msra.mxu0 %v3075
    %3147 = vmatmul.bf16.gmra.mxu0 %v2946
    %v3148 = vpop.f32.mrf.mxu0
    %v3149 = vadd.f32 0.0, %v3148
    %v3150 = vpop.f32.mrf.mxu0
    %3151 = vdwg.mxu0
    %3152 = vmatpush.bf16.msra.mxu0 %v3104
    %3153 = vmatpush.bf16.msra.mxu0 %v3100
    %3154 = vmatpush.bf16.msra.mxu0 %v3096
    %3155 = vmatpush.bf16.msra.mxu0 %v3092
    %3156 = vmatpush.bf16.msra.mxu0 %v3088
    %3157 = vmatpush.bf16.msra.mxu0 %v3084
    %3158 = vmatpush.bf16.msra.mxu0 %v3080
    %3159 = vmatpush.bf16.msra.mxu0 %v3076
    %3160 = vmatmul.bf16.gmra.mxu0 %v2946
    %v3161 = vpop.f32.mrf.mxu0
    %v3162 = vadd.f32 0.0, %v3161
    %v3163 = vpop.f32.mrf.mxu0
    %3164 = vdwg.mxu0
    %3165 = vmatpush.bf16.msra.mxu0 %v3105
    %3166 = vmatpush.bf16.msra.mxu0 %v3101
    %3167 = vmatpush.bf16.msra.mxu0 %v3097
    %3168 = vmatpush.bf16.msra.mxu0 %v3093
    %3169 = vmatpush.bf16.msra.mxu0 %v3089
    %3170 = vmatpush.bf16.msra.mxu0 %v3085
    %3171 = vmatpush.bf16.msra.mxu0 %v3081
    %3172 = vmatpush.bf16.msra.mxu0 %v3077
    %3173 = vmatmul.bf16.gmra.mxu0 %v2946
    %v3174 = vpop.f32.mrf.mxu0
    %v3175 = vadd.f32 0.0, %v3174
    %v3176 = vpop.f32.mrf.mxu0
    %3177 = vdwg.mxu0
    %3178 = vmatpush.bf16.msra.mxu0 %v3106
    %3179 = vmatpush.bf16.msra.mxu0 %v3102
    %3180 = vmatpush.bf16.msra.mxu0 %v3098
    %3181 = vmatpush.bf16.msra.mxu0 %v3094
    %3182 = vmatpush.bf16.msra.mxu0 %v3090
    %3183 = vmatpush.bf16.msra.mxu0 %v3086
    %3184 = vmatpush.bf16.msra.mxu0 %v3082
    %3185 = vmatpush.bf16.msra.mxu0 %v3078
    %3186 = vmatmul.bf16.gmra.mxu0 %v2946
    %v3187 = vpop.f32.mrf.mxu0
    %v3188 = vadd.f32 0.0, %v3187
    %v3189 = vpop.f32.mrf.mxu0
    %3190 = vdwg.mxu0
    %v3195 = vunpack.c.l.b16 %v2942
    %v3196 = vunpack.c.h.b16 %v2942
    %v3197 = vunpack.c.l.b16 %v2943
    %v3198 = vunpack.c.h.b16 %v2943
    %v3199 = vunpack.c.l.b16 %v2944
    %v3200 = vunpack.c.h.b16 %v2944
    %v3201 = vunpack.c.l.b16 %v2945
    %v3202 = vunpack.c.h.b16 %v2945
    %v3203 = vpack.c.b16 %v3199, %v3195
    %v3204 = vpack.c.b16 %v3200, %v3196
    %v3205 = vpack.c.b16 %v3201, %v3197
    %v3206 = vpack.c.b16 %v3202, %v3198
    %v3212 = vsel %vm398, %v2941, 0
    %3214 = vmatpush.bf16.msra.mxu0 0
    %3215 = vmatpush.bf16.msra.mxu0 0
    %3216 = vmatpush.bf16.msra.mxu0 0
    %3217 = vmatpush.bf16.msra.mxu0 0
    %3218 = vmatpush.bf16.msra.mxu0 0
    %3219 = vmatpush.bf16.msra.mxu0 0
    %3220 = vmatpush.bf16.msra.mxu0 0
    %3221 = vmatpush.bf16.msra.mxu0 %v3203
    %3222 = vmatmul.bf16.gmra.mxu0 %v3212
    %v3223 = vpop.f32.mrf.mxu0
    %v3224 = vadd.f32 %v3149, %v3223
    %v3225 = vpop.f32.mrf.mxu0
    %3226 = vdwg.mxu0
    %3227 = vmatpush.bf16.msra.mxu0 0
    %3228 = vmatpush.bf16.msra.mxu0 0
    %3229 = vmatpush.bf16.msra.mxu0 0
    %3230 = vmatpush.bf16.msra.mxu0 0
    %3231 = vmatpush.bf16.msra.mxu0 0
    %3232 = vmatpush.bf16.msra.mxu0 0
    %3233 = vmatpush.bf16.msra.mxu0 0
    %3234 = vmatpush.bf16.msra.mxu0 %v3204
    %3235 = vmatmul.bf16.gmra.mxu0 %v3212
    %v3236 = vpop.f32.mrf.mxu0
    %v3237 = vadd.f32 %v3162, %v3236
    %v3238 = vpop.f32.mrf.mxu0
    %3239 = vdwg.mxu0
    %3240 = vmatpush.bf16.msra.mxu0 0
    %3241 = vmatpush.bf16.msra.mxu0 0
    %3242 = vmatpush.bf16.msra.mxu0 0
    %3243 = vmatpush.bf16.msra.mxu0 0
    %3244 = vmatpush.bf16.msra.mxu0 0
    %3245 = vmatpush.bf16.msra.mxu0 0
    %3246 = vmatpush.bf16.msra.mxu0 0
    %3247 = vmatpush.bf16.msra.mxu0 %v3205
    %3248 = vmatmul.bf16.gmra.mxu0 %v3212
    %v3249 = vpop.f32.mrf.mxu0
    %v3250 = vadd.f32 %v3175, %v3249
    %v3251 = vpop.f32.mrf.mxu0
    %3252 = vdwg.mxu0
    %3253 = vmatpush.bf16.msra.mxu0 0
    %3254 = vmatpush.bf16.msra.mxu0 0
    %3255 = vmatpush.bf16.msra.mxu0 0
    %3256 = vmatpush.bf16.msra.mxu0 0
    %3257 = vmatpush.bf16.msra.mxu0 0
    %3258 = vmatpush.bf16.msra.mxu0 0
    %3259 = vmatpush.bf16.msra.mxu0 0
    %3260 = vmatpush.bf16.msra.mxu0 %v3206
    %3261 = vmatmul.bf16.gmra.mxu0 %v3212
    %v3262 = vpop.f32.mrf.mxu0
    %v3263 = vadd.f32 %v3188, %v3262
    %v3264 = vpop.f32.mrf.mxu0
    %3265 = vdwg.mxu0
    %v3266 = vadd.f32 %v3224, %v117
    %v3267 = vadd.f32 %v3237, %v118
    %v3268 = vadd.f32 %v3250, %v119
    %v3269 = vadd.f32 %v3263, %v120
    %v3270 = vxor.u32 %v3266, 2147483648
    %v3271 = vmul.f32 %v3270, 1.442695
    %v3272 = vpow.pop %v3271
    %v3273 = vadd.f32 %v3272, 1.0
    %v3274 = vrcp.pop %v3273
    %v3275 = vmul.f32 %v3273, %v3274
    %v3276 = vsub.f32 1.0, %v3275
    %v3277 = vmul.f32 %v3274, %v3276
    %v3278 = vadd.f32 %v3274, %v3277
    %vm3279 = vweird.f32 %v3273
    %vm3280 = vweird.f32 %v3274
    %vm3281 = vmor %vm3279, %vm3280
    %v3282 = vsel %vm3281, %v3274, %v3278
    %v3283 = vand.u32 2147483647, %v3273
    %vm3284 = vcmp.eq.f32.partialorder %v3283, 8.507059e+37
    %v3285 = vand.u32 %v3273, 2147483648
    %v3286 = vor.u32 1.1754944e-38, %v3285
    %v3287 = vsel %vm3284, %v3286, %v3282
    %v3288 = vmul.f32 1.0, %v3287
    %v3289 = vxor.u32 %v3267, 2147483648
    %v3290 = vmul.f32 %v3289, 1.442695
    %v3291 = vpow.pop %v3290
    %v3292 = vadd.f32 %v3291, 1.0
    %v3293 = vrcp.pop %v3292
    %v3294 = vmul.f32 %v3292, %v3293
    %v3295 = vsub.f32 1.0, %v3294
    %v3296 = vmul.f32 %v3293, %v3295
    %v3297 = vadd.f32 %v3293, %v3296
    %vm3298 = vweird.f32 %v3292
    %vm3299 = vweird.f32 %v3293
    %vm3300 = vmor %vm3298, %vm3299
    %v3301 = vsel %vm3300, %v3293, %v3297
    %v3302 = vand.u32 2147483647, %v3292
    %vm3303 = vcmp.eq.f32.partialorder %v3302, 8.507059e+37
    %v3304 = vand.u32 %v3292, 2147483648
    %v3305 = vor.u32 1.1754944e-38, %v3304
    %v3306 = vsel %vm3303, %v3305, %v3301
    %v3307 = vmul.f32 1.0, %v3306
    %v3308 = vtanh.pop %v3268
    %v3309 = vxor.u32 %v3269, 2147483648
    %v3310 = vmul.f32 %v3309, 1.442695
    %v3311 = vpow.pop %v3310
    %v3312 = vadd.f32 %v3311, 1.0
    %v3313 = vrcp.pop %v3312
    %v3314 = vmul.f32 %v3312, %v3313
    %v3315 = vsub.f32 1.0, %v3314
    %v3316 = vmul.f32 %v3313, %v3315
    %v3317 = vadd.f32 %v3313, %v3316
    %vm3318 = vweird.f32 %v3312
    %vm3319 = vweird.f32 %v3313
    %vm3320 = vmor %vm3318, %vm3319
    %v3321 = vsel %vm3320, %v3313, %v3317
    %v3322 = vand.u32 2147483647, %v3312
    %vm3323 = vcmp.eq.f32.partialorder %v3322, 8.507059e+37
    %v3324 = vand.u32 %v3312, 2147483648
    %v3325 = vor.u32 1.1754944e-38, %v3324
    %v3326 = vsel %vm3323, %v3325, %v3321
    %v3327 = vmul.f32 1.0, %v3326
    %v3328 = vmul.f32 %v3307, %v2935
    %v3329 = vmul.f32 %v3288, %v3308
    %v3330 = vadd.f32 %v3328, %v3329
    %v3331 = vtanh.pop %v3330
    %v3332 = vmul.f32 %v3327, %v3331
    %s3333 = sadd.s32 %s125, 7
    %v3334 = vstv %s3333
    %vm3335 = vcmp.lt.s32.totalorder %v3334, %v114
    %v3336 = vsel %vm3335, %v3332, %v2934
    %v3337 = vsel %vm3335, %v3330, %v2935
    %v3338 = vsel %vm3335, %v3332, 0.0
    %v3339 = vpack.c.bf16 %v3338, %v3338
    %s3340 = scalar_lea.vmem [#allocation13], 7
    %3341 = vst [vmem:[%s3340] sm:$0x1] %v3339
    %3342 = vst [vmem:[#allocation2] sm:$0x3] %v3336
    %3343 = vst [vmem:[#allocation3] sm:$0x3] %v3337
    // Predicated region
    $region54: #{tpu_custom_call.1} parent=1 // pred_check
      %p3344 = pneg %p106
    $region55: #{tpu_custom_call.1} parent=1 // pred_check_branch
      %3346 = sbr.rel (%p3344) target = $region57
    $region56: #{tpu_custom_call.1} parent=1 // pred_region
      %3347 = vst [vmem:[#allocation14] sm:$0x3] %v3336
      %3348 = vst [vmem:[#allocation16] sm:$0x3] %v3337
    $region57: #{tpu_custom_call.1} parent=1 // pred_fallthru
      _
    // Predicated region
    $region58: #{tpu_custom_call.1} parent=1 // pred_check
      _
    $region59: #{tpu_custom_call.1} parent=1 // pred_check_branch
      %3350 = sbr.rel (0) target = $region61
    $region60: #{tpu_custom_call.1} parent=1 // pred_region
      %3352 = vsyncadd [#allocation6], 0
      %s3353 = sshll.u32 [#allocation13], 4
      %s3354 = int_to_ptr.vmem [resolvable:$true] %s3353
      %s3355 = sshll.u32 %s7, 4
      %s3356 = int_to_ptr.hbm [resolvable:$true] %s3355
      %3361 = dma.vmem_to_hbm [thread:$0]  %s3354, 128, %s3356, [#allocation6], 16, 16, 1
    $region61: #{tpu_custom_call.1} parent=1 // pred_fallthru
      _
    // Predicated region
    $region62: #{tpu_custom_call.1} parent=1 // pred_check
      _
    $region63: #{tpu_custom_call.1} parent=1 // pred_check_branch
      %3363 = sbr.rel (0) target = $region65
    $region64: #{tpu_custom_call.1} parent=1 // pred_region
      %3365 = vsyncadd [#allocation15], 0
      %s3367 = sshll.u32 [#allocation14], 4
      %s3368 = int_to_ptr.vmem [resolvable:$true] %s3367
      %s3369 = sshll.u32 %s8, 4
      %s3370 = int_to_ptr.hbm [resolvable:$true] %s3369
      %3372 = dma.vmem_to_hbm [thread:$0]  %s3368, 32, %s3370, [#allocation15]
    $region65: #{tpu_custom_call.1} parent=1 // pred_fallthru
      _
    // Predicated region
    $region66: #{tpu_custom_call.1} parent=1 // pred_check
      _
    $region67: #{tpu_custom_call.1} parent=1 // pred_check_branch
      %3374 = sbr.rel (0) target = $region69
    $region68: #{tpu_custom_call.1} parent=1 // pred_region
      %3376 = vsyncadd [#allocation15], 0
      %s3378 = sshll.u32 [#allocation16], 4
      %s3379 = int_to_ptr.vmem [resolvable:$true] %s3378
      %s3380 = sshll.u32 %s9, 4
      %s3381 = int_to_ptr.hbm [resolvable:$true] %s3380
      %3383 = dma.vmem_to_hbm [thread:$0]  %s3379, 32, %s3381, [#allocation15]
    $region69: #{tpu_custom_call.1} parent=1 // pred_fallthru
      _
    // Predicated region
    $region70: #{tpu_custom_call.1} parent=1 // pred_check
      _
    $region71: #{tpu_custom_call.1} parent=1 // pred_check_branch
      %3385 = sbr.rel (0) target = $region73
    $region72: #{tpu_custom_call.1} parent=1 // pred_region
      %3387 = dma.done [#allocation6], 128
    $region73: #{tpu_custom_call.1} parent=1 // pred_fallthru
      _
    // Predicated region
    $region74: #{tpu_custom_call.1} parent=1 // pred_check
      _
    $region75: #{tpu_custom_call.1} parent=1 // pred_check_branch
      %3389 = sbr.rel (0) target = $region77
    $region76: #{tpu_custom_call.1} parent=1 // pred_region
      %3391 = dma.done [#allocation15], 32
    $region77: #{tpu_custom_call.1} parent=1 // pred_fallthru
      _
    // Predicated region
    $region78: #{tpu_custom_call.1} parent=1 // pred_check
      _
    $region79: #{tpu_custom_call.1} parent=1 // pred_check_branch
      %3393 = sbr.rel (0) target = $region81
    $region80: #{tpu_custom_call.1} parent=1 // pred_region
      %3395 = dma.done [#allocation15], 32
    $region81: #{tpu_custom_call.1} parent=1 // pred_fallthru
      _
    %3396 = vsyncpa [#allocation5], 1
    %3397 = vsyncpa [#allocation8], 1
    %3398 = vsyncpa [#allocation11], 1
    %3399 = vsyncpa [#allocation6], 1
    %3400 = vsyncpa [#allocation15], 1

</llo_original>
